<compile_context>
chip_gen: v7x
topology: tpu7x:2x2x1
jax: 0.10.0
libtpu: 0.0.40
codegen_flags: <defaults>
</compile_context>

<pallas_src>
import math
from functools import partial

import jax
import jax.numpy as jnp
from jax import lax
from jax.experimental import pallas as pl
from jax.experimental.pallas import tpu as pltpu

# ----------------------- module-consistent configuration -----------------------
EMBED_DIM = 32
HIDDEN_DIM = 64
NUM_CHANNELS = 4
NUM_HEADS = 4
NUM_LAYERS = 2
NUM_CLASSES = 10
PATCH_SIZE = 4
IMG_SIZE = 16
NUM_PATCHES = (IMG_SIZE // PATCH_SIZE) ** 2            # 16
PATCH_DIM = NUM_CHANNELS * PATCH_SIZE * PATCH_SIZE     # 64
HEAD_DIM = EMBED_DIM // NUM_HEADS                      # 8
SEQ_LEN = NUM_PATCHES + 1                              # 17 real tokens
S_PAD = 24                                             # padded seq (multiple of 8)
NC_PAD = 128                                           # lane-dense padded #classes
LN_EPS = 1e-5
ATTN_SCALE = 1.0 / math.sqrt(HEAD_DIM)
_INV_SQRT2 = 1.0 / math.sqrt(2.0)
NEG_INF = -1e30
MXU_DTYPE = jnp.bfloat16                               # MXU-native operand dtype


# ------------------------------ in-kernel helpers -------------------------------
def _mxu_dot(a, b):
    """2-D matmul on the MXU: bf16 operands, f32 accumulation."""
    return jnp.dot(a.astype(MXU_DTYPE), b.astype(MXU_DTYPE),
                   preferred_element_type=jnp.float32)


def _layernorm(x, g, b):
    """Row-wise LayerNorm (biased variance, eps=1e-5), f32 math. g/b: [1, E]."""
    mean = jnp.mean(x, axis=-1, keepdims=True)
    var = jnp.mean(jnp.square(x - mean), axis=-1, keepdims=True)
    return (x - mean) * lax.rsqrt(var + LN_EPS) * g + b


def _gelu_exact(x):
    """Exact (erf-based) GELU, matching torch.nn.GELU() default, f32."""
    return 0.5 * x * (1.0 + lax.erf(x * _INV_SQRT2))


# --------------------------------- fused kernel ---------------------------------
def _vit_kernel(patches_ref, in_w_ref, in_b_ref, cls_ref, pos_cls_ref, pos_patch_ref,
                ln1_g_ref, ln1_b_ref, qkv_w_ref, qkv_b_ref, out_w_ref, out_b_ref,
                ln2_g_ref, ln2_b_ref, fc1_w_ref, fc1_b_ref, fc2_w_ref, fc2_b_ref,
                hln_g_ref, hln_b_ref, head_w_ref, head_b_ref,
                out_ref, x_s, *, batch):
    B = batch
    E, H, HD, T, SP = EMBED_DIM, NUM_HEADS, HEAD_DIM, NUM_PATCHES, S_PAD

    # ------------- patch embedding + cls token + positional encoding -------------
    emb = _mxu_dot(patches_ref[...], in_w_ref[...]) + in_b_ref[...]        # [B*T, E]
    cls_row = cls_ref[...] + pos_cls_ref[...]                              # [1, E]
    for b in range(B):
        r0 = b * SP
        x_s[r0:r0 + T, :] = emb[b * T:(b + 1) * T, :] + pos_patch_ref[...]
        x_s[r0 + T:r0 + SP, :] = jnp.zeros((SP - T, E), jnp.float32)       # pad rows
        x_s[r0 + T:r0 + T + 1, :] = cls_row                                # cls last
    x = x_s[...]                                                           # [B*SP, E]

    # key-padding mask: only the SEQ_LEN real tokens may be attended to as keys
    key_valid = lax.broadcasted_iota(jnp.int32, (1, 1, SP), 2) < SEQ_LEN   # [1,1,SP]

    for l in range(NUM_LAYERS):
        # -------------------------- multi-head attention --------------------------
        h = _layernorm(x, ln1_g_ref[l], ln1_b_ref[l])
        qkv = _mxu_dot(h, qkv_w_ref[l]) + qkv_b_ref[l]                     # [B*SP, 3E]
        qkv = qkv.reshape(B, SP, 3 * E)
        out_w = out_w_ref[l]                                               # [E, E]
        attn = jnp.zeros((B * SP, E), jnp.float32)
        for hd in range(H):
            q = qkv[:, :, hd * HD:(hd + 1) * HD]                           # [B,SP,HD]
            k = qkv[:, :, E + hd * HD:E + (hd + 1) * HD]
            v = qkv[:, :, 2 * E + hd * HD:2 * E + (hd + 1) * HD]
            # scores = q @ k^T, batched over B, contracting last dims (no .T)
            s = lax.dot_general(q.astype(MXU_DTYPE), k.astype(MXU_DTYPE),
                                (((2,), (2,)), ((0,), (0,))),
                                preferred_element_type=jnp.float32) * ATTN_SCALE
            s = jnp.where(key_valid, s, NEG_INF)
            p = jnp.exp(s - jnp.max(s, axis=-1, keepdims=True))
            p = p / jnp.sum(p, axis=-1, keepdims=True)                     # [B,SP,SP]
            o = lax.dot_general(p.astype(MXU_DTYPE), v.astype(MXU_DTYPE),
                                (((2,), (1,)), ((0,), (0,))),
                                preferred_element_type=jnp.float32)        # [B,SP,HD]
            # per-head slice of the output projection; summing == concat + matmul
            attn = attn + _mxu_dot(o.reshape(B * SP, HD),
                                   out_w[hd * HD:(hd + 1) * HD, :])
        x = x + attn + out_b_ref[l]

        # -------------------------------- MLP block --------------------------------
        h = _layernorm(x, ln2_g_ref[l], ln2_b_ref[l])
        f = _mxu_dot(h, fc1_w_ref[l]) + fc1_b_ref[l]
        f = _gelu_exact(f)
        x = x + _mxu_dot(f, fc2_w_ref[l]) + fc2_b_ref[l]

    # ----------------------------- classification head -----------------------------
    h = _layernorm(x, hln_g_ref[...], hln_b_ref[...])
    logits = _mxu_dot(h, head_w_ref[...]) + head_b_ref[...]                # [B*SP, NC_PAD]
    for b in range(B):
        row = b * S_PAD + NUM_PATCHES                                      # cls row
        out_ref[b:b + 1, :] = logits[row:row + 1, :]


# ---------------------------------- glue / wrapper -------------------------------
def img_to_patch(x, patch_size):
    """x: [B, C, H, W] -> [B, num_patches, C*patch_size**2] (matches torch fn)."""
    B, C, H, W = x.shape
    x = x.reshape(B, C, H // patch_size, patch_size, W // patch_size, patch_size)
    x = x.transpose(0, 2, 4, 1, 3, 5)
    x = x.reshape(B, (H // patch_size) * (W // patch_size), C * patch_size * patch_size)
    return x


def vit_forward(params, x):
    B = x.shape[0]
    patches = img_to_patch(x, PATCH_SIZE).reshape(B * NUM_PATCHES, PATCH_DIM)
    p = params
    logits_pad = pl.pallas_call(
        partial(_vit_kernel, batch=B),
        out_shape=jax.ShapeDtypeStruct((B, NC_PAD), jnp.float32),
        scratch_shapes=[pltpu.VMEM((B * S_PAD, EMBED_DIM), jnp.float32)],
    )(patches, p["in_w"], p["in_b"], p["cls"], p["pos_cls"], p["pos_patch"],
      p["ln1_g"], p["ln1_b"], p["qkv_w"], p["qkv_b"], p["out_w"], p["out_b"],
      p["ln2_g"], p["ln2_b"], p["fc1_w"], p["fc1_b"], p["fc2_w"], p["fc2_b"],
      p["head_ln_g"], p["head_ln_b"], p["head_w"], p["head_b"])
    return logits_pad[:, :NUM_CLASSES]                                     # [B, 10]


# ---------------------------------- parameters ------------------------------------
def init_params(key):
    def normal(k, shape, scale=0.02):
        return scale * jax.random.normal(k, shape, dtype=jnp.float32)

    keys = iter(jax.random.split(key, 32))
    L, E = NUM_LAYERS, EMBED_DIM

    pos = jax.random.normal(next(keys), (SEQ_LEN, E), dtype=jnp.float32)
    head_w = jnp.zeros((E, NC_PAD), jnp.float32)
    head_w = head_w.at[:, :NUM_CLASSES].set(normal(next(keys), (E, NUM_CLASSES)))

    params = {
        # patch embedding
        "in_w": normal(next(keys), (PATCH_DIM, E)),
        "in_b": jnp.zeros((1, E), jnp.float32),
        # cls token + positional embedding (split so all kernel loads are aligned)
        "cls": jax.random.normal(next(keys), (1, E), dtype=jnp.float32),
        "pos_cls": pos[0:1],
        "pos_patch": pos[1:],
        # transformer blocks, stacked over the layer axis
        "ln1_g": jnp.ones((L, 1, E), jnp.float32),
        "ln1_b": jnp.zeros((L, 1, E), jnp.float32),
        "qkv_w": normal(next(keys), (L, E, 3 * E)),
        "qkv_b": jnp.zeros((L, 1, 3 * E), jnp.float32),
        "out_w": normal(next(keys), (L, E, E)),
        "out_b": jnp.zeros((L, 1, E), jnp.float32),
        "ln2_g": jnp.ones((L, 1, E), jnp.float32),
        "ln2_b": jnp.zeros((L, 1, E), jnp.float32),
        "fc1_w": normal(next(keys), (L, E, HIDDEN_DIM)),
        "fc1_b": jnp.zeros((L, 1, HIDDEN_DIM), jnp.float32),
        "fc2_w": normal(next(keys), (L, HIDDEN_DIM, E)),
        "fc2_b": jnp.zeros((L, 1, E), jnp.float32),
        # classification head (weights padded to 128 output lanes; extra cols zero)
        "head_ln_g": jnp.ones((1, E), jnp.float32),
        "head_ln_b": jnp.zeros((1, E), jnp.float32),
        "head_w": head_w,
        "head_b": jnp.zeros((1, NC_PAD), jnp.float32),
    }
    return params


# --------------------------------------- main --------------------------------------
if __name__ == "__main__":
    key = jax.random.PRNGKey(0)
    k_params, k_x = jax.random.split(key)

    params = init_params(k_params)
    x = jax.random.normal(k_x, (2, NUM_CHANNELS, IMG_SIZE, IMG_SIZE), dtype=jnp.float32)

    forward = jax.jit(vit_forward)
    out = forward(params, x)
    jax.block_until_ready(out)

    assert out.shape == (2, NUM_CLASSES), out.shape
    assert out.dtype == jnp.float32
    assert bool(jnp.all(jnp.isfinite(out)))
    print("KERNEL_OK")
</pallas_src>

<mosaic_0001>
module attributes {stable_mosaic.version = 11 : i64} {
  func.func @_vit_kernel(%arg0: memref<32x64xf32, #tpu.memory_space<vmem>>, %arg1: memref<64x32xf32, #tpu.memory_space<vmem>>, %arg2: memref<1x32xf32, #tpu.memory_space<vmem>>, %arg3: memref<1x32xf32, #tpu.memory_space<vmem>>, %arg4: memref<1x32xf32, #tpu.memory_space<vmem>>, %arg5: memref<16x32xf32, #tpu.memory_space<vmem>>, %arg6: memref<2x1x32xf32, #tpu.memory_space<vmem>>, %arg7: memref<2x1x32xf32, #tpu.memory_space<vmem>>, %arg8: memref<2x32x96xf32, #tpu.memory_space<vmem>>, %arg9: memref<2x1x96xf32, #tpu.memory_space<vmem>>, %arg10: memref<2x32x32xf32, #tpu.memory_space<vmem>>, %arg11: memref<2x1x32xf32, #tpu.memory_space<vmem>>, %arg12: memref<2x1x32xf32, #tpu.memory_space<vmem>>, %arg13: memref<2x1x32xf32, #tpu.memory_space<vmem>>, %arg14: memref<2x32x64xf32, #tpu.memory_space<vmem>>, %arg15: memref<2x1x64xf32, #tpu.memory_space<vmem>>, %arg16: memref<2x64x32xf32, #tpu.memory_space<vmem>>, %arg17: memref<2x1x32xf32, #tpu.memory_space<vmem>>, %arg18: memref<1x32xf32, #tpu.memory_space<vmem>>, %arg19: memref<1x32xf32, #tpu.memory_space<vmem>>, %arg20: memref<32x128xf32, #tpu.memory_space<vmem>>, %arg21: memref<1x128xf32, #tpu.memory_space<vmem>>, %arg22: memref<2x128xf32, #tpu.memory_space<vmem>>, %arg23: memref<48x32xf32, #tpu.memory_space<vmem>>) attributes {dimension_semantics = [], scalar_prefetch = 0 : i64, scratch_operands = 1 : i64, tpu.core_type = #tpu.core_type<tc>} {
    %c0 = arith.constant 0 : index
    %c0_0 = arith.constant 0 : index
    %0 = vector.load %arg0[%c0, %c0_0] : memref<32x64xf32, #tpu.memory_space<vmem>>, vector<32x64xf32>
    %c0_1 = arith.constant 0 : index
    %c0_2 = arith.constant 0 : index
    %1 = vector.load %arg1[%c0_1, %c0_2] : memref<64x32xf32, #tpu.memory_space<vmem>>, vector<64x32xf32>
    %2 = arith.truncf %0 : vector<32x64xf32> to vector<32x64xbf16>
    %3 = arith.truncf %1 : vector<64x32xf32> to vector<64x32xbf16>
    %cst = arith.constant dense<0.000000e+00> : vector<32x32xf32>
    %4 = tpu.matmul %2, %3, %cst {dimension_numbers = #tpu.dot_dimension_numbers<[1], [0], [0], [1], [0, 0, 1, 1], [], []>} : vector<32x64xbf16>, vector<64x32xbf16>, vector<32x32xf32> -> vector<32x32xf32>
    %c0_3 = arith.constant 0 : index
    %c0_4 = arith.constant 0 : index
    %5 = vector.load %arg2[%c0_3, %c0_4] : memref<1x32xf32, #tpu.memory_space<vmem>>, vector<1x32xf32>
    %6 = vector.broadcast %5 : vector<1x32xf32> to vector<32x32xf32>
    %7 = arith.addf %4, %6 : vector<32x32xf32>
    %c0_5 = arith.constant 0 : index
    %c0_6 = arith.constant 0 : index
    %8 = vector.load %arg3[%c0_5, %c0_6] : memref<1x32xf32, #tpu.memory_space<vmem>>, vector<1x32xf32>
    %c0_7 = arith.constant 0 : index
    %c0_8 = arith.constant 0 : index
    %9 = vector.load %arg4[%c0_7, %c0_8] : memref<1x32xf32, #tpu.memory_space<vmem>>, vector<1x32xf32>
    %10 = arith.addf %8, %9 : vector<1x32xf32>
    %11 = vector.extract_strided_slice %7 {offsets = [0, 0], sizes = [16, 32], strides = [1, 1]} : vector<32x32xf32> to vector<16x32xf32>
    %c0_9 = arith.constant 0 : index
    %c0_10 = arith.constant 0 : index
    %12 = vector.load %arg5[%c0_9, %c0_10] : memref<16x32xf32, #tpu.memory_space<vmem>>, vector<16x32xf32>
    %13 = arith.addf %11, %12 : vector<16x32xf32>
    %c0_11 = arith.constant 0 : index
    %c0_12 = arith.constant 0 : index
    %14 = vector.load %arg23[%c0_11, %c0_12] : memref<48x32xf32, #tpu.memory_space<vmem>>, vector<16x32xf32>
    tpu.vector_store %arg23[%c0_11, %c0_12], %13 {strides = array<i32>} : memref<48x32xf32, #tpu.memory_space<vmem>>, vector<16x32xf32>,
    %cst_13 = arith.constant 0.000000e+00 : f32
    %15 = vector.broadcast %cst_13 : f32 to vector<8x32xf32>
    %c16 = arith.constant 16 : index
    %c0_14 = arith.constant 0 : index
    %16 = vector.load %arg23[%c16, %c0_14] : memref<48x32xf32, #tpu.memory_space<vmem>>, vector<8x32xf32>
    tpu.vector_store %arg23[%c16, %c0_14], %15 {strides = array<i32>} : memref<48x32xf32, #tpu.memory_space<vmem>>, vector<8x32xf32>,
    %c16_15 = arith.constant 16 : index
    %c0_16 = arith.constant 0 : index
    %17 = vector.load %arg23[%c16_15, %c0_16] : memref<48x32xf32, #tpu.memory_space<vmem>>, vector<1x32xf32>
    tpu.vector_store %arg23[%c16_15, %c0_16], %10 {strides = array<i32>} : memref<48x32xf32, #tpu.memory_space<vmem>>, vector<1x32xf32>,
    %18 = vector.extract_strided_slice %7 {offsets = [16, 0], sizes = [16, 32], strides = [1, 1]} : vector<32x32xf32> to vector<16x32xf32>
    %c0_17 = arith.constant 0 : index
    %c0_18 = arith.constant 0 : index
    %19 = vector.load %arg5[%c0_17, %c0_18] : memref<16x32xf32, #tpu.memory_space<vmem>>, vector<16x32xf32>
    %20 = arith.addf %18, %19 : vector<16x32xf32>
    %c24 = arith.constant 24 : index
    %c0_19 = arith.constant 0 : index
    %21 = vector.load %arg23[%c24, %c0_19] : memref<48x32xf32, #tpu.memory_space<vmem>>, vector<16x32xf32>
    tpu.vector_store %arg23[%c24, %c0_19], %20 {strides = array<i32>} : memref<48x32xf32, #tpu.memory_space<vmem>>, vector<16x32xf32>,
    %cst_20 = arith.constant 0.000000e+00 : f32
    %22 = vector.broadcast %cst_20 : f32 to vector<8x32xf32>
    %c40 = arith.constant 40 : index
    %c0_21 = arith.constant 0 : index
    %23 = vector.load %arg23[%c40, %c0_21] : memref<48x32xf32, #tpu.memory_space<vmem>>, vector<8x32xf32>
    tpu.vector_store %arg23[%c40, %c0_21], %22 {strides = array<i32>} : memref<48x32xf32, #tpu.memory_space<vmem>>, vector<8x32xf32>,
    %c40_22 = arith.constant 40 : index
    %c0_23 = arith.constant 0 : index
    %24 = vector.load %arg23[%c40_22, %c0_23] : memref<48x32xf32, #tpu.memory_space<vmem>>, vector<1x32xf32>
    tpu.vector_store %arg23[%c40_22, %c0_23], %10 {strides = array<i32>} : memref<48x32xf32, #tpu.memory_space<vmem>>, vector<1x32xf32>,
    %c0_24 = arith.constant 0 : index
    %c0_25 = arith.constant 0 : index
    %25 = vector.load %arg23[%c0_24, %c0_25] : memref<48x32xf32, #tpu.memory_space<vmem>>, vector<48x32xf32>
    %26 = tpu.iota {dimensions = array<i32: 2>} : vector<1x1x24xi32>
    %c17_i32 = arith.constant 17 : i32
    %27 = vector.broadcast %c17_i32 : i32 to vector<1x1x24xi32>
    %28 = arith.cmpi slt, %26, %27 : vector<1x1x24xi32>
    %c0_26 = arith.constant 0 : index
    %c0_27 = arith.constant 0 : index
    %c0_28 = arith.constant 0 : index
    %29 = vector.load %arg6[%c0_26, %c0_27, %c0_28] : memref<2x1x32xf32, #tpu.memory_space<vmem>>, vector<1x1x32xf32>
    %30 = vector.shape_cast %29 : vector<1x1x32xf32> to vector<1x32xf32>
    %c0_29 = arith.constant 0 : index
    %c0_30 = arith.constant 0 : index
    %c0_31 = arith.constant 0 : index
    %31 = vector.load %arg7[%c0_29, %c0_30, %c0_31] : memref<2x1x32xf32, #tpu.memory_space<vmem>>, vector<1x1x32xf32>
    %32 = vector.shape_cast %31 : vector<1x1x32xf32> to vector<1x32xf32>
    %cst_32 = arith.constant dense<0.000000e+00> : vector<48xf32>
    %33 = vector.multi_reduction <add>, %25, %cst_32 [1] : vector<48x32xf32> to vector<48xf32>
    %34 = vector.shape_cast %33 : vector<48xf32> to vector<48x1xf32>
    %cst_33 = arith.constant 3.200000e+01 : f32
    %35 = vector.broadcast %cst_33 : f32 to vector<48x1xf32>
    %36 = arith.divf %34, %35 : vector<48x1xf32>
    %37 = vector.broadcast %36 : vector<48x1xf32> to vector<48x32xf32>
    %38 = arith.subf %25, %37 : vector<48x32xf32>
    %39 = arith.mulf %38, %38 : vector<48x32xf32>
    %cst_34 = arith.constant dense<0.000000e+00> : vector<48xf32>
    %40 = vector.multi_reduction <add>, %39, %cst_34 [1] : vector<48x32xf32> to vector<48xf32>
    %41 = vector.shape_cast %40 : vector<48xf32> to vector<48x1xf32>
    %cst_35 = arith.constant 3.200000e+01 : f32
    %42 = vector.broadcast %cst_35 : f32 to vector<48x1xf32>
    %43 = arith.divf %41, %42 : vector<48x1xf32>
    %44 = vector.broadcast %36 : vector<48x1xf32> to vector<48x32xf32>
    %45 = arith.subf %25, %44 : vector<48x32xf32>
    %cst_36 = arith.constant 9.99999974E-6 : f32
    %46 = vector.broadcast %cst_36 : f32 to vector<48x1xf32>
    %47 = arith.addf %43, %46 : vector<48x1xf32>
    %48 = math.rsqrt %47 : vector<48x1xf32>
    %49 = vector.broadcast %48 : vector<48x1xf32> to vector<48x32xf32>
    %50 = arith.mulf %45, %49 : vector<48x32xf32>
    %51 = vector.broadcast %30 : vector<1x32xf32> to vector<48x32xf32>
    %52 = arith.mulf %50, %51 : vector<48x32xf32>
    %53 = vector.broadcast %32 : vector<1x32xf32> to vector<48x32xf32>
    %54 = arith.addf %52, %53 : vector<48x32xf32>
    %c0_37 = arith.constant 0 : index
    %c0_38 = arith.constant 0 : index
    %c0_39 = arith.constant 0 : index
    %55 = vector.load %arg8[%c0_37, %c0_38, %c0_39] : memref<2x32x96xf32, #tpu.memory_space<vmem>>, vector<1x32x96xf32>
    %56 = vector.shape_cast %55 : vector<1x32x96xf32> to vector<32x96xf32>
    %57 = arith.truncf %54 : vector<48x32xf32> to vector<48x32xbf16>
    %58 = arith.truncf %56 : vector<32x96xf32> to vector<32x96xbf16>
    %cst_40 = arith.constant dense<0.000000e+00> : vector<48x96xf32>
    %59 = tpu.matmul %57, %58, %cst_40 {dimension_numbers = #tpu.dot_dimension_numbers<[1], [0], [0], [1], [0, 0, 1, 1], [], []>} : vector<48x32xbf16>, vector<32x96xbf16>, vector<48x96xf32> -> vector<48x96xf32>
    %c0_41 = arith.constant 0 : index
    %c0_42 = arith.constant 0 : index
    %c0_43 = arith.constant 0 : index
    %60 = vector.load %arg9[%c0_41, %c0_42, %c0_43] : memref<2x1x96xf32, #tpu.memory_space<vmem>>, vector<1x1x96xf32>
    %61 = vector.shape_cast %60 : vector<1x1x96xf32> to vector<1x96xf32>
    %62 = vector.broadcast %61 : vector<1x96xf32> to vector<48x96xf32>
    %63 = arith.addf %59, %62 : vector<48x96xf32>
    %64 = vector.shape_cast %63 : vector<48x96xf32> to vector<2x24x96xf32>
    %c0_44 = arith.constant 0 : index
    %c0_45 = arith.constant 0 : index
    %c0_46 = arith.constant 0 : index
    %65 = vector.load %arg10[%c0_44, %c0_45, %c0_46] : memref<2x32x32xf32, #tpu.memory_space<vmem>>, vector<1x32x32xf32>
    %66 = vector.shape_cast %65 : vector<1x32x32xf32> to vector<32x32xf32>
    %cst_47 = arith.constant 0.000000e+00 : f32
    %67 = vector.broadcast %cst_47 : f32 to vector<48x32xf32>
    %68 = vector.extract_strided_slice %64 {offsets = [0, 0, 0], sizes = [2, 24, 8], strides = [1, 1, 1]} : vector<2x24x96xf32> to vector<2x24x8xf32>
    %69 = vector.extract_strided_slice %64 {offsets = [0, 0, 32], sizes = [2, 24, 8], strides = [1, 1, 1]} : vector<2x24x96xf32> to vector<2x24x8xf32>
    %70 = vector.extract_strided_slice %64 {offsets = [0, 0, 64], sizes = [2, 24, 8], strides = [1, 1, 1]} : vector<2x24x96xf32> to vector<2x24x8xf32>
    %71 = arith.truncf %68 : vector<2x24x8xf32> to vector<2x24x8xbf16>
    %72 = arith.truncf %69 : vector<2x24x8xf32> to vector<2x24x8xbf16>
    %cst_48 = arith.constant dense<0.000000e+00> : vector<2x24x24xf32>
    %73 = tpu.matmul %71, %72, %cst_48 {dimension_numbers = #tpu.dot_dimension_numbers<[2], [2], [1], [1], [0, 0, 0, 1, 1, 1], [0], [0]>} : vector<2x24x8xbf16>, vector<2x24x8xbf16>, vector<2x24x24xf32> -> vector<2x24x24xf32>
    %cst_49 = arith.constant 0.353553385 : f32
    %74 = vector.broadcast %cst_49 : f32 to vector<2x24x24xf32>
    %75 = arith.mulf %73, %74 : vector<2x24x24xf32>
    %cst_50 = arith.constant -1.000000e+30 : f32
    %76 = vector.shape_cast %28 : vector<1x1x24xi1> to vector<1x1x24xi1>
    %77 = vector.broadcast %76 : vector<1x1x24xi1> to vector<2x24x24xi1>
    %78 = vector.broadcast %cst_50 : f32 to vector<2x24x24xf32>
    %79 = arith.select %77, %75, %78 : vector<2x24x24xi1>, vector<2x24x24xf32>
    %cst_51 = arith.constant dense<0xFF800000> : vector<2x24xf32>
    %80 = vector.multi_reduction <maximumf>, %79, %cst_51 [2] : vector<2x24x24xf32> to vector<2x24xf32>
    %81 = vector.shape_cast %80 : vector<2x24xf32> to vector<2x24x1xf32>
    %82 = vector.broadcast %81 : vector<2x24x1xf32> to vector<2x24x24xf32>
    %83 = arith.subf %79, %82 : vector<2x24x24xf32>
    %84 = math.exp %83 : vector<2x24x24xf32>
    %cst_52 = arith.constant dense<0.000000e+00> : vector<2x24xf32>
    %85 = vector.multi_reduction <add>, %84, %cst_52 [2] : vector<2x24x24xf32> to vector<2x24xf32>
    %86 = vector.shape_cast %85 : vector<2x24xf32> to vector<2x24x1xf32>
    %87 = vector.broadcast %86 : vector<2x24x1xf32> to vector<2x24x24xf32>
    %88 = arith.divf %84, %87 : vector<2x24x24xf32>
    %89 = arith.truncf %88 : vector<2x24x24xf32> to vector<2x24x24xbf16>
    %90 = arith.truncf %70 : vector<2x24x8xf32> to vector<2x24x8xbf16>
    %cst_53 = arith.constant dense<0.000000e+00> : vector<2x24x8xf32>
    %91 = tpu.matmul %89, %90, %cst_53 {dimension_numbers = #tpu.dot_dimension_numbers<[2], [1], [1], [2], [0, 0, 0, 1, 1, 2], [0], [0]>} : vector<2x24x24xbf16>, vector<2x24x8xbf16>, vector<2x24x8xf32> -> vector<2x24x8xf32>
    %92 = vector.shape_cast %91 : vector<2x24x8xf32> to vector<48x8xf32>
    %93 = vector.extract_strided_slice %66 {offsets = [0, 0], sizes = [8, 32], strides = [1, 1]} : vector<32x32xf32> to vector<8x32xf32>
    %94 = arith.truncf %92 : vector<48x8xf32> to vector<48x8xbf16>
    %95 = arith.truncf %93 : vector<8x32xf32> to vector<8x32xbf16>
    %cst_54 = arith.constant dense<0.000000e+00> : vector<48x32xf32>
    %96 = tpu.matmul %94, %95, %cst_54 {dimension_numbers = #tpu.dot_dimension_numbers<[1], [0], [0], [1], [0, 0, 1, 1], [], []>} : vector<48x8xbf16>, vector<8x32xbf16>, vector<48x32xf32> -> vector<48x32xf32>
    %97 = arith.addf %67, %96 : vector<48x32xf32>
    %98 = vector.extract_strided_slice %64 {offsets = [0, 0, 8], sizes = [2, 24, 8], strides = [1, 1, 1]} : vector<2x24x96xf32> to vector<2x24x8xf32>
    %99 = vector.extract_strided_slice %64 {offsets = [0, 0, 40], sizes = [2, 24, 8], strides = [1, 1, 1]} : vector<2x24x96xf32> to vector<2x24x8xf32>
    %100 = vector.extract_strided_slice %64 {offsets = [0, 0, 72], sizes = [2, 24, 8], strides = [1, 1, 1]} : vector<2x24x96xf32> to vector<2x24x8xf32>
    %101 = arith.truncf %98 : vector<2x24x8xf32> to vector<2x24x8xbf16>
    %102 = arith.truncf %99 : vector<2x24x8xf32> to vector<2x24x8xbf16>
    %cst_55 = arith.constant dense<0.000000e+00> : vector<2x24x24xf32>
    %103 = tpu.matmul %101, %102, %cst_55 {dimension_numbers = #tpu.dot_dimension_numbers<[2], [2], [1], [1], [0, 0, 0, 1, 1, 1], [0], [0]>} : vector<2x24x8xbf16>, vector<2x24x8xbf16>, vector<2x24x24xf32> -> vector<2x24x24xf32>
    %cst_56 = arith.constant 0.353553385 : f32
    %104 = vector.broadcast %cst_56 : f32 to vector<2x24x24xf32>
    %105 = arith.mulf %103, %104 : vector<2x24x24xf32>
    %cst_57 = arith.constant -1.000000e+30 : f32
    %106 = vector.shape_cast %28 : vector<1x1x24xi1> to vector<1x1x24xi1>
    %107 = vector.broadcast %106 : vector<1x1x24xi1> to vector<2x24x24xi1>
    %108 = vector.broadcast %cst_57 : f32 to vector<2x24x24xf32>
    %109 = arith.select %107, %105, %108 : vector<2x24x24xi1>, vector<2x24x24xf32>
    %cst_58 = arith.constant dense<0xFF800000> : vector<2x24xf32>
    %110 = vector.multi_reduction <maximumf>, %109, %cst_58 [2] : vector<2x24x24xf32> to vector<2x24xf32>
    %111 = vector.shape_cast %110 : vector<2x24xf32> to vector<2x24x1xf32>
    %112 = vector.broadcast %111 : vector<2x24x1xf32> to vector<2x24x24xf32>
    %113 = arith.subf %109, %112 : vector<2x24x24xf32>
    %114 = math.exp %113 : vector<2x24x24xf32>
    %cst_59 = arith.constant dense<0.000000e+00> : vector<2x24xf32>
    %115 = vector.multi_reduction <add>, %114, %cst_59 [2] : vector<2x24x24xf32> to vector<2x24xf32>
    %116 = vector.shape_cast %115 : vector<2x24xf32> to vector<2x24x1xf32>
    %117 = vector.broadcast %116 : vector<2x24x1xf32> to vector<2x24x24xf32>
    %118 = arith.divf %114, %117 : vector<2x24x24xf32>
    %119 = arith.truncf %118 : vector<2x24x24xf32> to vector<2x24x24xbf16>
    %120 = arith.truncf %100 : vector<2x24x8xf32> to vector<2x24x8xbf16>
    %cst_60 = arith.constant dense<0.000000e+00> : vector<2x24x8xf32>
    %121 = tpu.matmul %119, %120, %cst_60 {dimension_numbers = #tpu.dot_dimension_numbers<[2], [1], [1], [2], [0, 0, 0, 1, 1, 2], [0], [0]>} : vector<2x24x24xbf16>, vector<2x24x8xbf16>, vector<2x24x8xf32> -> vector<2x24x8xf32>
    %122 = vector.shape_cast %121 : vector<2x24x8xf32> to vector<48x8xf32>
    %123 = vector.extract_strided_slice %66 {offsets = [8, 0], sizes = [8, 32], strides = [1, 1]} : vector<32x32xf32> to vector<8x32xf32>
    %124 = arith.truncf %122 : vector<48x8xf32> to vector<48x8xbf16>
    %125 = arith.truncf %123 : vector<8x32xf32> to vector<8x32xbf16>
    %cst_61 = arith.constant dense<0.000000e+00> : vector<48x32xf32>
    %126 = tpu.matmul %124, %125, %cst_61 {dimension_numbers = #tpu.dot_dimension_numbers<[1], [0], [0], [1], [0, 0, 1, 1], [], []>} : vector<48x8xbf16>, vector<8x32xbf16>, vector<48x32xf32> -> vector<48x32xf32>
    %127 = arith.addf %97, %126 : vector<48x32xf32>
    %128 = vector.extract_strided_slice %64 {offsets = [0, 0, 16], sizes = [2, 24, 8], strides = [1, 1, 1]} : vector<2x24x96xf32> to vector<2x24x8xf32>
    %129 = vector.extract_strided_slice %64 {offsets = [0, 0, 48], sizes = [2, 24, 8], strides = [1, 1, 1]} : vector<2x24x96xf32> to vector<2x24x8xf32>
    %130 = vector.extract_strided_slice %64 {offsets = [0, 0, 80], sizes = [2, 24, 8], strides = [1, 1, 1]} : vector<2x24x96xf32> to vector<2x24x8xf32>
    %131 = arith.truncf %128 : vector<2x24x8xf32> to vector<2x24x8xbf16>
    %132 = arith.truncf %129 : vector<2x24x8xf32> to vector<2x24x8xbf16>
    %cst_62 = arith.constant dense<0.000000e+00> : vector<2x24x24xf32>
    %133 = tpu.matmul %131, %132, %cst_62 {dimension_numbers = #tpu.dot_dimension_numbers<[2], [2], [1], [1], [0, 0, 0, 1, 1, 1], [0], [0]>} : vector<2x24x8xbf16>, vector<2x24x8xbf16>, vector<2x24x24xf32> -> vector<2x24x24xf32>
    %cst_63 = arith.constant 0.353553385 : f32
    %134 = vector.broadcast %cst_63 : f32 to vector<2x24x24xf32>
    %135 = arith.mulf %133, %134 : vector<2x24x24xf32>
    %cst_64 = arith.constant -1.000000e+30 : f32
    %136 = vector.shape_cast %28 : vector<1x1x24xi1> to vector<1x1x24xi1>
    %137 = vector.broadcast %136 : vector<1x1x24xi1> to vector<2x24x24xi1>
    %138 = vector.broadcast %cst_64 : f32 to vector<2x24x24xf32>
    %139 = arith.select %137, %135, %138 : vector<2x24x24xi1>, vector<2x24x24xf32>
    %cst_65 = arith.constant dense<0xFF800000> : vector<2x24xf32>
    %140 = vector.multi_reduction <maximumf>, %139, %cst_65 [2] : vector<2x24x24xf32> to vector<2x24xf32>
    %141 = vector.shape_cast %140 : vector<2x24xf32> to vector<2x24x1xf32>
    %142 = vector.broadcast %141 : vector<2x24x1xf32> to vector<2x24x24xf32>
    %143 = arith.subf %139, %142 : vector<2x24x24xf32>
    %144 = math.exp %143 : vector<2x24x24xf32>
    %cst_66 = arith.constant dense<0.000000e+00> : vector<2x24xf32>
    %145 = vector.multi_reduction <add>, %144, %cst_66 [2] : vector<2x24x24xf32> to vector<2x24xf32>
    %146 = vector.shape_cast %145 : vector<2x24xf32> to vector<2x24x1xf32>
    %147 = vector.broadcast %146 : vector<2x24x1xf32> to vector<2x24x24xf32>
    %148 = arith.divf %144, %147 : vector<2x24x24xf32>
    %149 = arith.truncf %148 : vector<2x24x24xf32> to vector<2x24x24xbf16>
    %150 = arith.truncf %130 : vector<2x24x8xf32> to vector<2x24x8xbf16>
    %cst_67 = arith.constant dense<0.000000e+00> : vector<2x24x8xf32>
    %151 = tpu.matmul %149, %150, %cst_67 {dimension_numbers = #tpu.dot_dimension_numbers<[2], [1], [1], [2], [0, 0, 0, 1, 1, 2], [0], [0]>} : vector<2x24x24xbf16>, vector<2x24x8xbf16>, vector<2x24x8xf32> -> vector<2x24x8xf32>
    %152 = vector.shape_cast %151 : vector<2x24x8xf32> to vector<48x8xf32>
    %153 = vector.extract_strided_slice %66 {offsets = [16, 0], sizes = [8, 32], strides = [1, 1]} : vector<32x32xf32> to vector<8x32xf32>
    %154 = arith.truncf %152 : vector<48x8xf32> to vector<48x8xbf16>
    %155 = arith.truncf %153 : vector<8x32xf32> to vector<8x32xbf16>
    %cst_68 = arith.constant dense<0.000000e+00> : vector<48x32xf32>
    %156 = tpu.matmul %154, %155, %cst_68 {dimension_numbers = #tpu.dot_dimension_numbers<[1], [0], [0], [1], [0, 0, 1, 1], [], []>} : vector<48x8xbf16>, vector<8x32xbf16>, vector<48x32xf32> -> vector<48x32xf32>
    %157 = arith.addf %127, %156 : vector<48x32xf32>
    %158 = vector.extract_strided_slice %64 {offsets = [0, 0, 24], sizes = [2, 24, 8], strides = [1, 1, 1]} : vector<2x24x96xf32> to vector<2x24x8xf32>
    %159 = vector.extract_strided_slice %64 {offsets = [0, 0, 56], sizes = [2, 24, 8], strides = [1, 1, 1]} : vector<2x24x96xf32> to vector<2x24x8xf32>
    %160 = vector.extract_strided_slice %64 {offsets = [0, 0, 88], sizes = [2, 24, 8], strides = [1, 1, 1]} : vector<2x24x96xf32> to vector<2x24x8xf32>
    %161 = arith.truncf %158 : vector<2x24x8xf32> to vector<2x24x8xbf16>
    %162 = arith.truncf %159 : vector<2x24x8xf32> to vector<2x24x8xbf16>
    %cst_69 = arith.constant dense<0.000000e+00> : vector<2x24x24xf32>
    %163 = tpu.matmul %161, %162, %cst_69 {dimension_numbers = #tpu.dot_dimension_numbers<[2], [2], [1], [1], [0, 0, 0, 1, 1, 1], [0], [0]>} : vector<2x24x8xbf16>, vector<2x24x8xbf16>, vector<2x24x24xf32> -> vector<2x24x24xf32>
    %cst_70 = arith.constant 0.353553385 : f32
    %164 = vector.broadcast %cst_70 : f32 to vector<2x24x24xf32>
    %165 = arith.mulf %163, %164 : vector<2x24x24xf32>
    %cst_71 = arith.constant -1.000000e+30 : f32
    %166 = vector.shape_cast %28 : vector<1x1x24xi1> to vector<1x1x24xi1>
    %167 = vector.broadcast %166 : vector<1x1x24xi1> to vector<2x24x24xi1>
    %168 = vector.broadcast %cst_71 : f32 to vector<2x24x24xf32>
    %169 = arith.select %167, %165, %168 : vector<2x24x24xi1>, vector<2x24x24xf32>
    %cst_72 = arith.constant dense<0xFF800000> : vector<2x24xf32>
    %170 = vector.multi_reduction <maximumf>, %169, %cst_72 [2] : vector<2x24x24xf32> to vector<2x24xf32>
    %171 = vector.shape_cast %170 : vector<2x24xf32> to vector<2x24x1xf32>
    %172 = vector.broadcast %171 : vector<2x24x1xf32> to vector<2x24x24xf32>
    %173 = arith.subf %169, %172 : vector<2x24x24xf32>
    %174 = math.exp %173 : vector<2x24x24xf32>
    %cst_73 = arith.constant dense<0.000000e+00> : vector<2x24xf32>
    %175 = vector.multi_reduction <add>, %174, %cst_73 [2] : vector<2x24x24xf32> to vector<2x24xf32>
    %176 = vector.shape_cast %175 : vector<2x24xf32> to vector<2x24x1xf32>
    %177 = vector.broadcast %176 : vector<2x24x1xf32> to vector<2x24x24xf32>
    %178 = arith.divf %174, %177 : vector<2x24x24xf32>
    %179 = arith.truncf %178 : vector<2x24x24xf32> to vector<2x24x24xbf16>
    %180 = arith.truncf %160 : vector<2x24x8xf32> to vector<2x24x8xbf16>
    %cst_74 = arith.constant dense<0.000000e+00> : vector<2x24x8xf32>
    %181 = tpu.matmul %179, %180, %cst_74 {dimension_numbers = #tpu.dot_dimension_numbers<[2], [1], [1], [2], [0, 0, 0, 1, 1, 2], [0], [0]>} : vector<2x24x24xbf16>, vector<2x24x8xbf16>, vector<2x24x8xf32> -> vector<2x24x8xf32>
    %182 = vector.shape_cast %181 : vector<2x24x8xf32> to vector<48x8xf32>
    %183 = vector.extract_strided_slice %66 {offsets = [24, 0], sizes = [8, 32], strides = [1, 1]} : vector<32x32xf32> to vector<8x32xf32>
    %184 = arith.truncf %182 : vector<48x8xf32> to vector<48x8xbf16>
    %185 = arith.truncf %183 : vector<8x32xf32> to vector<8x32xbf16>
    %cst_75 = arith.constant dense<0.000000e+00> : vector<48x32xf32>
    %186 = tpu.matmul %184, %185, %cst_75 {dimension_numbers = #tpu.dot_dimension_numbers<[1], [0], [0], [1], [0, 0, 1, 1], [], []>} : vector<48x8xbf16>, vector<8x32xbf16>, vector<48x32xf32> -> vector<48x32xf32>
    %187 = arith.addf %157, %186 : vector<48x32xf32>
    %188 = arith.addf %25, %187 : vector<48x32xf32>
    %c0_76 = arith.constant 0 : index
    %c0_77 = arith.constant 0 : index
    %c0_78 = arith.constant 0 : index
    %189 = vector.load %arg11[%c0_76, %c0_77, %c0_78] : memref<2x1x32xf32, #tpu.memory_space<vmem>>, vector<1x1x32xf32>
    %190 = vector.shape_cast %189 : vector<1x1x32xf32> to vector<1x32xf32>
    %191 = vector.broadcast %190 : vector<1x32xf32> to vector<48x32xf32>
    %192 = arith.addf %188, %191 : vector<48x32xf32>
    %c0_79 = arith.constant 0 : index
    %c0_80 = arith.constant 0 : index
    %c0_81 = arith.constant 0 : index
    %193 = vector.load %arg12[%c0_79, %c0_80, %c0_81] : memref<2x1x32xf32, #tpu.memory_space<vmem>>, vector<1x1x32xf32>
    %194 = vector.shape_cast %193 : vector<1x1x32xf32> to vector<1x32xf32>
    %c0_82 = arith.constant 0 : index
    %c0_83 = arith.constant 0 : index
    %c0_84 = arith.constant 0 : index
    %195 = vector.load %arg13[%c0_82, %c0_83, %c0_84] : memref<2x1x32xf32, #tpu.memory_space<vmem>>, vector<1x1x32xf32>
    %196 = vector.shape_cast %195 : vector<1x1x32xf32> to vector<1x32xf32>
    %cst_85 = arith.constant dense<0.000000e+00> : vector<48xf32>
    %197 = vector.multi_reduction <add>, %192, %cst_85 [1] : vector<48x32xf32> to vector<48xf32>
    %198 = vector.shape_cast %197 : vector<48xf32> to vector<48x1xf32>
    %cst_86 = arith.constant 3.200000e+01 : f32
    %199 = vector.broadcast %cst_86 : f32 to vector<48x1xf32>
    %200 = arith.divf %198, %199 : vector<48x1xf32>
    %201 = vector.broadcast %200 : vector<48x1xf32> to vector<48x32xf32>
    %202 = arith.subf %192, %201 : vector<48x32xf32>
    %203 = arith.mulf %202, %202 : vector<48x32xf32>
    %cst_87 = arith.constant dense<0.000000e+00> : vector<48xf32>
    %204 = vector.multi_reduction <add>, %203, %cst_87 [1] : vector<48x32xf32> to vector<48xf32>
    %205 = vector.shape_cast %204 : vector<48xf32> to vector<48x1xf32>
    %cst_88 = arith.constant 3.200000e+01 : f32
    %206 = vector.broadcast %cst_88 : f32 to vector<48x1xf32>
    %207 = arith.divf %205, %206 : vector<48x1xf32>
    %208 = vector.broadcast %200 : vector<48x1xf32> to vector<48x32xf32>
    %209 = arith.subf %192, %208 : vector<48x32xf32>
    %cst_89 = arith.constant 9.99999974E-6 : f32
    %210 = vector.broadcast %cst_89 : f32 to vector<48x1xf32>
    %211 = arith.addf %207, %210 : vector<48x1xf32>
    %212 = math.rsqrt %211 : vector<48x1xf32>
    %213 = vector.broadcast %212 : vector<48x1xf32> to vector<48x32xf32>
    %214 = arith.mulf %209, %213 : vector<48x32xf32>
    %215 = vector.broadcast %194 : vector<1x32xf32> to vector<48x32xf32>
    %216 = arith.mulf %214, %215 : vector<48x32xf32>
    %217 = vector.broadcast %196 : vector<1x32xf32> to vector<48x32xf32>
    %218 = arith.addf %216, %217 : vector<48x32xf32>
    %c0_90 = arith.constant 0 : index
    %c0_91 = arith.constant 0 : index
    %c0_92 = arith.constant 0 : index
    %219 = vector.load %arg14[%c0_90, %c0_91, %c0_92] : memref<2x32x64xf32, #tpu.memory_space<vmem>>, vector<1x32x64xf32>
    %220 = vector.shape_cast %219 : vector<1x32x64xf32> to vector<32x64xf32>
    %221 = arith.truncf %218 : vector<48x32xf32> to vector<48x32xbf16>
    %222 = arith.truncf %220 : vector<32x64xf32> to vector<32x64xbf16>
    %cst_93 = arith.constant dense<0.000000e+00> : vector<48x64xf32>
    %223 = tpu.matmul %221, %222, %cst_93 {dimension_numbers = #tpu.dot_dimension_numbers<[1], [0], [0], [1], [0, 0, 1, 1], [], []>} : vector<48x32xbf16>, vector<32x64xbf16>, vector<48x64xf32> -> vector<48x64xf32>
    %c0_94 = arith.constant 0 : index
    %c0_95 = arith.constant 0 : index
    %c0_96 = arith.constant 0 : index
    %224 = vector.load %arg15[%c0_94, %c0_95, %c0_96] : memref<2x1x64xf32, #tpu.memory_space<vmem>>, vector<1x1x64xf32>
    %225 = vector.shape_cast %224 : vector<1x1x64xf32> to vector<1x64xf32>
    %226 = vector.broadcast %225 : vector<1x64xf32> to vector<48x64xf32>
    %227 = arith.addf %223, %226 : vector<48x64xf32>
    %cst_97 = arith.constant 5.000000e-01 : f32
    %228 = vector.broadcast %cst_97 : f32 to vector<48x64xf32>
    %229 = arith.mulf %228, %227 : vector<48x64xf32>
    %cst_98 = arith.constant 0.707106769 : f32
    %230 = vector.broadcast %cst_98 : f32 to vector<48x64xf32>
    %231 = arith.mulf %227, %230 : vector<48x64xf32>
    %232 = math.erf %231 : vector<48x64xf32>
    %cst_99 = arith.constant 1.000000e+00 : f32
    %233 = vector.broadcast %cst_99 : f32 to vector<48x64xf32>
    %234 = arith.addf %233, %232 : vector<48x64xf32>
    %235 = arith.mulf %229, %234 : vector<48x64xf32>
    %c0_100 = arith.constant 0 : index
    %c0_101 = arith.constant 0 : index
    %c0_102 = arith.constant 0 : index
    %236 = vector.load %arg16[%c0_100, %c0_101, %c0_102] : memref<2x64x32xf32, #tpu.memory_space<vmem>>, vector<1x64x32xf32>
    %237 = vector.shape_cast %236 : vector<1x64x32xf32> to vector<64x32xf32>
    %238 = arith.truncf %235 : vector<48x64xf32> to vector<48x64xbf16>
    %239 = arith.truncf %237 : vector<64x32xf32> to vector<64x32xbf16>
    %cst_103 = arith.constant dense<0.000000e+00> : vector<48x32xf32>
    %240 = tpu.matmul %238, %239, %cst_103 {dimension_numbers = #tpu.dot_dimension_numbers<[1], [0], [0], [1], [0, 0, 1, 1], [], []>} : vector<48x64xbf16>, vector<64x32xbf16>, vector<48x32xf32> -> vector<48x32xf32>
    %241 = arith.addf %192, %240 : vector<48x32xf32>
    %c0_104 = arith.constant 0 : index
    %c0_105 = arith.constant 0 : index
    %c0_106 = arith.constant 0 : index
    %242 = vector.load %arg17[%c0_104, %c0_105, %c0_106] : memref<2x1x32xf32, #tpu.memory_space<vmem>>, vector<1x1x32xf32>
    %243 = vector.shape_cast %242 : vector<1x1x32xf32> to vector<1x32xf32>
    %244 = vector.broadcast %243 : vector<1x32xf32> to vector<48x32xf32>
    %245 = arith.addf %241, %244 : vector<48x32xf32>
    %c1 = arith.constant 1 : index
    %c0_107 = arith.constant 0 : index
    %c0_108 = arith.constant 0 : index
    %246 = vector.load %arg6[%c1, %c0_107, %c0_108] : memref<2x1x32xf32, #tpu.memory_space<vmem>>, vector<1x1x32xf32>
    %247 = vector.shape_cast %246 : vector<1x1x32xf32> to vector<1x32xf32>
    %c1_109 = arith.constant 1 : index
    %c0_110 = arith.constant 0 : index
    %c0_111 = arith.constant 0 : index
    %248 = vector.load %arg7[%c1_109, %c0_110, %c0_111] : memref<2x1x32xf32, #tpu.memory_space<vmem>>, vector<1x1x32xf32>
    %249 = vector.shape_cast %248 : vector<1x1x32xf32> to vector<1x32xf32>
    %cst_112 = arith.constant dense<0.000000e+00> : vector<48xf32>
    %250 = vector.multi_reduction <add>, %245, %cst_112 [1] : vector<48x32xf32> to vector<48xf32>
    %251 = vector.shape_cast %250 : vector<48xf32> to vector<48x1xf32>
    %cst_113 = arith.constant 3.200000e+01 : f32
    %252 = vector.broadcast %cst_113 : f32 to vector<48x1xf32>
    %253 = arith.divf %251, %252 : vector<48x1xf32>
    %254 = vector.broadcast %253 : vector<48x1xf32> to vector<48x32xf32>
    %255 = arith.subf %245, %254 : vector<48x32xf32>
    %256 = arith.mulf %255, %255 : vector<48x32xf32>
    %cst_114 = arith.constant dense<0.000000e+00> : vector<48xf32>
    %257 = vector.multi_reduction <add>, %256, %cst_114 [1] : vector<48x32xf32> to vector<48xf32>
    %258 = vector.shape_cast %257 : vector<48xf32> to vector<48x1xf32>
    %cst_115 = arith.constant 3.200000e+01 : f32
    %259 = vector.broadcast %cst_115 : f32 to vector<48x1xf32>
    %260 = arith.divf %258, %259 : vector<48x1xf32>
    %261 = vector.broadcast %253 : vector<48x1xf32> to vector<48x32xf32>
    %262 = arith.subf %245, %261 : vector<48x32xf32>
    %cst_116 = arith.constant 9.99999974E-6 : f32
    %263 = vector.broadcast %cst_116 : f32 to vector<48x1xf32>
    %264 = arith.addf %260, %263 : vector<48x1xf32>
    %265 = math.rsqrt %264 : vector<48x1xf32>
    %266 = vector.broadcast %265 : vector<48x1xf32> to vector<48x32xf32>
    %267 = arith.mulf %262, %266 : vector<48x32xf32>
    %268 = vector.broadcast %247 : vector<1x32xf32> to vector<48x32xf32>
    %269 = arith.mulf %267, %268 : vector<48x32xf32>
    %270 = vector.broadcast %249 : vector<1x32xf32> to vector<48x32xf32>
    %271 = arith.addf %269, %270 : vector<48x32xf32>
    %c1_117 = arith.constant 1 : index
    %c0_118 = arith.constant 0 : index
    %c0_119 = arith.constant 0 : index
    %272 = vector.load %arg8[%c1_117, %c0_118, %c0_119] : memref<2x32x96xf32, #tpu.memory_space<vmem>>, vector<1x32x96xf32>
    %273 = vector.shape_cast %272 : vector<1x32x96xf32> to vector<32x96xf32>
    %274 = arith.truncf %271 : vector<48x32xf32> to vector<48x32xbf16>
    %275 = arith.truncf %273 : vector<32x96xf32> to vector<32x96xbf16>
    %cst_120 = arith.constant dense<0.000000e+00> : vector<48x96xf32>
    %276 = tpu.matmul %274, %275, %cst_120 {dimension_numbers = #tpu.dot_dimension_numbers<[1], [0], [0], [1], [0, 0, 1, 1], [], []>} : vector<48x32xbf16>, vector<32x96xbf16>, vector<48x96xf32> -> vector<48x96xf32>
    %c1_121 = arith.constant 1 : index
    %c0_122 = arith.constant 0 : index
    %c0_123 = arith.constant 0 : index
    %277 = vector.load %arg9[%c1_121, %c0_122, %c0_123] : memref<2x1x96xf32, #tpu.memory_space<vmem>>, vector<1x1x96xf32>
    %278 = vector.shape_cast %277 : vector<1x1x96xf32> to vector<1x96xf32>
    %279 = vector.broadcast %278 : vector<1x96xf32> to vector<48x96xf32>
    %280 = arith.addf %276, %279 : vector<48x96xf32>
    %281 = vector.shape_cast %280 : vector<48x96xf32> to vector<2x24x96xf32>
    %c1_124 = arith.constant 1 : index
    %c0_125 = arith.constant 0 : index
    %c0_126 = arith.constant 0 : index
    %282 = vector.load %arg10[%c1_124, %c0_125, %c0_126] : memref<2x32x32xf32, #tpu.memory_space<vmem>>, vector<1x32x32xf32>
    %283 = vector.shape_cast %282 : vector<1x32x32xf32> to vector<32x32xf32>
    %cst_127 = arith.constant 0.000000e+00 : f32
    %284 = vector.broadcast %cst_127 : f32 to vector<48x32xf32>
    %285 = vector.extract_strided_slice %281 {offsets = [0, 0, 0], sizes = [2, 24, 8], strides = [1, 1, 1]} : vector<2x24x96xf32> to vector<2x24x8xf32>
    %286 = vector.extract_strided_slice %281 {offsets = [0, 0, 32], sizes = [2, 24, 8], strides = [1, 1, 1]} : vector<2x24x96xf32> to vector<2x24x8xf32>
    %287 = vector.extract_strided_slice %281 {offsets = [0, 0, 64], sizes = [2, 24, 8], strides = [1, 1, 1]} : vector<2x24x96xf32> to vector<2x24x8xf32>
    %288 = arith.truncf %285 : vector<2x24x8xf32> to vector<2x24x8xbf16>
    %289 = arith.truncf %286 : vector<2x24x8xf32> to vector<2x24x8xbf16>
    %cst_128 = arith.constant dense<0.000000e+00> : vector<2x24x24xf32>
    %290 = tpu.matmul %288, %289, %cst_128 {dimension_numbers = #tpu.dot_dimension_numbers<[2], [2], [1], [1], [0, 0, 0, 1, 1, 1], [0], [0]>} : vector<2x24x8xbf16>, vector<2x24x8xbf16>, vector<2x24x24xf32> -> vector<2x24x24xf32>
    %cst_129 = arith.constant 0.353553385 : f32
    %291 = vector.broadcast %cst_129 : f32 to vector<2x24x24xf32>
    %292 = arith.mulf %290, %291 : vector<2x24x24xf32>
    %cst_130 = arith.constant -1.000000e+30 : f32
    %293 = vector.shape_cast %28 : vector<1x1x24xi1> to vector<1x1x24xi1>
    %294 = vector.broadcast %293 : vector<1x1x24xi1> to vector<2x24x24xi1>
    %295 = vector.broadcast %cst_130 : f32 to vector<2x24x24xf32>
    %296 = arith.select %294, %292, %295 : vector<2x24x24xi1>, vector<2x24x24xf32>
    %cst_131 = arith.constant dense<0xFF800000> : vector<2x24xf32>
    %297 = vector.multi_reduction <maximumf>, %296, %cst_131 [2] : vector<2x24x24xf32> to vector<2x24xf32>
    %298 = vector.shape_cast %297 : vector<2x24xf32> to vector<2x24x1xf32>
    %299 = vector.broadcast %298 : vector<2x24x1xf32> to vector<2x24x24xf32>
    %300 = arith.subf %296, %299 : vector<2x24x24xf32>
    %301 = math.exp %300 : vector<2x24x24xf32>
    %cst_132 = arith.constant dense<0.000000e+00> : vector<2x24xf32>
    %302 = vector.multi_reduction <add>, %301, %cst_132 [2] : vector<2x24x24xf32> to vector<2x24xf32>
    %303 = vector.shape_cast %302 : vector<2x24xf32> to vector<2x24x1xf32>
    %304 = vector.broadcast %303 : vector<2x24x1xf32> to vector<2x24x24xf32>
    %305 = arith.divf %301, %304 : vector<2x24x24xf32>
    %306 = arith.truncf %305 : vector<2x24x24xf32> to vector<2x24x24xbf16>
    %307 = arith.truncf %287 : vector<2x24x8xf32> to vector<2x24x8xbf16>
    %cst_133 = arith.constant dense<0.000000e+00> : vector<2x24x8xf32>
    %308 = tpu.matmul %306, %307, %cst_133 {dimension_numbers = #tpu.dot_dimension_numbers<[2], [1], [1], [2], [0, 0, 0, 1, 1, 2], [0], [0]>} : vector<2x24x24xbf16>, vector<2x24x8xbf16>, vector<2x24x8xf32> -> vector<2x24x8xf32>
    %309 = vector.shape_cast %308 : vector<2x24x8xf32> to vector<48x8xf32>
    %310 = vector.extract_strided_slice %283 {offsets = [0, 0], sizes = [8, 32], strides = [1, 1]} : vector<32x32xf32> to vector<8x32xf32>
    %311 = arith.truncf %309 : vector<48x8xf32> to vector<48x8xbf16>
    %312 = arith.truncf %310 : vector<8x32xf32> to vector<8x32xbf16>
    %cst_134 = arith.constant dense<0.000000e+00> : vector<48x32xf32>
    %313 = tpu.matmul %311, %312, %cst_134 {dimension_numbers = #tpu.dot_dimension_numbers<[1], [0], [0], [1], [0, 0, 1, 1], [], []>} : vector<48x8xbf16>, vector<8x32xbf16>, vector<48x32xf32> -> vector<48x32xf32>
    %314 = arith.addf %284, %313 : vector<48x32xf32>
    %315 = vector.extract_strided_slice %281 {offsets = [0, 0, 8], sizes = [2, 24, 8], strides = [1, 1, 1]} : vector<2x24x96xf32> to vector<2x24x8xf32>
    %316 = vector.extract_strided_slice %281 {offsets = [0, 0, 40], sizes = [2, 24, 8], strides = [1, 1, 1]} : vector<2x24x96xf32> to vector<2x24x8xf32>
    %317 = vector.extract_strided_slice %281 {offsets = [0, 0, 72], sizes = [2, 24, 8], strides = [1, 1, 1]} : vector<2x24x96xf32> to vector<2x24x8xf32>
    %318 = arith.truncf %315 : vector<2x24x8xf32> to vector<2x24x8xbf16>
    %319 = arith.truncf %316 : vector<2x24x8xf32> to vector<2x24x8xbf16>
    %cst_135 = arith.constant dense<0.000000e+00> : vector<2x24x24xf32>
    %320 = tpu.matmul %318, %319, %cst_135 {dimension_numbers = #tpu.dot_dimension_numbers<[2], [2], [1], [1], [0, 0, 0, 1, 1, 1], [0], [0]>} : vector<2x24x8xbf16>, vector<2x24x8xbf16>, vector<2x24x24xf32> -> vector<2x24x24xf32>
    %cst_136 = arith.constant 0.353553385 : f32
    %321 = vector.broadcast %cst_136 : f32 to vector<2x24x24xf32>
    %322 = arith.mulf %320, %321 : vector<2x24x24xf32>
    %cst_137 = arith.constant -1.000000e+30 : f32
    %323 = vector.shape_cast %28 : vector<1x1x24xi1> to vector<1x1x24xi1>
    %324 = vector.broadcast %323 : vector<1x1x24xi1> to vector<2x24x24xi1>
    %325 = vector.broadcast %cst_137 : f32 to vector<2x24x24xf32>
    %326 = arith.select %324, %322, %325 : vector<2x24x24xi1>, vector<2x24x24xf32>
    %cst_138 = arith.constant dense<0xFF800000> : vector<2x24xf32>
    %327 = vector.multi_reduction <maximumf>, %326, %cst_138 [2] : vector<2x24x24xf32> to vector<2x24xf32>
    %328 = vector.shape_cast %327 : vector<2x24xf32> to vector<2x24x1xf32>
    %329 = vector.broadcast %328 : vector<2x24x1xf32> to vector<2x24x24xf32>
    %330 = arith.subf %326, %329 : vector<2x24x24xf32>
    %331 = math.exp %330 : vector<2x24x24xf32>
    %cst_139 = arith.constant dense<0.000000e+00> : vector<2x24xf32>
    %332 = vector.multi_reduction <add>, %331, %cst_139 [2] : vector<2x24x24xf32> to vector<2x24xf32>
    %333 = vector.shape_cast %332 : vector<2x24xf32> to vector<2x24x1xf32>
    %334 = vector.broadcast %333 : vector<2x24x1xf32> to vector<2x24x24xf32>
    %335 = arith.divf %331, %334 : vector<2x24x24xf32>
    %336 = arith.truncf %335 : vector<2x24x24xf32> to vector<2x24x24xbf16>
    %337 = arith.truncf %317 : vector<2x24x8xf32> to vector<2x24x8xbf16>
    %cst_140 = arith.constant dense<0.000000e+00> : vector<2x24x8xf32>
    %338 = tpu.matmul %336, %337, %cst_140 {dimension_numbers = #tpu.dot_dimension_numbers<[2], [1], [1], [2], [0, 0, 0, 1, 1, 2], [0], [0]>} : vector<2x24x24xbf16>, vector<2x24x8xbf16>, vector<2x24x8xf32> -> vector<2x24x8xf32>
    %339 = vector.shape_cast %338 : vector<2x24x8xf32> to vector<48x8xf32>
    %340 = vector.extract_strided_slice %283 {offsets = [8, 0], sizes = [8, 32], strides = [1, 1]} : vector<32x32xf32> to vector<8x32xf32>
    %341 = arith.truncf %339 : vector<48x8xf32> to vector<48x8xbf16>
    %342 = arith.truncf %340 : vector<8x32xf32> to vector<8x32xbf16>
    %cst_141 = arith.constant dense<0.000000e+00> : vector<48x32xf32>
    %343 = tpu.matmul %341, %342, %cst_141 {dimension_numbers = #tpu.dot_dimension_numbers<[1], [0], [0], [1], [0, 0, 1, 1], [], []>} : vector<48x8xbf16>, vector<8x32xbf16>, vector<48x32xf32> -> vector<48x32xf32>
    %344 = arith.addf %314, %343 : vector<48x32xf32>
    %345 = vector.extract_strided_slice %281 {offsets = [0, 0, 16], sizes = [2, 24, 8], strides = [1, 1, 1]} : vector<2x24x96xf32> to vector<2x24x8xf32>
    %346 = vector.extract_strided_slice %281 {offsets = [0, 0, 48], sizes = [2, 24, 8], strides = [1, 1, 1]} : vector<2x24x96xf32> to vector<2x24x8xf32>
    %347 = vector.extract_strided_slice %281 {offsets = [0, 0, 80], sizes = [2, 24, 8], strides = [1, 1, 1]} : vector<2x24x96xf32> to vector<2x24x8xf32>
    %348 = arith.truncf %345 : vector<2x24x8xf32> to vector<2x24x8xbf16>
    %349 = arith.truncf %346 : vector<2x24x8xf32> to vector<2x24x8xbf16>
    %cst_142 = arith.constant dense<0.000000e+00> : vector<2x24x24xf32>
    %350 = tpu.matmul %348, %349, %cst_142 {dimension_numbers = #tpu.dot_dimension_numbers<[2], [2], [1], [1], [0, 0, 0, 1, 1, 1], [0], [0]>} : vector<2x24x8xbf16>, vector<2x24x8xbf16>, vector<2x24x24xf32> -> vector<2x24x24xf32>
    %cst_143 = arith.constant 0.353553385 : f32
    %351 = vector.broadcast %cst_143 : f32 to vector<2x24x24xf32>
    %352 = arith.mulf %350, %351 : vector<2x24x24xf32>
    %cst_144 = arith.constant -1.000000e+30 : f32
    %353 = vector.shape_cast %28 : vector<1x1x24xi1> to vector<1x1x24xi1>
    %354 = vector.broadcast %353 : vector<1x1x24xi1> to vector<2x24x24xi1>
    %355 = vector.broadcast %cst_144 : f32 to vector<2x24x24xf32>
    %356 = arith.select %354, %352, %355 : vector<2x24x24xi1>, vector<2x24x24xf32>
    %cst_145 = arith.constant dense<0xFF800000> : vector<2x24xf32>
    %357 = vector.multi_reduction <maximumf>, %356, %cst_145 [2] : vector<2x24x24xf32> to vector<2x24xf32>
    %358 = vector.shape_cast %357 : vector<2x24xf32> to vector<2x24x1xf32>
    %359 = vector.broadcast %358 : vector<2x24x1xf32> to vector<2x24x24xf32>
    %360 = arith.subf %356, %359 : vector<2x24x24xf32>
    %361 = math.exp %360 : vector<2x24x24xf32>
    %cst_146 = arith.constant dense<0.000000e+00> : vector<2x24xf32>
    %362 = vector.multi_reduction <add>, %361, %cst_146 [2] : vector<2x24x24xf32> to vector<2x24xf32>
    %363 = vector.shape_cast %362 : vector<2x24xf32> to vector<2x24x1xf32>
    %364 = vector.broadcast %363 : vector<2x24x1xf32> to vector<2x24x24xf32>
    %365 = arith.divf %361, %364 : vector<2x24x24xf32>
    %366 = arith.truncf %365 : vector<2x24x24xf32> to vector<2x24x24xbf16>
    %367 = arith.truncf %347 : vector<2x24x8xf32> to vector<2x24x8xbf16>
    %cst_147 = arith.constant dense<0.000000e+00> : vector<2x24x8xf32>
    %368 = tpu.matmul %366, %367, %cst_147 {dimension_numbers = #tpu.dot_dimension_numbers<[2], [1], [1], [2], [0, 0, 0, 1, 1, 2], [0], [0]>} : vector<2x24x24xbf16>, vector<2x24x8xbf16>, vector<2x24x8xf32> -> vector<2x24x8xf32>
    %369 = vector.shape_cast %368 : vector<2x24x8xf32> to vector<48x8xf32>
    %370 = vector.extract_strided_slice %283 {offsets = [16, 0], sizes = [8, 32], strides = [1, 1]} : vector<32x32xf32> to vector<8x32xf32>
    %371 = arith.truncf %369 : vector<48x8xf32> to vector<48x8xbf16>
    %372 = arith.truncf %370 : vector<8x32xf32> to vector<8x32xbf16>
    %cst_148 = arith.constant dense<0.000000e+00> : vector<48x32xf32>
    %373 = tpu.matmul %371, %372, %cst_148 {dimension_numbers = #tpu.dot_dimension_numbers<[1], [0], [0], [1], [0, 0, 1, 1], [], []>} : vector<48x8xbf16>, vector<8x32xbf16>, vector<48x32xf32> -> vector<48x32xf32>
    %374 = arith.addf %344, %373 : vector<48x32xf32>
    %375 = vector.extract_strided_slice %281 {offsets = [0, 0, 24], sizes = [2, 24, 8], strides = [1, 1, 1]} : vector<2x24x96xf32> to vector<2x24x8xf32>
    %376 = vector.extract_strided_slice %281 {offsets = [0, 0, 56], sizes = [2, 24, 8], strides = [1, 1, 1]} : vector<2x24x96xf32> to vector<2x24x8xf32>
    %377 = vector.extract_strided_slice %281 {offsets = [0, 0, 88], sizes = [2, 24, 8], strides = [1, 1, 1]} : vector<2x24x96xf32> to vector<2x24x8xf32>
    %378 = arith.truncf %375 : vector<2x24x8xf32> to vector<2x24x8xbf16>
    %379 = arith.truncf %376 : vector<2x24x8xf32> to vector<2x24x8xbf16>
    %cst_149 = arith.constant dense<0.000000e+00> : vector<2x24x24xf32>
    %380 = tpu.matmul %378, %379, %cst_149 {dimension_numbers = #tpu.dot_dimension_numbers<[2], [2], [1], [1], [0, 0, 0, 1, 1, 1], [0], [0]>} : vector<2x24x8xbf16>, vector<2x24x8xbf16>, vector<2x24x24xf32> -> vector<2x24x24xf32>
    %cst_150 = arith.constant 0.353553385 : f32
    %381 = vector.broadcast %cst_150 : f32 to vector<2x24x24xf32>
    %382 = arith.mulf %380, %381 : vector<2x24x24xf32>
    %cst_151 = arith.constant -1.000000e+30 : f32
    %383 = vector.shape_cast %28 : vector<1x1x24xi1> to vector<1x1x24xi1>
    %384 = vector.broadcast %383 : vector<1x1x24xi1> to vector<2x24x24xi1>
    %385 = vector.broadcast %cst_151 : f32 to vector<2x24x24xf32>
    %386 = arith.select %384, %382, %385 : vector<2x24x24xi1>, vector<2x24x24xf32>
    %cst_152 = arith.constant dense<0xFF800000> : vector<2x24xf32>
    %387 = vector.multi_reduction <maximumf>, %386, %cst_152 [2] : vector<2x24x24xf32> to vector<2x24xf32>
    %388 = vector.shape_cast %387 : vector<2x24xf32> to vector<2x24x1xf32>
    %389 = vector.broadcast %388 : vector<2x24x1xf32> to vector<2x24x24xf32>
    %390 = arith.subf %386, %389 : vector<2x24x24xf32>
    %391 = math.exp %390 : vector<2x24x24xf32>
    %cst_153 = arith.constant dense<0.000000e+00> : vector<2x24xf32>
    %392 = vector.multi_reduction <add>, %391, %cst_153 [2] : vector<2x24x24xf32> to vector<2x24xf32>
    %393 = vector.shape_cast %392 : vector<2x24xf32> to vector<2x24x1xf32>
    %394 = vector.broadcast %393 : vector<2x24x1xf32> to vector<2x24x24xf32>
    %395 = arith.divf %391, %394 : vector<2x24x24xf32>
    %396 = arith.truncf %395 : vector<2x24x24xf32> to vector<2x24x24xbf16>
    %397 = arith.truncf %377 : vector<2x24x8xf32> to vector<2x24x8xbf16>
    %cst_154 = arith.constant dense<0.000000e+00> : vector<2x24x8xf32>
    %398 = tpu.matmul %396, %397, %cst_154 {dimension_numbers = #tpu.dot_dimension_numbers<[2], [1], [1], [2], [0, 0, 0, 1, 1, 2], [0], [0]>} : vector<2x24x24xbf16>, vector<2x24x8xbf16>, vector<2x24x8xf32> -> vector<2x24x8xf32>
    %399 = vector.shape_cast %398 : vector<2x24x8xf32> to vector<48x8xf32>
    %400 = vector.extract_strided_slice %283 {offsets = [24, 0], sizes = [8, 32], strides = [1, 1]} : vector<32x32xf32> to vector<8x32xf32>
    %401 = arith.truncf %399 : vector<48x8xf32> to vector<48x8xbf16>
    %402 = arith.truncf %400 : vector<8x32xf32> to vector<8x32xbf16>
    %cst_155 = arith.constant dense<0.000000e+00> : vector<48x32xf32>
    %403 = tpu.matmul %401, %402, %cst_155 {dimension_numbers = #tpu.dot_dimension_numbers<[1], [0], [0], [1], [0, 0, 1, 1], [], []>} : vector<48x8xbf16>, vector<8x32xbf16>, vector<48x32xf32> -> vector<48x32xf32>
    %404 = arith.addf %374, %403 : vector<48x32xf32>
    %405 = arith.addf %245, %404 : vector<48x32xf32>
    %c1_156 = arith.constant 1 : index
    %c0_157 = arith.constant 0 : index
    %c0_158 = arith.constant 0 : index
    %406 = vector.load %arg11[%c1_156, %c0_157, %c0_158] : memref<2x1x32xf32, #tpu.memory_space<vmem>>, vector<1x1x32xf32>
    %407 = vector.shape_cast %406 : vector<1x1x32xf32> to vector<1x32xf32>
    %408 = vector.broadcast %407 : vector<1x32xf32> to vector<48x32xf32>
    %409 = arith.addf %405, %408 : vector<48x32xf32>
    %c1_159 = arith.constant 1 : index
    %c0_160 = arith.constant 0 : index
    %c0_161 = arith.constant 0 : index
    %410 = vector.load %arg12[%c1_159, %c0_160, %c0_161] : memref<2x1x32xf32, #tpu.memory_space<vmem>>, vector<1x1x32xf32>
    %411 = vector.shape_cast %410 : vector<1x1x32xf32> to vector<1x32xf32>
    %c1_162 = arith.constant 1 : index
    %c0_163 = arith.constant 0 : index
    %c0_164 = arith.constant 0 : index
    %412 = vector.load %arg13[%c1_162, %c0_163, %c0_164] : memref<2x1x32xf32, #tpu.memory_space<vmem>>, vector<1x1x32xf32>
    %413 = vector.shape_cast %412 : vector<1x1x32xf32> to vector<1x32xf32>
    %cst_165 = arith.constant dense<0.000000e+00> : vector<48xf32>
    %414 = vector.multi_reduction <add>, %409, %cst_165 [1] : vector<48x32xf32> to vector<48xf32>
    %415 = vector.shape_cast %414 : vector<48xf32> to vector<48x1xf32>
    %cst_166 = arith.constant 3.200000e+01 : f32
    %416 = vector.broadcast %cst_166 : f32 to vector<48x1xf32>
    %417 = arith.divf %415, %416 : vector<48x1xf32>
    %418 = vector.broadcast %417 : vector<48x1xf32> to vector<48x32xf32>
    %419 = arith.subf %409, %418 : vector<48x32xf32>
    %420 = arith.mulf %419, %419 : vector<48x32xf32>
    %cst_167 = arith.constant dense<0.000000e+00> : vector<48xf32>
    %421 = vector.multi_reduction <add>, %420, %cst_167 [1] : vector<48x32xf32> to vector<48xf32>
    %422 = vector.shape_cast %421 : vector<48xf32> to vector<48x1xf32>
    %cst_168 = arith.constant 3.200000e+01 : f32
    %423 = vector.broadcast %cst_168 : f32 to vector<48x1xf32>
    %424 = arith.divf %422, %423 : vector<48x1xf32>
    %425 = vector.broadcast %417 : vector<48x1xf32> to vector<48x32xf32>
    %426 = arith.subf %409, %425 : vector<48x32xf32>
    %cst_169 = arith.constant 9.99999974E-6 : f32
    %427 = vector.broadcast %cst_169 : f32 to vector<48x1xf32>
    %428 = arith.addf %424, %427 : vector<48x1xf32>
    %429 = math.rsqrt %428 : vector<48x1xf32>
    %430 = vector.broadcast %429 : vector<48x1xf32> to vector<48x32xf32>
    %431 = arith.mulf %426, %430 : vector<48x32xf32>
    %432 = vector.broadcast %411 : vector<1x32xf32> to vector<48x32xf32>
    %433 = arith.mulf %431, %432 : vector<48x32xf32>
    %434 = vector.broadcast %413 : vector<1x32xf32> to vector<48x32xf32>
    %435 = arith.addf %433, %434 : vector<48x32xf32>
    %c1_170 = arith.constant 1 : index
    %c0_171 = arith.constant 0 : index
    %c0_172 = arith.constant 0 : index
    %436 = vector.load %arg14[%c1_170, %c0_171, %c0_172] : memref<2x32x64xf32, #tpu.memory_space<vmem>>, vector<1x32x64xf32>
    %437 = vector.shape_cast %436 : vector<1x32x64xf32> to vector<32x64xf32>
    %438 = arith.truncf %435 : vector<48x32xf32> to vector<48x32xbf16>
    %439 = arith.truncf %437 : vector<32x64xf32> to vector<32x64xbf16>
    %cst_173 = arith.constant dense<0.000000e+00> : vector<48x64xf32>
    %440 = tpu.matmul %438, %439, %cst_173 {dimension_numbers = #tpu.dot_dimension_numbers<[1], [0], [0], [1], [0, 0, 1, 1], [], []>} : vector<48x32xbf16>, vector<32x64xbf16>, vector<48x64xf32> -> vector<48x64xf32>
    %c1_174 = arith.constant 1 : index
    %c0_175 = arith.constant 0 : index
    %c0_176 = arith.constant 0 : index
    %441 = vector.load %arg15[%c1_174, %c0_175, %c0_176] : memref<2x1x64xf32, #tpu.memory_space<vmem>>, vector<1x1x64xf32>
    %442 = vector.shape_cast %441 : vector<1x1x64xf32> to vector<1x64xf32>
    %443 = vector.broadcast %442 : vector<1x64xf32> to vector<48x64xf32>
    %444 = arith.addf %440, %443 : vector<48x64xf32>
    %cst_177 = arith.constant 5.000000e-01 : f32
    %445 = vector.broadcast %cst_177 : f32 to vector<48x64xf32>
    %446 = arith.mulf %445, %444 : vector<48x64xf32>
    %cst_178 = arith.constant 0.707106769 : f32
    %447 = vector.broadcast %cst_178 : f32 to vector<48x64xf32>
    %448 = arith.mulf %444, %447 : vector<48x64xf32>
    %449 = math.erf %448 : vector<48x64xf32>
    %cst_179 = arith.constant 1.000000e+00 : f32
    %450 = vector.broadcast %cst_179 : f32 to vector<48x64xf32>
    %451 = arith.addf %450, %449 : vector<48x64xf32>
    %452 = arith.mulf %446, %451 : vector<48x64xf32>
    %c1_180 = arith.constant 1 : index
    %c0_181 = arith.constant 0 : index
    %c0_182 = arith.constant 0 : index
    %453 = vector.load %arg16[%c1_180, %c0_181, %c0_182] : memref<2x64x32xf32, #tpu.memory_space<vmem>>, vector<1x64x32xf32>
    %454 = vector.shape_cast %453 : vector<1x64x32xf32> to vector<64x32xf32>
    %455 = arith.truncf %452 : vector<48x64xf32> to vector<48x64xbf16>
    %456 = arith.truncf %454 : vector<64x32xf32> to vector<64x32xbf16>
    %cst_183 = arith.constant dense<0.000000e+00> : vector<48x32xf32>
    %457 = tpu.matmul %455, %456, %cst_183 {dimension_numbers = #tpu.dot_dimension_numbers<[1], [0], [0], [1], [0, 0, 1, 1], [], []>} : vector<48x64xbf16>, vector<64x32xbf16>, vector<48x32xf32> -> vector<48x32xf32>
    %458 = arith.addf %409, %457 : vector<48x32xf32>
    %c1_184 = arith.constant 1 : index
    %c0_185 = arith.constant 0 : index
    %c0_186 = arith.constant 0 : index
    %459 = vector.load %arg17[%c1_184, %c0_185, %c0_186] : memref<2x1x32xf32, #tpu.memory_space<vmem>>, vector<1x1x32xf32>
    %460 = vector.shape_cast %459 : vector<1x1x32xf32> to vector<1x32xf32>
    %461 = vector.broadcast %460 : vector<1x32xf32> to vector<48x32xf32>
    %462 = arith.addf %458, %461 : vector<48x32xf32>
    %c0_187 = arith.constant 0 : index
    %c0_188 = arith.constant 0 : index
    %463 = vector.load %arg18[%c0_187, %c0_188] : memref<1x32xf32, #tpu.memory_space<vmem>>, vector<1x32xf32>
    %c0_189 = arith.constant 0 : index
    %c0_190 = arith.constant 0 : index
    %464 = vector.load %arg19[%c0_189, %c0_190] : memref<1x32xf32, #tpu.memory_space<vmem>>, vector<1x32xf32>
    %cst_191 = arith.constant dense<0.000000e+00> : vector<48xf32>
    %465 = vector.multi_reduction <add>, %462, %cst_191 [1] : vector<48x32xf32> to vector<48xf32>
    %466 = vector.shape_cast %465 : vector<48xf32> to vector<48x1xf32>
    %cst_192 = arith.constant 3.200000e+01 : f32
    %467 = vector.broadcast %cst_192 : f32 to vector<48x1xf32>
    %468 = arith.divf %466, %467 : vector<48x1xf32>
    %469 = vector.broadcast %468 : vector<48x1xf32> to vector<48x32xf32>
    %470 = arith.subf %462, %469 : vector<48x32xf32>
    %471 = arith.mulf %470, %470 : vector<48x32xf32>
    %cst_193 = arith.constant dense<0.000000e+00> : vector<48xf32>
    %472 = vector.multi_reduction <add>, %471, %cst_193 [1] : vector<48x32xf32> to vector<48xf32>
    %473 = vector.shape_cast %472 : vector<48xf32> to vector<48x1xf32>
    %cst_194 = arith.constant 3.200000e+01 : f32
    %474 = vector.broadcast %cst_194 : f32 to vector<48x1xf32>
    %475 = arith.divf %473, %474 : vector<48x1xf32>
    %476 = vector.broadcast %468 : vector<48x1xf32> to vector<48x32xf32>
    %477 = arith.subf %462, %476 : vector<48x32xf32>
    %cst_195 = arith.constant 9.99999974E-6 : f32
    %478 = vector.broadcast %cst_195 : f32 to vector<48x1xf32>
    %479 = arith.addf %475, %478 : vector<48x1xf32>
    %480 = math.rsqrt %479 : vector<48x1xf32>
    %481 = vector.broadcast %480 : vector<48x1xf32> to vector<48x32xf32>
    %482 = arith.mulf %477, %481 : vector<48x32xf32>
    %483 = vector.broadcast %463 : vector<1x32xf32> to vector<48x32xf32>
    %484 = arith.mulf %482, %483 : vector<48x32xf32>
    %485 = vector.broadcast %464 : vector<1x32xf32> to vector<48x32xf32>
    %486 = arith.addf %484, %485 : vector<48x32xf32>
    %c0_196 = arith.constant 0 : index
    %c0_197 = arith.constant 0 : index
    %487 = vector.load %arg20[%c0_196, %c0_197] : memref<32x128xf32, #tpu.memory_space<vmem>>, vector<32x128xf32>
    %488 = arith.truncf %486 : vector<48x32xf32> to vector<48x32xbf16>
    %489 = arith.truncf %487 : vector<32x128xf32> to vector<32x128xbf16>
    %cst_198 = arith.constant dense<0.000000e+00> : vector<48x128xf32>
    %490 = tpu.matmul %488, %489, %cst_198 {dimension_numbers = #tpu.dot_dimension_numbers<[1], [0], [0], [1], [0, 0, 1, 1], [], []>} : vector<48x32xbf16>, vector<32x128xbf16>, vector<48x128xf32> -> vector<48x128xf32>
    %c0_199 = arith.constant 0 : index
    %c0_200 = arith.constant 0 : index
    %491 = vector.load %arg21[%c0_199, %c0_200] : memref<1x128xf32, #tpu.memory_space<vmem>>, vector<1x128xf32>
    %492 = vector.broadcast %491 : vector<1x128xf32> to vector<48x128xf32>
    %493 = arith.addf %490, %492 : vector<48x128xf32>
    %494 = vector.extract_strided_slice %493 {offsets = [16, 0], sizes = [1, 128], strides = [1, 1]} : vector<48x128xf32> to vector<1x128xf32>
    %c0_201 = arith.constant 0 : index
    %c0_202 = arith.constant 0 : index
    %495 = vector.load %arg22[%c0_201, %c0_202] : memref<2x128xf32, #tpu.memory_space<vmem>>, vector<1x128xf32>
    tpu.vector_store %arg22[%c0_201, %c0_202], %494 {strides = array<i32>} : memref<2x128xf32, #tpu.memory_space<vmem>>, vector<1x128xf32>,
    %496 = vector.extract_strided_slice %493 {offsets = [40, 0], sizes = [1, 128], strides = [1, 1]} : vector<48x128xf32> to vector<1x128xf32>
    %c1_203 = arith.constant 1 : index
    %c0_204 = arith.constant 0 : index
    %497 = vector.load %arg22[%c1_203, %c0_204] : memref<2x128xf32, #tpu.memory_space<vmem>>, vector<1x128xf32>
    tpu.vector_store %arg22[%c1_203, %c0_204], %496 {strides = array<i32>} : memref<2x128xf32, #tpu.memory_space<vmem>>, vector<1x128xf32>,
    return
  }
}

</mosaic_0001>

<llo_original>
// kernel: vit_forward.1
$region0: #{vit_forward.1}
  #allocation0 [shape = 'u32[]', space=smem, size = 0x4, offset = 0x4, fixed_abs, tag = 'smem constant byte address 0x4 - core index']
  #allocation1 [shape = 'u32[144,128]{1,0:T(1,128)}', space=vmem, size = 0x12000, scoped, tag = 'internal scratch']
  #allocation2 [shape = 'f32[48,32]{1,0:T(8,128)}', space=vmem, size = 0x6000, scoped, tag = 'scratch operand']
  %s0 = inlined_call_operand.vmem [shape: f32[32,64], index: 0, kind: input, shape index: {}]
  %s1 = inlined_call_operand.vmem [shape: f32[64,32], index: 1, kind: input, shape index: {}]
  %s2 = inlined_call_operand.vmem [shape: f32[1,32], index: 2, kind: input, shape index: {}]
  %s3 = inlined_call_operand.vmem [shape: f32[1,32], index: 3, kind: input, shape index: {}]
  %s4 = inlined_call_operand.vmem [shape: f32[1,32], index: 4, kind: input, shape index: {}]
  %s5 = inlined_call_operand.vmem [shape: f32[16,32], index: 5, kind: input, shape index: {}]
  %s6 = inlined_call_operand.vmem [shape: f32[2,1,32], index: 6, kind: input, shape index: {}]
  %s7 = inlined_call_operand.vmem [shape: f32[2,1,32], index: 7, kind: input, shape index: {}]
  %s8 = inlined_call_operand.vmem [shape: f32[2,32,96], index: 8, kind: input, shape index: {}]
  %s9 = inlined_call_operand.vmem [shape: f32[2,1,96], index: 9, kind: input, shape index: {}]
  %s10 = inlined_call_operand.vmem [shape: f32[2,32,32], index: 10, kind: input, shape index: {}]
  %s11 = inlined_call_operand.vmem [shape: f32[2,1,32], index: 11, kind: input, shape index: {}]
  %s12 = inlined_call_operand.vmem [shape: f32[2,1,32], index: 12, kind: input, shape index: {}]
  %s13 = inlined_call_operand.vmem [shape: f32[2,1,32], index: 13, kind: input, shape index: {}]
  %s14 = inlined_call_operand.vmem [shape: f32[2,32,64], index: 14, kind: input, shape index: {}]
  %s15 = inlined_call_operand.vmem [shape: f32[2,1,64], index: 15, kind: input, shape index: {}]
  %s16 = inlined_call_operand.vmem [shape: f32[2,64,32], index: 16, kind: input, shape index: {}]
  %s17 = inlined_call_operand.vmem [shape: f32[2,1,32], index: 17, kind: input, shape index: {}]
  %s18 = inlined_call_operand.vmem [shape: f32[1,32], index: 18, kind: input, shape index: {}]
  %s19 = inlined_call_operand.vmem [shape: f32[1,32], index: 19, kind: input, shape index: {}]
  %s20 = inlined_call_operand.vmem [shape: f32[32,128], index: 20, kind: input, shape index: {}]
  %s21 = inlined_call_operand.vmem [shape: f32[1,128], index: 21, kind: input, shape index: {}]
  %s22 = inlined_call_operand.hbm [shape: f32[2,128], index: 22, kind: output, shape index: {}]
  %s23 = sld [smem:[#allocation0]]
  $region98: #{vit_forward.1} parent=0
    _
  %s25 = ssub.s32 1, %s23
  %s26 = scalar_select 0, %s25, %s23
  $region1: #{vit_forward.1} parent=0
    #allocation3 [shape = 'u8[1024]{0}', space=vmem, size = 0x400, scoped, tag = 'output window, operand 0, single buffered']
    #allocation4 [shape = 's32[1]{0}', space=sflag, size = 0x4, scoped, tag = 'scoped memory for vit_forward.1']
    %27 = vsyncpa [#allocation4], 0
    // Predicated region
    $region2: #{vit_forward.1} parent=1 // pred_check
      _
    $region3: #{vit_forward.1} parent=1 // pred_check_branch
      %29 = sbr.rel (0) target = $region5
    $region4: #{vit_forward.1} parent=1 // pred_region
      _
    $region5: #{vit_forward.1} parent=1 // pred_fallthru
      _
    // Predicated region
    $region6: #{vit_forward.1} parent=1 // pred_check
      _
    $region7: #{vit_forward.1} parent=1 // pred_check_branch
      %31 = sbr.rel (0) target = $region9
    $region8: #{vit_forward.1} parent=1 // pred_region
      _
    $region9: #{vit_forward.1} parent=1 // pred_fallthru
      _
    // Predicated region
    $region10: #{vit_forward.1} parent=1 // pred_check
      _
    $region11: #{vit_forward.1} parent=1 // pred_check_branch
      %33 = sbr.rel (0) target = $region13
    $region12: #{vit_forward.1} parent=1 // pred_region
      _
    $region13: #{vit_forward.1} parent=1 // pred_fallthru
      _
    // Predicated region
    $region14: #{vit_forward.1} parent=1 // pred_check
      _
    $region15: #{vit_forward.1} parent=1 // pred_check_branch
      %35 = sbr.rel (0) target = $region17
    $region16: #{vit_forward.1} parent=1 // pred_region
      _
    $region17: #{vit_forward.1} parent=1 // pred_fallthru
      _
    // Predicated region
    $region18: #{vit_forward.1} parent=1 // pred_check
      _
    $region19: #{vit_forward.1} parent=1 // pred_check_branch
      %37 = sbr.rel (0) target = $region21
    $region20: #{vit_forward.1} parent=1 // pred_region
      _
    $region21: #{vit_forward.1} parent=1 // pred_fallthru
      _
    // Predicated region
    $region22: #{vit_forward.1} parent=1 // pred_check
      _
    $region23: #{vit_forward.1} parent=1 // pred_check_branch
      %39 = sbr.rel (0) target = $region25
    $region24: #{vit_forward.1} parent=1 // pred_region
      _
    $region25: #{vit_forward.1} parent=1 // pred_fallthru
      _
    // Predicated region
    $region26: #{vit_forward.1} parent=1 // pred_check
      _
    $region27: #{vit_forward.1} parent=1 // pred_check_branch
      %41 = sbr.rel (0) target = $region29
    $region28: #{vit_forward.1} parent=1 // pred_region
      _
    $region29: #{vit_forward.1} parent=1 // pred_fallthru
      _
    // Predicated region
    $region30: #{vit_forward.1} parent=1 // pred_check
      _
    $region31: #{vit_forward.1} parent=1 // pred_check_branch
      %43 = sbr.rel (0) target = $region33
    $region32: #{vit_forward.1} parent=1 // pred_region
      _
    $region33: #{vit_forward.1} parent=1 // pred_fallthru
      _
    // Predicated region
    $region34: #{vit_forward.1} parent=1 // pred_check
      _
    $region35: #{vit_forward.1} parent=1 // pred_check_branch
      %45 = sbr.rel (0) target = $region37
    $region36: #{vit_forward.1} parent=1 // pred_region
      _
    $region37: #{vit_forward.1} parent=1 // pred_fallthru
      _
    // Predicated region
    $region38: #{vit_forward.1} parent=1 // pred_check
      _
    $region39: #{vit_forward.1} parent=1 // pred_check_branch
      %47 = sbr.rel (0) target = $region41
    $region40: #{vit_forward.1} parent=1 // pred_region
      _
    $region41: #{vit_forward.1} parent=1 // pred_fallthru
      _
    // Predicated region
    $region42: #{vit_forward.1} parent=1 // pred_check
      _
    $region43: #{vit_forward.1} parent=1 // pred_check_branch
      %49 = sbr.rel (0) target = $region45
    $region44: #{vit_forward.1} parent=1 // pred_region
      _
    $region45: #{vit_forward.1} parent=1 // pred_fallthru
      _
    // Predicated region
    $region46: #{vit_forward.1} parent=1 // pred_check
      _
    $region47: #{vit_forward.1} parent=1 // pred_check_branch
      %51 = sbr.rel (0) target = $region49
    $region48: #{vit_forward.1} parent=1 // pred_region
      _
    $region49: #{vit_forward.1} parent=1 // pred_fallthru
      _
    // Predicated region
    $region50: #{vit_forward.1} parent=1 // pred_check
      _
    $region51: #{vit_forward.1} parent=1 // pred_check_branch
      %53 = sbr.rel (0) target = $region53
    $region52: #{vit_forward.1} parent=1 // pred_region
      _
    $region53: #{vit_forward.1} parent=1 // pred_fallthru
      _
    // Predicated region
    $region54: #{vit_forward.1} parent=1 // pred_check
      _
    $region55: #{vit_forward.1} parent=1 // pred_check_branch
      %55 = sbr.rel (0) target = $region57
    $region56: #{vit_forward.1} parent=1 // pred_region
      _
    $region57: #{vit_forward.1} parent=1 // pred_fallthru
      _
    // Predicated region
    $region58: #{vit_forward.1} parent=1 // pred_check
      _
    $region59: #{vit_forward.1} parent=1 // pred_check_branch
      %57 = sbr.rel (0) target = $region61
    $region60: #{vit_forward.1} parent=1 // pred_region
      _
    $region61: #{vit_forward.1} parent=1 // pred_fallthru
      _
    // Predicated region
    $region62: #{vit_forward.1} parent=1 // pred_check
      _
    $region63: #{vit_forward.1} parent=1 // pred_check_branch
      %59 = sbr.rel (0) target = $region65
    $region64: #{vit_forward.1} parent=1 // pred_region
      _
    $region65: #{vit_forward.1} parent=1 // pred_fallthru
      _
    // Predicated region
    $region66: #{vit_forward.1} parent=1 // pred_check
      _
    $region67: #{vit_forward.1} parent=1 // pred_check_branch
      %61 = sbr.rel (0) target = $region69
    $region68: #{vit_forward.1} parent=1 // pred_region
      _
    $region69: #{vit_forward.1} parent=1 // pred_fallthru
      _
    // Predicated region
    $region70: #{vit_forward.1} parent=1 // pred_check
      _
    $region71: #{vit_forward.1} parent=1 // pred_check_branch
      %63 = sbr.rel (0) target = $region73
    $region72: #{vit_forward.1} parent=1 // pred_region
      _
    $region73: #{vit_forward.1} parent=1 // pred_fallthru
      _
    // Predicated region
    $region74: #{vit_forward.1} parent=1 // pred_check
      _
    $region75: #{vit_forward.1} parent=1 // pred_check_branch
      %65 = sbr.rel (0) target = $region77
    $region76: #{vit_forward.1} parent=1 // pred_region
      _
    $region77: #{vit_forward.1} parent=1 // pred_fallthru
      _
    // Predicated region
    $region78: #{vit_forward.1} parent=1 // pred_check
      _
    $region79: #{vit_forward.1} parent=1 // pred_check_branch
      %67 = sbr.rel (0) target = $region81
    $region80: #{vit_forward.1} parent=1 // pred_region
      _
    $region81: #{vit_forward.1} parent=1 // pred_fallthru
      _
    // Predicated region
    $region82: #{vit_forward.1} parent=1 // pred_check
      _
    $region83: #{vit_forward.1} parent=1 // pred_check_branch
      %69 = sbr.rel (0) target = $region85
    $region84: #{vit_forward.1} parent=1 // pred_region
      _
    $region85: #{vit_forward.1} parent=1 // pred_fallthru
      _
    // Predicated region
    $region86: #{vit_forward.1} parent=1 // pred_check
      _
    $region87: #{vit_forward.1} parent=1 // pred_check_branch
      %71 = sbr.rel (0) target = $region89
    $region88: #{vit_forward.1} parent=1 // pred_region
      _
    $region89: #{vit_forward.1} parent=1 // pred_fallthru
      _
    %v73 = vld [vmem:[%s0] sm:$0xff]
    %v74 = vld [vmem:[%s0 + $0x8] sm:$0xff]
    %v75 = vld [vmem:[%s0 + $0x10] sm:$0xff]
    %v76 = vld [vmem:[%s0 + $0x18] sm:$0xff]
    %v77 = vld [vmem:[%s1] sm:$0xff]
    %v78 = vld [vmem:[%s1 + $0x8] sm:$0xff]
    %v79 = vld [vmem:[%s1 + $0x10] sm:$0xff]
    %v80 = vld [vmem:[%s1 + $0x18] sm:$0xff]
    %v81 = vld [vmem:[%s1 + $0x20] sm:$0xff]
    %v82 = vld [vmem:[%s1 + $0x28] sm:$0xff]
    %v83 = vld [vmem:[%s1 + $0x30] sm:$0xff]
    %v84 = vld [vmem:[%s1 + $0x38] sm:$0xff]
    %v85 = vpack.c.bf16 %v74, %v73
    %v86 = vpack.c.bf16 %v76, %v75
    %v87 = vpack.c.bf16 %v78, %v77
    %v88 = vpack.c.bf16 %v80, %v79
    %v89 = vpack.c.bf16 %v82, %v81
    %v90 = vpack.c.bf16 %v84, %v83
    %v91 = vld [vmem:[%s2] sm:$0x1]
    %v93 = vlaneseq
    %v94 = vshrl.u32 %v93, 7
    %v95 = vsub.s32 0, %v94
    %v96 = vrot.slane %v91, %v95
    %vm98 = vcmask 523264
    %v100 = vsel %vm98, %v85, 0
    %v103 = vsel %vm98, %v86, 0
    %105 = vmatprep.subr.bf16.mxu0 0
    %106 = vmatpush1.bf16.msra.mxu0 %v87
    %107 = vmatprep.subr.bf16.mxu0 0
    %108 = vmatpush1.bf16.msra.mxu0 %v88
    %109 = vmatprep.subr.bf16.mxu0 0
    %110 = vmatpush1.bf16.msra.mxu0 %v89
    %111 = vmatprep.subr.bf16.mxu0 0
    %112 = vmatpush1.bf16.msra.mxu0 %v90
    %113 = vmatprep.subr.bf16.mxu0 0
    %114 = vmatpush1.bf16.msra.mxu0 0
    %115 = vmatprep.subr.bf16.mxu0 0
    %116 = vmatpush1.bf16.msra.mxu0 0
    %117 = vmatprep.subr.bf16.mxu0 0
    %118 = vmatpush1.bf16.msra.mxu0 0
    %119 = vmatprep.subr.bf16.mxu0 0
    %120 = vmatpush1.bf16.msra.mxu0 0
    %121 = vmatprep.subr.bf16.mxu0 0
    %122 = vmatpush1.bf16.msra.mxu0 0
    %123 = vmatprep.subr.bf16.mxu0 0
    %124 = vmatpush1.bf16.msra.mxu0 0
    %125 = vmatprep.subr.bf16.mxu0 0
    %126 = vmatpush1.bf16.msra.mxu0 0
    %127 = vmatprep.subr.bf16.mxu0 0
    %128 = vmatpush1.bf16.msra.mxu0 0
    %129 = vmatprep.subr.bf16.mxu0 0
    %130 = vmatpush1.bf16.msra.mxu0 0
    %131 = vmatprep.subr.bf16.mxu0 0
    %132 = vmatpush1.bf16.msra.mxu0 0
    %133 = vmatprep.subr.bf16.mxu0 0
    %134 = vmatpush1.bf16.msra.mxu0 0
    %135 = vmatprep.subr.bf16.mxu0 0
    %136 = vmatpush1.bf16.msra.mxu0 0
    %137 = vmatprep.mubr.bf16.mxu0 0
    %138 = vmatmul.mubr.bf16.gmra.mrb[0].mxu0 %v100
    %v139 = vpop.f32.mrb[0].mxu0
    %v140 = vadd.f32 %v96, %v139
    %v141 = vpop.f32.mrb[0].mxu0
    %v142 = vpop.f32.mrb[0].mxu0
    %v143 = vadd.f32 %v96, %v142
    %v144 = vpop.f32.mrb[0].mxu0
    %145 = vmatprep.mubr.bf16.mxu0 0
    %146 = vmatmul.mubr.bf16.gmra.mrb[0].mxu0 %v103
    %v147 = vpop.f32.mrb[0].mxu0
    %v148 = vadd.f32 %v96, %v147
    %v149 = vpop.f32.mrb[0].mxu0
    %v150 = vpop.f32.mrb[0].mxu0
    %v151 = vadd.f32 %v96, %v150
    %v152 = vpop.f32.mrb[0].mxu0
    %153 = vdwg.mxu0
    %v154 = vld [vmem:[%s3] sm:$0x1]
    %v155 = vld [vmem:[%s4] sm:$0x1]
    %v156 = vadd.f32 %v154, %v155
    %v157 = vld [vmem:[%s5] sm:$0xff]
    %v158 = vld [vmem:[%s5 + $0x8] sm:$0xff]
    %v159 = vadd.f32 %v140, %v157
    %v160 = vadd.f32 %v143, %v158
    %vm161 = vcmask 261120
    %162 = vst.msk [vmem:[#allocation2] sm:$0xff] %vm161, %v159
    %163 = vst.msk [vmem:[#allocation2 + $0x8] sm:$0xff] %vm161, %v160
    %164 = vst.msk [vmem:[#allocation2 + $0x10] sm:$0xff] %vm161, 0.0
    %vm165 = vcmask 253952
    %166 = vst.msk [vmem:[#allocation2 + $0x10] sm:$0x1] %vm165, %v156
    %v167 = vld [vmem:[%s5] sm:$0xff]
    %v168 = vld [vmem:[%s5 + $0x8] sm:$0xff]
    %v169 = vadd.f32 %v148, %v167
    %v170 = vadd.f32 %v151, %v168
    %171 = vst.msk [vmem:[#allocation2 + $0x18] sm:$0xff] %vm161, %v169
    %172 = vst.msk [vmem:[#allocation2 + $0x20] sm:$0xff] %vm161, %v170
    %173 = vst.msk [vmem:[#allocation2 + $0x28] sm:$0xff] %vm161, 0.0
    %174 = vst.msk [vmem:[#allocation2 + $0x28] sm:$0x1] %vm165, %v156
    %v175 = vld [vmem:[#allocation2] sm:$0xff]
    %v176 = vld [vmem:[#allocation2 + $0x8] sm:$0xff]
    %v177 = vld [vmem:[#allocation2 + $0x10] sm:$0xff]
    %v178 = vld [vmem:[#allocation2 + $0x18] sm:$0xff]
    %v179 = vld [vmem:[#allocation2 + $0x20] sm:$0xff]
    %v180 = vld [vmem:[#allocation2 + $0x28] sm:$0xff]
    %v181 = vlaneseq
    %v182 = vand.u32 %v181, 127
    %vm183 = vcmp.lt.s32.totalorder %v182, 17
    %v184 = vld [vmem:[%s6] sm:$0x1]
    %v185 = vld [vmem:[%s7] sm:$0x1]
    %v186 = vsel %vm161, %v175, 0.0
    %187 = vadd.xlane.f32.xlu0 %v186
    %v188 = vpop.xlane.xlu0 %187
    %v189 = vsel %vm161, %v176, 0.0
    %190 = vadd.xlane.f32.xlu0 %v189
    %v191 = vpop.xlane.xlu0 %190
    %v192 = vsel %vm161, %v177, 0.0
    %193 = vadd.xlane.f32.xlu0 %v192
    %v194 = vpop.xlane.xlu0 %193
    %v195 = vsel %vm161, %v178, 0.0
    %196 = vadd.xlane.f32.xlu0 %v195
    %v197 = vpop.xlane.xlu0 %196
    %v198 = vsel %vm161, %v179, 0.0
    %199 = vadd.xlane.f32.xlu0 %v198
    %v200 = vpop.xlane.xlu0 %199
    %v201 = vsel %vm161, %v180, 0.0
    %202 = vadd.xlane.f32.xlu0 %v201
    %v203 = vpop.xlane.xlu0 %202
    %v204 = vrcp.pop 32.0
    %v205 = vmul.f32 %v188, %v204
    %v206 = vmul.f32 %v191, %v204
    %v207 = vmul.f32 %v194, %v204
    %v208 = vmul.f32 %v197, %v204
    %v209 = vmul.f32 %v200, %v204
    %v210 = vmul.f32 %v203, %v204
    %v211 = vsub.f32 %v175, %v205
    %v212 = vsub.f32 %v176, %v206
    %v213 = vsub.f32 %v177, %v207
    %v214 = vsub.f32 %v178, %v208
    %v215 = vsub.f32 %v179, %v209
    %v216 = vsub.f32 %v180, %v210
    %v217 = vmul.f32 %v211, %v211
    %v218 = vmul.f32 %v212, %v212
    %v219 = vmul.f32 %v213, %v213
    %v220 = vmul.f32 %v214, %v214
    %v221 = vmul.f32 %v215, %v215
    %v222 = vmul.f32 %v216, %v216
    %v223 = vsel %vm161, %v217, 0.0
    %224 = vadd.xlane.f32.xlu0 %v223
    %v225 = vpop.xlane.xlu0 %224
    %v226 = vsel %vm161, %v218, 0.0
    %227 = vadd.xlane.f32.xlu0 %v226
    %v228 = vpop.xlane.xlu0 %227
    %v229 = vsel %vm161, %v219, 0.0
    %230 = vadd.xlane.f32.xlu0 %v229
    %v231 = vpop.xlane.xlu0 %230
    %v232 = vsel %vm161, %v220, 0.0
    %233 = vadd.xlane.f32.xlu0 %v232
    %v234 = vpop.xlane.xlu0 %233
    %v235 = vsel %vm161, %v221, 0.0
    %236 = vadd.xlane.f32.xlu0 %v235
    %v237 = vpop.xlane.xlu0 %236
    %v238 = vsel %vm161, %v222, 0.0
    %239 = vadd.xlane.f32.xlu0 %v238
    %v240 = vpop.xlane.xlu0 %239
    %v241 = vmul.f32 %v225, %v204
    %v242 = vmul.f32 %v228, %v204
    %v243 = vmul.f32 %v231, %v204
    %v244 = vmul.f32 %v234, %v204
    %v245 = vmul.f32 %v237, %v204
    %v246 = vmul.f32 %v240, %v204
    %v247 = vadd.f32 %v241, 1e-05
    %v248 = vadd.f32 %v242, 1e-05
    %v249 = vadd.f32 %v243, 1e-05
    %v250 = vadd.f32 %v244, 1e-05
    %v251 = vadd.f32 %v245, 1e-05
    %v252 = vadd.f32 %v246, 1e-05
    %v253 = vrsqrt.pop %v247
    %v254 = vrsqrt.pop %v248
    %v255 = vrsqrt.pop %v249
    %v256 = vrsqrt.pop %v250
    %v257 = vrsqrt.pop %v251
    %v258 = vrsqrt.pop %v252
    %v259 = vmul.f32 %v211, %v253
    %v260 = vmul.f32 %v212, %v254
    %v261 = vmul.f32 %v213, %v255
    %v262 = vmul.f32 %v214, %v256
    %v263 = vmul.f32 %v215, %v257
    %v264 = vmul.f32 %v216, %v258
    %v266 = vlaneseq
    %v267 = vshrl.u32 %v266, 7
    %v268 = vsub.s32 0, %v267
    %v269 = vrot.slane %v184, %v268
    %v271 = vmul.f32 %v259, %v269
    %v272 = vmul.f32 %v260, %v269
    %v273 = vmul.f32 %v261, %v269
    %v274 = vmul.f32 %v262, %v269
    %v275 = vmul.f32 %v263, %v269
    %v276 = vmul.f32 %v264, %v269
    %v278 = vlaneseq
    %v279 = vshrl.u32 %v278, 7
    %v280 = vsub.s32 0, %v279
    %v281 = vrot.slane %v185, %v280
    %v283 = vadd.f32 %v271, %v281
    %v284 = vadd.f32 %v272, %v281
    %v285 = vadd.f32 %v273, %v281
    %v286 = vadd.f32 %v274, %v281
    %v287 = vadd.f32 %v275, %v281
    %v288 = vadd.f32 %v276, %v281
    %v289 = vld [vmem:[%s8] sm:$0xff]
    %v290 = vld [vmem:[%s8 + $0x8] sm:$0xff]
    %v291 = vld [vmem:[%s8 + $0x10] sm:$0xff]
    %v292 = vld [vmem:[%s8 + $0x18] sm:$0xff]
    %v293 = vpack.c.bf16 %v284, %v283
    %v294 = vpack.c.bf16 %v286, %v285
    %v295 = vpack.c.bf16 %v288, %v287
    %v296 = vpack.c.bf16 %v290, %v289
    %v297 = vpack.c.bf16 %v292, %v291
    %v298 = vld [vmem:[%s9] sm:$0x1]
    %v300 = vlaneseq
    %v301 = vshrl.u32 %v300, 7
    %v302 = vsub.s32 0, %v301
    %v303 = vrot.slane %v298, %v302
    %v306 = vsel %vm161, %v293, 0
    %v309 = vsel %vm161, %v294, 0
    %v312 = vsel %vm161, %v295, 0
    %314 = vmatprep.subr.bf16.mxu0 0
    %315 = vmatpush1.bf16.msra.mxu0 %v296
    %316 = vmatprep.subr.bf16.mxu0 0
    %317 = vmatpush1.bf16.msra.mxu0 %v297
    %318 = vmatprep.subr.bf16.mxu0 0
    %319 = vmatpush1.bf16.msra.mxu0 0
    %320 = vmatprep.subr.bf16.mxu0 0
    %321 = vmatpush1.bf16.msra.mxu0 0
    %322 = vmatprep.subr.bf16.mxu0 0
    %323 = vmatpush1.bf16.msra.mxu0 0
    %324 = vmatprep.subr.bf16.mxu0 0
    %325 = vmatpush1.bf16.msra.mxu0 0
    %326 = vmatprep.subr.bf16.mxu0 0
    %327 = vmatpush1.bf16.msra.mxu0 0
    %328 = vmatprep.subr.bf16.mxu0 0
    %329 = vmatpush1.bf16.msra.mxu0 0
    %330 = vmatprep.subr.bf16.mxu0 0
    %331 = vmatpush1.bf16.msra.mxu0 0
    %332 = vmatprep.subr.bf16.mxu0 0
    %333 = vmatpush1.bf16.msra.mxu0 0
    %334 = vmatprep.subr.bf16.mxu0 0
    %335 = vmatpush1.bf16.msra.mxu0 0
    %336 = vmatprep.subr.bf16.mxu0 0
    %337 = vmatpush1.bf16.msra.mxu0 0
    %338 = vmatprep.subr.bf16.mxu0 0
    %339 = vmatpush1.bf16.msra.mxu0 0
    %340 = vmatprep.subr.bf16.mxu0 0
    %341 = vmatpush1.bf16.msra.mxu0 0
    %342 = vmatprep.subr.bf16.mxu0 0
    %343 = vmatpush1.bf16.msra.mxu0 0
    %344 = vmatprep.subr.bf16.mxu0 0
    %345 = vmatpush1.bf16.msra.mxu0 0
    %346 = vmatprep.mubr.bf16.mxu0 0
    %347 = vmatmul.mubr.bf16.gmra.mrb[0].mxu0 %v306
    %v348 = vpop.f32.mrb[0].mxu0
    %v349 = vadd.f32 %v303, %v348
    %v350 = vpop.f32.mrb[0].mxu0
    %v351 = vpop.f32.mrb[0].mxu0
    %v352 = vadd.f32 %v303, %v351
    %v353 = vpop.f32.mrb[0].mxu0
    %354 = vmatprep.mubr.bf16.mxu0 0
    %355 = vmatmul.mubr.bf16.gmra.mrb[0].mxu0 %v309
    %v356 = vpop.f32.mrb[0].mxu0
    %v357 = vadd.f32 %v303, %v356
    %v358 = vpop.f32.mrb[0].mxu0
    %v359 = vpop.f32.mrb[0].mxu0
    %v360 = vadd.f32 %v303, %v359
    %v361 = vpop.f32.mrb[0].mxu0
    %362 = vmatprep.mubr.bf16.mxu0 0
    %363 = vmatmul.mubr.bf16.gmra.mrb[0].mxu0 %v312
    %v364 = vpop.f32.mrb[0].mxu0
    %v365 = vadd.f32 %v303, %v364
    %v366 = vpop.f32.mrb[0].mxu0
    %v367 = vpop.f32.mrb[0].mxu0
    %v368 = vadd.f32 %v303, %v367
    %v369 = vpop.f32.mrb[0].mxu0
    %370 = vdwg.mxu0
    %v371 = vld [vmem:[%s10] sm:$0xff]
    %v372 = vld [vmem:[%s10 + $0x8] sm:$0xff]
    %v373 = vld [vmem:[%s10 + $0x10] sm:$0xff]
    %v374 = vld [vmem:[%s10 + $0x18] sm:$0xff]
    %v375 = vpack.c.bf16 %v352, %v349
    %v376 = vpack.c.bf16 %v357, %v357
    %v377 = vpack.c.bf16 %v365, %v360
    %v378 = vpack.c.bf16 %v368, %v368
    %381 = vrot.lane.b32.xlu0 %v375, 96
    %v382 = vpop.permute.xlu0 %381
    %383 = vrot.lane.b32.xlu0 %v376, 96
    %v384 = vpop.permute.xlu0 %383
    %vm385 = vcmask 64512
    %v387 = vsel %vm385, %v375, 0
    %v390 = vsel %vm385, %v376, 0
    %v393 = vsel %vm385, %v382, 0
    %v396 = vsel %vm385, %v384, 0
    %398 = vmatprep.subr.bf16.mxu0 0
    %399 = vmatpush1.bf16.xpose.msra.mxu0 %v393
    %400 = vmatprep.subr.bf16.mxu0 0
    %401 = vmatpush1.bf16.xpose.msra.mxu0 %v396
    %402 = vmatprep.subr.bf16.mxu0 0
    %403 = vmatpush1.bf16.xpose.msra.mxu0 0
    %404 = vmatprep.subr.bf16.mxu0 0
    %405 = vmatpush1.bf16.xpose.msra.mxu0 0
    %406 = vmatprep.subr.bf16.mxu0 0
    %407 = vmatpush1.bf16.xpose.msra.mxu0 0
    %408 = vmatprep.subr.bf16.mxu0 0
    %409 = vmatpush1.bf16.xpose.msra.mxu0 0
    %410 = vmatprep.subr.bf16.mxu0 0
    %411 = vmatpush1.bf16.xpose.msra.mxu0 0
    %412 = vmatprep.subr.bf16.mxu0 0
    %413 = vmatpush1.bf16.xpose.msra.mxu0 0
    %414 = vmatprep.subr.bf16.mxu0 0
    %415 = vmatpush1.bf16.xpose.msra.mxu0 0
    %416 = vmatprep.subr.bf16.mxu0 0
    %417 = vmatpush1.bf16.xpose.msra.mxu0 0
    %418 = vmatprep.subr.bf16.mxu0 0
    %419 = vmatpush1.bf16.xpose.msra.mxu0 0
    %420 = vmatprep.subr.bf16.mxu0 0
    %421 = vmatpush1.bf16.xpose.msra.mxu0 0
    %422 = vmatprep.subr.bf16.mxu0 0
    %423 = vmatpush1.bf16.xpose.msra.mxu0 0
    %424 = vmatprep.subr.bf16.mxu0 0
    %425 = vmatpush1.bf16.xpose.msra.mxu0 0
    %426 = vmatprep.subr.bf16.mxu0 0
    %427 = vmatpush1.bf16.xpose.msra.mxu0 0
    %428 = vmatprep.subr.bf16.mxu0 0
    %429 = vmatpush1.bf16.xpose.msra.mxu0 0
    %430 = vmatprep.mubr.bf16.mxu0 0
    %431 = vmatmul.mubr.bf16.gmra.mrb[0].mxu0 %v387
    %v432 = vpop.f32.mrb[0].mxu0
    %v433 = vadd.f32 0.0, %v432
    %v434 = vpop.f32.mrb[0].mxu0
    %v435 = vpop.f32.mrb[0].mxu0
    %v436 = vadd.f32 0.0, %v435
    %v437 = vpop.f32.mrb[0].mxu0
    %438 = vmatprep.mubr.bf16.mxu0 0
    %439 = vmatmul.mubr.bf16.gmra.mrb[0].mxu0 %v390
    %v440 = vpop.f32.mrb[0].mxu0
    %v441 = vadd.f32 0.0, %v440
    %v442 = vpop.f32.mrb[0].mxu0
    %v443 = vpop.f32.mrb[0].mxu0
    %v444 = vpop.f32.mrb[0].mxu0
    %445 = vdwg.mxu0
    %448 = vrot.lane.b32.xlu0 %v377, 96
    %v449 = vpop.permute.xlu0 %448
    %450 = vrot.lane.b32.xlu0 %v378, 96
    %v451 = vpop.permute.xlu0 %450
    %v453 = vsel %vm385, %v377, 0
    %v456 = vsel %vm385, %v378, 0
    %v459 = vsel %vm385, %v449, 0
    %v462 = vsel %vm385, %v451, 0
    %464 = vmatprep.subr.bf16.mxu0 0
    %465 = vmatpush1.bf16.xpose.msra.mxu0 %v459
    %466 = vmatprep.subr.bf16.mxu0 0
    %467 = vmatpush1.bf16.xpose.msra.mxu0 %v462
    %468 = vmatprep.subr.bf16.mxu0 0
    %469 = vmatpush1.bf16.xpose.msra.mxu0 0
    %470 = vmatprep.subr.bf16.mxu0 0
    %471 = vmatpush1.bf16.xpose.msra.mxu0 0
    %472 = vmatprep.subr.bf16.mxu0 0
    %473 = vmatpush1.bf16.xpose.msra.mxu0 0
    %474 = vmatprep.subr.bf16.mxu0 0
    %475 = vmatpush1.bf16.xpose.msra.mxu0 0
    %476 = vmatprep.subr.bf16.mxu0 0
    %477 = vmatpush1.bf16.xpose.msra.mxu0 0
    %478 = vmatprep.subr.bf16.mxu0 0
    %479 = vmatpush1.bf16.xpose.msra.mxu0 0
    %480 = vmatprep.subr.bf16.mxu0 0
    %481 = vmatpush1.bf16.xpose.msra.mxu0 0
    %482 = vmatprep.subr.bf16.mxu0 0
    %483 = vmatpush1.bf16.xpose.msra.mxu0 0
    %484 = vmatprep.subr.bf16.mxu0 0
    %485 = vmatpush1.bf16.xpose.msra.mxu0 0
    %486 = vmatprep.subr.bf16.mxu0 0
    %487 = vmatpush1.bf16.xpose.msra.mxu0 0
    %488 = vmatprep.subr.bf16.mxu0 0
    %489 = vmatpush1.bf16.xpose.msra.mxu0 0
    %490 = vmatprep.subr.bf16.mxu0 0
    %491 = vmatpush1.bf16.xpose.msra.mxu0 0
    %492 = vmatprep.subr.bf16.mxu0 0
    %493 = vmatpush1.bf16.xpose.msra.mxu0 0
    %494 = vmatprep.subr.bf16.mxu0 0
    %495 = vmatpush1.bf16.xpose.msra.mxu0 0
    %496 = vmatprep.mubr.bf16.mxu0 0
    %497 = vmatmul.mubr.bf16.gmra.mrb[0].mxu0 %v453
    %v498 = vpop.f32.mrb[0].mxu0
    %v499 = vadd.f32 0.0, %v498
    %v500 = vpop.f32.mrb[0].mxu0
    %v501 = vpop.f32.mrb[0].mxu0
    %v502 = vadd.f32 0.0, %v501
    %v503 = vpop.f32.mrb[0].mxu0
    %504 = vmatprep.mubr.bf16.mxu0 0
    %505 = vmatmul.mubr.bf16.gmra.mrb[0].mxu0 %v456
    %v506 = vpop.f32.mrb[0].mxu0
    %v507 = vadd.f32 0.0, %v506
    %v508 = vpop.f32.mrb[0].mxu0
    %v509 = vpop.f32.mrb[0].mxu0
    %v510 = vpop.f32.mrb[0].mxu0
    %511 = vdwg.mxu0
    %v512 = vmul.f32 %v433, 0.35355338
    %v513 = vmul.f32 %v436, 0.35355338
    %v514 = vmul.f32 %v441, 0.35355338
    %v515 = vmul.f32 %v499, 0.35355338
    %v516 = vmul.f32 %v502, 0.35355338
    %v517 = vmul.f32 %v507, 0.35355338
    %v518 = vsel %vm183, 1, 0
    %vm519 = vcmp.eq.s32.totalorder %v518, 1
    %v520 = vsel %vm519, %v512, -1e+30
    %v521 = vsel %vm519, %v513, -1e+30
    %v522 = vsel %vm519, %v514, -1e+30
    %v523 = vsel %vm519, %v515, -1e+30
    %v524 = vsel %vm519, %v516, -1e+30
    %v525 = vsel %vm519, %v517, -1e+30
    %vm526 = vcmask 195584
    %v527 = vsel %vm526, %v520, -inf
    %528 = vmax.xlane.f32.xlu0 %v527
    %v529 = vpop.xlane.xlu0 %528
    %v530 = vsel %vm526, %v521, -inf
    %531 = vmax.xlane.f32.xlu0 %v530
    %v532 = vpop.xlane.xlu0 %531
    %v533 = vsel %vm526, %v522, -inf
    %534 = vmax.xlane.f32.xlu0 %v533
    %v535 = vpop.xlane.xlu0 %534
    %v536 = vsel %vm526, %v523, -inf
    %537 = vmax.xlane.f32.xlu0 %v536
    %v538 = vpop.xlane.xlu0 %537
    %v539 = vsel %vm526, %v524, -inf
    %540 = vmax.xlane.f32.xlu0 %v539
    %v541 = vpop.xlane.xlu0 %540
    %v542 = vsel %vm526, %v525, -inf
    %543 = vmax.xlane.f32.xlu0 %v542
    %v544 = vpop.xlane.xlu0 %543
    %v545 = vsub.f32 %v520, %v529
    %v546 = vsub.f32 %v521, %v532
    %v547 = vsub.f32 %v522, %v535
    %v548 = vsub.f32 %v523, %v538
    %v549 = vsub.f32 %v524, %v541
    %v550 = vsub.f32 %v525, %v544
    %v551 = vmul.f32 %v545, 1.442695
    %v552 = vpow.pop %v551
    %v553 = vmul.f32 %v546, 1.442695
    %v554 = vpow.pop %v553
    %v555 = vmul.f32 %v547, 1.442695
    %v556 = vpow.pop %v555
    %v557 = vmul.f32 %v548, 1.442695
    %v558 = vpow.pop %v557
    %v559 = vmul.f32 %v549, 1.442695
    %v560 = vpow.pop %v559
    %v561 = vmul.f32 %v550, 1.442695
    %v562 = vpow.pop %v561
    %v563 = vsel %vm526, %v552, 0.0
    %564 = vadd.xlane.f32.xlu0 %v563
    %v565 = vpop.xlane.xlu0 %564
    %v566 = vsel %vm526, %v554, 0.0
    %567 = vadd.xlane.f32.xlu0 %v566
    %v568 = vpop.xlane.xlu0 %567
    %v569 = vsel %vm526, %v556, 0.0
    %570 = vadd.xlane.f32.xlu0 %v569
    %v571 = vpop.xlane.xlu0 %570
    %v572 = vsel %vm526, %v558, 0.0
    %573 = vadd.xlane.f32.xlu0 %v572
    %v574 = vpop.xlane.xlu0 %573
    %v575 = vsel %vm526, %v560, 0.0
    %576 = vadd.xlane.f32.xlu0 %v575
    %v577 = vpop.xlane.xlu0 %576
    %v578 = vsel %vm526, %v562, 0.0
    %579 = vadd.xlane.f32.xlu0 %v578
    %v580 = vpop.xlane.xlu0 %579
    %v581 = vrcp.pop %v565
    %v582 = vmul.f32 %v552, %v581
    %v583 = vrcp.pop %v568
    %v584 = vmul.f32 %v554, %v583
    %v585 = vrcp.pop %v571
    %v586 = vmul.f32 %v556, %v585
    %v587 = vrcp.pop %v574
    %v588 = vmul.f32 %v558, %v587
    %v589 = vrcp.pop %v577
    %v590 = vmul.f32 %v560, %v589
    %v591 = vrcp.pop %v580
    %v592 = vmul.f32 %v562, %v591
    %v593 = vpack.c.bf16 %v584, %v582
    %v594 = vpack.c.bf16 %v586, %v586
    %v595 = vpack.c.bf16 %v590, %v588
    %v596 = vpack.c.bf16 %v592, %v592
    %597 = vrot.lane.b32.xlu0 %v375, 64
    %v598 = vpop.permute.xlu0 %597
    %599 = vrot.lane.b32.xlu0 %v376, 64
    %v600 = vpop.permute.xlu0 %599
    %v603 = vsel %vm526, %v593, 0
    %v606 = vsel %vm526, %v594, 0
    %vm608 = vcmask 1043456
    %v610 = vsel %vm608, %v600, 0
    %612 = vmatprep.subr.bf16.mxu0 0
    %613 = vmatpush1.bf16.msra.mxu0 %v598
    %614 = vmatprep.subr.bf16.mxu0 0
    %615 = vmatpush1.bf16.msra.mxu0 %v610
    %616 = vmatprep.subr.bf16.mxu0 0
    %617 = vmatpush1.bf16.msra.mxu0 0
    %618 = vmatprep.subr.bf16.mxu0 0
    %619 = vmatpush1.bf16.msra.mxu0 0
    %620 = vmatprep.subr.bf16.mxu0 0
    %621 = vmatpush1.bf16.msra.mxu0 0
    %622 = vmatprep.subr.bf16.mxu0 0
    %623 = vmatpush1.bf16.msra.mxu0 0
    %624 = vmatprep.subr.bf16.mxu0 0
    %625 = vmatpush1.bf16.msra.mxu0 0
    %626 = vmatprep.subr.bf16.mxu0 0
    %627 = vmatpush1.bf16.msra.mxu0 0
    %628 = vmatprep.subr.bf16.mxu0 0
    %629 = vmatpush1.bf16.msra.mxu0 0
    %630 = vmatprep.subr.bf16.mxu0 0
    %631 = vmatpush1.bf16.msra.mxu0 0
    %632 = vmatprep.subr.bf16.mxu0 0
    %633 = vmatpush1.bf16.msra.mxu0 0
    %634 = vmatprep.subr.bf16.mxu0 0
    %635 = vmatpush1.bf16.msra.mxu0 0
    %636 = vmatprep.subr.bf16.mxu0 0
    %637 = vmatpush1.bf16.msra.mxu0 0
    %638 = vmatprep.subr.bf16.mxu0 0
    %639 = vmatpush1.bf16.msra.mxu0 0
    %640 = vmatprep.subr.bf16.mxu0 0
    %641 = vmatpush1.bf16.msra.mxu0 0
    %642 = vmatprep.subr.bf16.mxu0 0
    %643 = vmatpush1.bf16.msra.mxu0 0
    %644 = vmatprep.mubr.bf16.mxu0 0
    %645 = vmatmul.mubr.bf16.gmra.mrb[0].mxu0 %v603
    %v646 = vpop.f32.mrb[0].mxu0
    %v647 = vadd.f32 0.0, %v646
    %v648 = vpop.f32.mrb[0].mxu0
    %v649 = vpop.f32.mrb[0].mxu0
    %v650 = vadd.f32 0.0, %v649
    %v651 = vpop.f32.mrb[0].mxu0
    %652 = vmatprep.mubr.bf16.mxu0 0
    %653 = vmatmul.mubr.bf16.gmra.mrb[0].mxu0 %v606
    %v654 = vpop.f32.mrb[0].mxu0
    %v655 = vadd.f32 0.0, %v654
    %v656 = vpop.f32.mrb[0].mxu0
    %v657 = vpop.f32.mrb[0].mxu0
    %v658 = vpop.f32.mrb[0].mxu0
    %659 = vdwg.mxu0
    %660 = vrot.lane.b32.xlu0 %v377, 64
    %v661 = vpop.permute.xlu0 %660
    %662 = vrot.lane.b32.xlu0 %v378, 64
    %v663 = vpop.permute.xlu0 %662
    %v666 = vsel %vm526, %v595, 0
    %v669 = vsel %vm526, %v596, 0
    %v672 = vsel %vm608, %v663, 0
    %674 = vmatprep.subr.bf16.mxu0 0
    %675 = vmatpush1.bf16.msra.mxu0 %v661
    %676 = vmatprep.subr.bf16.mxu0 0
    %677 = vmatpush1.bf16.msra.mxu0 %v672
    %678 = vmatprep.subr.bf16.mxu0 0
    %679 = vmatpush1.bf16.msra.mxu0 0
    %680 = vmatprep.subr.bf16.mxu0 0
    %681 = vmatpush1.bf16.msra.mxu0 0
    %682 = vmatprep.subr.bf16.mxu0 0
    %683 = vmatpush1.bf16.msra.mxu0 0
    %684 = vmatprep.subr.bf16.mxu0 0
    %685 = vmatpush1.bf16.msra.mxu0 0
    %686 = vmatprep.subr.bf16.mxu0 0
    %687 = vmatpush1.bf16.msra.mxu0 0
    %688 = vmatprep.subr.bf16.mxu0 0
    %689 = vmatpush1.bf16.msra.mxu0 0
    %690 = vmatprep.subr.bf16.mxu0 0
    %691 = vmatpush1.bf16.msra.mxu0 0
    %692 = vmatprep.subr.bf16.mxu0 0
    %693 = vmatpush1.bf16.msra.mxu0 0
    %694 = vmatprep.subr.bf16.mxu0 0
    %695 = vmatpush1.bf16.msra.mxu0 0
    %696 = vmatprep.subr.bf16.mxu0 0
    %697 = vmatpush1.bf16.msra.mxu0 0
    %698 = vmatprep.subr.bf16.mxu0 0
    %699 = vmatpush1.bf16.msra.mxu0 0
    %700 = vmatprep.subr.bf16.mxu0 0
    %701 = vmatpush1.bf16.msra.mxu0 0
    %702 = vmatprep.subr.bf16.mxu0 0
    %703 = vmatpush1.bf16.msra.mxu0 0
    %704 = vmatprep.subr.bf16.mxu0 0
    %705 = vmatpush1.bf16.msra.mxu0 0
    %706 = vmatprep.mubr.bf16.mxu0 0
    %707 = vmatmul.mubr.bf16.gmra.mrb[0].mxu0 %v666
    %v708 = vpop.f32.mrb[0].mxu0
    %v709 = vadd.f32 0.0, %v708
    %v710 = vpop.f32.mrb[0].mxu0
    %v711 = vpop.f32.mrb[0].mxu0
    %v712 = vadd.f32 0.0, %v711
    %v713 = vpop.f32.mrb[0].mxu0
    %714 = vmatprep.mubr.bf16.mxu0 0
    %715 = vmatmul.mubr.bf16.gmra.mrb[0].mxu0 %v669
    %v716 = vpop.f32.mrb[0].mxu0
    %v717 = vadd.f32 0.0, %v716
    %v718 = vpop.f32.mrb[0].mxu0
    %v719 = vpop.f32.mrb[0].mxu0
    %v720 = vpop.f32.mrb[0].mxu0
    %721 = vdwg.mxu0
    %v722 = vpack.c.bf16 %v650, %v647
    %v723 = vpack.c.bf16 %v709, %v655
    %v724 = vpack.c.bf16 %v717, %v712
    %v725 = vpack.c.bf16 %v371, %v371
    %726 = vrot.lane.b32.xlu0 %v375, 120
    %v727 = vpop.permute.xlu0 %726
    %728 = vrot.lane.b32.xlu0 %v376, 120
    %v729 = vpop.permute.xlu0 %728
    %730 = vrot.lane.b32.xlu0 %v375, 88
    %v731 = vpop.permute.xlu0 %730
    %732 = vrot.lane.b32.xlu0 %v376, 88
    %v733 = vpop.permute.xlu0 %732
    %v735 = vsel %vm385, %v727, 0
    %v738 = vsel %vm385, %v729, 0
    %v741 = vsel %vm385, %v731, 0
    %v744 = vsel %vm385, %v733, 0
    %746 = vmatprep.subr.bf16.mxu0 0
    %747 = vmatpush1.bf16.xpose.msra.mxu0 %v741
    %748 = vmatprep.subr.bf16.mxu0 0
    %749 = vmatpush1.bf16.xpose.msra.mxu0 %v744
    %750 = vmatprep.subr.bf16.mxu0 0
    %751 = vmatpush1.bf16.xpose.msra.mxu0 0
    %752 = vmatprep.subr.bf16.mxu0 0
    %753 = vmatpush1.bf16.xpose.msra.mxu0 0
    %754 = vmatprep.subr.bf16.mxu0 0
    %755 = vmatpush1.bf16.xpose.msra.mxu0 0
    %756 = vmatprep.subr.bf16.mxu0 0
    %757 = vmatpush1.bf16.xpose.msra.mxu0 0
    %758 = vmatprep.subr.bf16.mxu0 0
    %759 = vmatpush1.bf16.xpose.msra.mxu0 0
    %760 = vmatprep.subr.bf16.mxu0 0
    %761 = vmatpush1.bf16.xpose.msra.mxu0 0
    %762 = vmatprep.subr.bf16.mxu0 0
    %763 = vmatpush1.bf16.xpose.msra.mxu0 0
    %764 = vmatprep.subr.bf16.mxu0 0
    %765 = vmatpush1.bf16.xpose.msra.mxu0 0
    %766 = vmatprep.subr.bf16.mxu0 0
    %767 = vmatpush1.bf16.xpose.msra.mxu0 0
    %768 = vmatprep.subr.bf16.mxu0 0
    %769 = vmatpush1.bf16.xpose.msra.mxu0 0
    %770 = vmatprep.subr.bf16.mxu0 0
    %771 = vmatpush1.bf16.xpose.msra.mxu0 0
    %772 = vmatprep.subr.bf16.mxu0 0
    %773 = vmatpush1.bf16.xpose.msra.mxu0 0
    %774 = vmatprep.subr.bf16.mxu0 0
    %775 = vmatpush1.bf16.xpose.msra.mxu0 0
    %776 = vmatprep.subr.bf16.mxu0 0
    %777 = vmatpush1.bf16.xpose.msra.mxu0 0
    %778 = vmatprep.mubr.bf16.mxu0 0
    %779 = vmatmul.mubr.bf16.gmra.mrb[0].mxu0 %v735
    %v780 = vpop.f32.mrb[0].mxu0
    %v781 = vadd.f32 0.0, %v780
    %v782 = vpop.f32.mrb[0].mxu0
    %v783 = vpop.f32.mrb[0].mxu0
    %v784 = vadd.f32 0.0, %v783
    %v785 = vpop.f32.mrb[0].mxu0
    %786 = vmatprep.mubr.bf16.mxu0 0
    %787 = vmatmul.mubr.bf16.gmra.mrb[0].mxu0 %v738
    %v788 = vpop.f32.mrb[0].mxu0
    %v789 = vadd.f32 0.0, %v788
    %v790 = vpop.f32.mrb[0].mxu0
    %v791 = vpop.f32.mrb[0].mxu0
    %v792 = vpop.f32.mrb[0].mxu0
    %793 = vdwg.mxu0
    %794 = vrot.lane.b32.xlu0 %v377, 120
    %v795 = vpop.permute.xlu0 %794
    %796 = vrot.lane.b32.xlu0 %v378, 120
    %v797 = vpop.permute.xlu0 %796
    %798 = vrot.lane.b32.xlu0 %v377, 88
    %v799 = vpop.permute.xlu0 %798
    %800 = vrot.lane.b32.xlu0 %v378, 88
    %v801 = vpop.permute.xlu0 %800
    %v803 = vsel %vm385, %v795, 0
    %v806 = vsel %vm385, %v797, 0
    %v809 = vsel %vm385, %v799, 0
    %v812 = vsel %vm385, %v801, 0
    %814 = vmatprep.subr.bf16.mxu0 0
    %815 = vmatpush1.bf16.xpose.msra.mxu0 %v809
    %816 = vmatprep.subr.bf16.mxu0 0
    %817 = vmatpush1.bf16.xpose.msra.mxu0 %v812
    %818 = vmatprep.subr.bf16.mxu0 0
    %819 = vmatpush1.bf16.xpose.msra.mxu0 0
    %820 = vmatprep.subr.bf16.mxu0 0
    %821 = vmatpush1.bf16.xpose.msra.mxu0 0
    %822 = vmatprep.subr.bf16.mxu0 0
    %823 = vmatpush1.bf16.xpose.msra.mxu0 0
    %824 = vmatprep.subr.bf16.mxu0 0
    %825 = vmatpush1.bf16.xpose.msra.mxu0 0
    %826 = vmatprep.subr.bf16.mxu0 0
    %827 = vmatpush1.bf16.xpose.msra.mxu0 0
    %828 = vmatprep.subr.bf16.mxu0 0
    %829 = vmatpush1.bf16.xpose.msra.mxu0 0
    %830 = vmatprep.subr.bf16.mxu0 0
    %831 = vmatpush1.bf16.xpose.msra.mxu0 0
    %832 = vmatprep.subr.bf16.mxu0 0
    %833 = vmatpush1.bf16.xpose.msra.mxu0 0
    %834 = vmatprep.subr.bf16.mxu0 0
    %835 = vmatpush1.bf16.xpose.msra.mxu0 0
    %836 = vmatprep.subr.bf16.mxu0 0
    %837 = vmatpush1.bf16.xpose.msra.mxu0 0
    %838 = vmatprep.subr.bf16.mxu0 0
    %839 = vmatpush1.bf16.xpose.msra.mxu0 0
    %840 = vmatprep.subr.bf16.mxu0 0
    %841 = vmatpush1.bf16.xpose.msra.mxu0 0
    %842 = vmatprep.subr.bf16.mxu0 0
    %843 = vmatpush1.bf16.xpose.msra.mxu0 0
    %844 = vmatprep.subr.bf16.mxu0 0
    %845 = vmatpush1.bf16.xpose.msra.mxu0 0
    %846 = vmatprep.mubr.bf16.mxu0 0
    %847 = vmatmul.mubr.bf16.gmra.mrb[0].mxu0 %v803
    %v848 = vpop.f32.mrb[0].mxu0
    %v849 = vadd.f32 0.0, %v848
    %v850 = vpop.f32.mrb[0].mxu0
    %v851 = vpop.f32.mrb[0].mxu0
    %v852 = vadd.f32 0.0, %v851
    %v853 = vpop.f32.mrb[0].mxu0
    %854 = vmatprep.mubr.bf16.mxu0 0
    %855 = vmatmul.mubr.bf16.gmra.mrb[0].mxu0 %v806
    %v856 = vpop.f32.mrb[0].mxu0
    %v857 = vadd.f32 0.0, %v856
    %v858 = vpop.f32.mrb[0].mxu0
    %v859 = vpop.f32.mrb[0].mxu0
    %v860 = vpop.f32.mrb[0].mxu0
    %861 = vdwg.mxu0
    %v862 = vmul.f32 %v781, 0.35355338
    %v863 = vmul.f32 %v784, 0.35355338
    %v864 = vmul.f32 %v789, 0.35355338
    %v865 = vmul.f32 %v849, 0.35355338
    %v866 = vmul.f32 %v852, 0.35355338
    %v867 = vmul.f32 %v857, 0.35355338
    %v868 = vsel %vm519, %v862, -1e+30
    %v869 = vsel %vm519, %v863, -1e+30
    %v870 = vsel %vm519, %v864, -1e+30
    %v871 = vsel %vm519, %v865, -1e+30
    %v872 = vsel %vm519, %v866, -1e+30
    %v873 = vsel %vm519, %v867, -1e+30
    %v874 = vsel %vm526, %v868, -inf
    %875 = vmax.xlane.f32.xlu0 %v874
    %v876 = vpop.xlane.xlu0 %875
    %v877 = vsel %vm526, %v869, -inf
    %878 = vmax.xlane.f32.xlu0 %v877
    %v879 = vpop.xlane.xlu0 %878
    %v880 = vsel %vm526, %v870, -inf
    %881 = vmax.xlane.f32.xlu0 %v880
    %v882 = vpop.xlane.xlu0 %881
    %v883 = vsel %vm526, %v871, -inf
    %884 = vmax.xlane.f32.xlu0 %v883
    %v885 = vpop.xlane.xlu0 %884
    %v886 = vsel %vm526, %v872, -inf
    %887 = vmax.xlane.f32.xlu0 %v886
    %v888 = vpop.xlane.xlu0 %887
    %v889 = vsel %vm526, %v873, -inf
    %890 = vmax.xlane.f32.xlu0 %v889
    %v891 = vpop.xlane.xlu0 %890
    %v892 = vsub.f32 %v868, %v876
    %v893 = vsub.f32 %v869, %v879
    %v894 = vsub.f32 %v870, %v882
    %v895 = vsub.f32 %v871, %v885
    %v896 = vsub.f32 %v872, %v888
    %v897 = vsub.f32 %v873, %v891
    %v898 = vmul.f32 %v892, 1.442695
    %v899 = vpow.pop %v898
    %v900 = vmul.f32 %v893, 1.442695
    %v901 = vpow.pop %v900
    %v902 = vmul.f32 %v894, 1.442695
    %v903 = vpow.pop %v902
    %v904 = vmul.f32 %v895, 1.442695
    %v905 = vpow.pop %v904
    %v906 = vmul.f32 %v896, 1.442695
    %v907 = vpow.pop %v906
    %v908 = vmul.f32 %v897, 1.442695
    %v909 = vpow.pop %v908
    %v910 = vsel %vm526, %v899, 0.0
    %911 = vadd.xlane.f32.xlu0 %v910
    %v912 = vpop.xlane.xlu0 %911
    %v913 = vsel %vm526, %v901, 0.0
    %914 = vadd.xlane.f32.xlu0 %v913
    %v915 = vpop.xlane.xlu0 %914
    %v916 = vsel %vm526, %v903, 0.0
    %917 = vadd.xlane.f32.xlu0 %v916
    %v918 = vpop.xlane.xlu0 %917
    %v919 = vsel %vm526, %v905, 0.0
    %920 = vadd.xlane.f32.xlu0 %v919
    %v921 = vpop.xlane.xlu0 %920
    %v922 = vsel %vm526, %v907, 0.0
    %923 = vadd.xlane.f32.xlu0 %v922
    %v924 = vpop.xlane.xlu0 %923
    %v925 = vsel %vm526, %v909, 0.0
    %926 = vadd.xlane.f32.xlu0 %v925
    %v927 = vpop.xlane.xlu0 %926
    %v928 = vrcp.pop %v912
    %v929 = vmul.f32 %v899, %v928
    %v930 = vrcp.pop %v915
    %v931 = vmul.f32 %v901, %v930
    %v932 = vrcp.pop %v918
    %v933 = vmul.f32 %v903, %v932
    %v934 = vrcp.pop %v921
    %v935 = vmul.f32 %v905, %v934
    %v936 = vrcp.pop %v924
    %v937 = vmul.f32 %v907, %v936
    %v938 = vrcp.pop %v927
    %v939 = vmul.f32 %v909, %v938
    %v940 = vpack.c.bf16 %v931, %v929
    %v941 = vpack.c.bf16 %v933, %v933
    %v942 = vpack.c.bf16 %v937, %v935
    %v943 = vpack.c.bf16 %v939, %v939
    %944 = vrot.lane.b32.xlu0 %v375, 56
    %v945 = vpop.permute.xlu0 %944
    %946 = vrot.lane.b32.xlu0 %v376, 56
    %v947 = vpop.permute.xlu0 %946
    %v950 = vsel %vm526, %v940, 0
    %v953 = vsel %vm526, %v941, 0
    %v956 = vsel %vm608, %v947, 0
    %958 = vmatprep.subr.bf16.mxu0 0
    %959 = vmatpush1.bf16.msra.mxu0 %v945
    %960 = vmatprep.subr.bf16.mxu0 0
    %961 = vmatpush1.bf16.msra.mxu0 %v956
    %962 = vmatprep.subr.bf16.mxu0 0
    %963 = vmatpush1.bf16.msra.mxu0 0
    %964 = vmatprep.subr.bf16.mxu0 0
    %965 = vmatpush1.bf16.msra.mxu0 0
    %966 = vmatprep.subr.bf16.mxu0 0
    %967 = vmatpush1.bf16.msra.mxu0 0
    %968 = vmatprep.subr.bf16.mxu0 0
    %969 = vmatpush1.bf16.msra.mxu0 0
    %970 = vmatprep.subr.bf16.mxu0 0
    %971 = vmatpush1.bf16.msra.mxu0 0
    %972 = vmatprep.subr.bf16.mxu0 0
    %973 = vmatpush1.bf16.msra.mxu0 0
    %974 = vmatprep.subr.bf16.mxu0 0
    %975 = vmatpush1.bf16.msra.mxu0 0
    %976 = vmatprep.subr.bf16.mxu0 0
    %977 = vmatpush1.bf16.msra.mxu0 0
    %978 = vmatprep.subr.bf16.mxu0 0
    %979 = vmatpush1.bf16.msra.mxu0 0
    %980 = vmatprep.subr.bf16.mxu0 0
    %981 = vmatpush1.bf16.msra.mxu0 0
    %982 = vmatprep.subr.bf16.mxu0 0
    %983 = vmatpush1.bf16.msra.mxu0 0
    %984 = vmatprep.subr.bf16.mxu0 0
    %985 = vmatpush1.bf16.msra.mxu0 0
    %986 = vmatprep.subr.bf16.mxu0 0
    %987 = vmatpush1.bf16.msra.mxu0 0
    %988 = vmatprep.subr.bf16.mxu0 0
    %989 = vmatpush1.bf16.msra.mxu0 0
    %990 = vmatprep.mubr.bf16.mxu0 0
    %991 = vmatmul.mubr.bf16.gmra.mrb[0].mxu0 %v950
    %v992 = vpop.f32.mrb[0].mxu0
    %v993 = vadd.f32 0.0, %v992
    %v994 = vpop.f32.mrb[0].mxu0
    %v995 = vpop.f32.mrb[0].mxu0
    %v996 = vadd.f32 0.0, %v995
    %v997 = vpop.f32.mrb[0].mxu0
    %998 = vmatprep.mubr.bf16.mxu0 0
    %999 = vmatmul.mubr.bf16.gmra.mrb[0].mxu0 %v953
    %v1000 = vpop.f32.mrb[0].mxu0
    %v1001 = vadd.f32 0.0, %v1000
    %v1002 = vpop.f32.mrb[0].mxu0
    %v1003 = vpop.f32.mrb[0].mxu0
    %v1004 = vpop.f32.mrb[0].mxu0
    %1005 = vdwg.mxu0
    %1006 = vrot.lane.b32.xlu0 %v377, 56
    %v1007 = vpop.permute.xlu0 %1006
    %1008 = vrot.lane.b32.xlu0 %v378, 56
    %v1009 = vpop.permute.xlu0 %1008
    %v1012 = vsel %vm526, %v942, 0
    %v1015 = vsel %vm526, %v943, 0
    %v1018 = vsel %vm608, %v1009, 0
    %1020 = vmatprep.subr.bf16.mxu0 0
    %1021 = vmatpush1.bf16.msra.mxu0 %v1007
    %1022 = vmatprep.subr.bf16.mxu0 0
    %1023 = vmatpush1.bf16.msra.mxu0 %v1018
    %1024 = vmatprep.subr.bf16.mxu0 0
    %1025 = vmatpush1.bf16.msra.mxu0 0
    %1026 = vmatprep.subr.bf16.mxu0 0
    %1027 = vmatpush1.bf16.msra.mxu0 0
    %1028 = vmatprep.subr.bf16.mxu0 0
    %1029 = vmatpush1.bf16.msra.mxu0 0
    %1030 = vmatprep.subr.bf16.mxu0 0
    %1031 = vmatpush1.bf16.msra.mxu0 0
    %1032 = vmatprep.subr.bf16.mxu0 0
    %1033 = vmatpush1.bf16.msra.mxu0 0
    %1034 = vmatprep.subr.bf16.mxu0 0
    %1035 = vmatpush1.bf16.msra.mxu0 0
    %1036 = vmatprep.subr.bf16.mxu0 0
    %1037 = vmatpush1.bf16.msra.mxu0 0
    %1038 = vmatprep.subr.bf16.mxu0 0
    %1039 = vmatpush1.bf16.msra.mxu0 0
    %1040 = vmatprep.subr.bf16.mxu0 0
    %1041 = vmatpush1.bf16.msra.mxu0 0
    %1042 = vmatprep.subr.bf16.mxu0 0
    %1043 = vmatpush1.bf16.msra.mxu0 0
    %1044 = vmatprep.subr.bf16.mxu0 0
    %1045 = vmatpush1.bf16.msra.mxu0 0
    %1046 = vmatprep.subr.bf16.mxu0 0
    %1047 = vmatpush1.bf16.msra.mxu0 0
    %1048 = vmatprep.subr.bf16.mxu0 0
    %1049 = vmatpush1.bf16.msra.mxu0 0
    %1050 = vmatprep.subr.bf16.mxu0 0
    %1051 = vmatpush1.bf16.msra.mxu0 0
    %1052 = vmatprep.mubr.bf16.mxu0 0
    %1053 = vmatmul.mubr.bf16.gmra.mrb[0].mxu0 %v1012
    %v1054 = vpop.f32.mrb[0].mxu0
    %v1055 = vadd.f32 0.0, %v1054
    %v1056 = vpop.f32.mrb[0].mxu0
    %v1057 = vpop.f32.mrb[0].mxu0
    %v1058 = vadd.f32 0.0, %v1057
    %v1059 = vpop.f32.mrb[0].mxu0
    %1060 = vmatprep.mubr.bf16.mxu0 0
    %1061 = vmatmul.mubr.bf16.gmra.mrb[0].mxu0 %v1015
    %v1062 = vpop.f32.mrb[0].mxu0
    %v1063 = vadd.f32 0.0, %v1062
    %v1064 = vpop.f32.mrb[0].mxu0
    %v1065 = vpop.f32.mrb[0].mxu0
    %v1066 = vpop.f32.mrb[0].mxu0
    %1067 = vdwg.mxu0
    %v1068 = vpack.c.bf16 %v996, %v993
    %v1069 = vpack.c.bf16 %v1055, %v1001
    %v1070 = vpack.c.bf16 %v1063, %v1058
    %v1071 = vpack.c.bf16 %v372, %v372
    %v1073 = vsel %vm385, %v1068, 0
    %v1076 = vsel %vm385, %v1069, 0
    %v1079 = vsel %vm385, %v1070, 0
    %v1082 = vsel %vm608, %v1071, 0
    %1084 = vmatprep.subr.bf16.mxu0 0
    %1085 = vmatpush1.bf16.msra.mxu0 %v1082
    %1086 = vmatprep.subr.bf16.mxu0 0
    %1087 = vmatpush1.bf16.msra.mxu0 0
    %1088 = vmatprep.subr.bf16.mxu0 0
    %1089 = vmatpush1.bf16.msra.mxu0 0
    %1090 = vmatprep.subr.bf16.mxu0 0
    %1091 = vmatpush1.bf16.msra.mxu0 0
    %1092 = vmatprep.subr.bf16.mxu0 0
    %1093 = vmatpush1.bf16.msra.mxu0 0
    %1094 = vmatprep.subr.bf16.mxu0 0
    %1095 = vmatpush1.bf16.msra.mxu0 0
    %1096 = vmatprep.subr.bf16.mxu0 0
    %1097 = vmatpush1.bf16.msra.mxu0 0
    %1098 = vmatprep.subr.bf16.mxu0 0
    %1099 = vmatpush1.bf16.msra.mxu0 0
    %1100 = vmatprep.subr.bf16.mxu0 0
    %1101 = vmatpush1.bf16.msra.mxu0 0
    %1102 = vmatprep.subr.bf16.mxu0 0
    %1103 = vmatpush1.bf16.msra.mxu0 0
    %1104 = vmatprep.subr.bf16.mxu0 0
    %1105 = vmatpush1.bf16.msra.mxu0 0
    %1106 = vmatprep.subr.bf16.mxu0 0
    %1107 = vmatpush1.bf16.msra.mxu0 0
    %1108 = vmatprep.subr.bf16.mxu0 0
    %1109 = vmatpush1.bf16.msra.mxu0 0
    %1110 = vmatprep.subr.bf16.mxu0 0
    %1111 = vmatpush1.bf16.msra.mxu0 0
    %1112 = vmatprep.subr.bf16.mxu0 0
    %1113 = vmatpush1.bf16.msra.mxu0 0
    %1114 = vmatprep.subr.bf16.mxu0 0
    %1115 = vmatpush1.bf16.msra.mxu0 0
    %1116 = vmatprep.mubr.bf16.mxu0 0
    %1117 = vmatmul.mubr.bf16.gmra.mrb[0].mxu0 %v1073
    %v1118 = vpop.f32.mrb[0].mxu0
    %v1119 = vadd.f32 0.0, %v1118
    %v1120 = vpop.f32.mrb[0].mxu0
    %v1121 = vpop.f32.mrb[0].mxu0
    %v1122 = vadd.f32 0.0, %v1121
    %v1123 = vpop.f32.mrb[0].mxu0
    %1124 = vmatprep.mubr.bf16.mxu0 0
    %1125 = vmatmul.mubr.bf16.gmra.mrb[0].mxu0 %v1076
    %v1126 = vpop.f32.mrb[0].mxu0
    %v1127 = vadd.f32 0.0, %v1126
    %v1128 = vpop.f32.mrb[0].mxu0
    %v1129 = vpop.f32.mrb[0].mxu0
    %v1130 = vadd.f32 0.0, %v1129
    %v1131 = vpop.f32.mrb[0].mxu0
    %1132 = vmatprep.mubr.bf16.mxu0 0
    %1133 = vmatmul.mubr.bf16.gmra.mrb[0].mxu0 %v1079
    %v1134 = vpop.f32.mrb[0].mxu0
    %v1135 = vadd.f32 0.0, %v1134
    %v1136 = vpop.f32.mrb[0].mxu0
    %v1137 = vpop.f32.mrb[0].mxu0
    %v1138 = vadd.f32 0.0, %v1137
    %v1139 = vpop.f32.mrb[0].mxu0
    %1140 = vdwg.mxu0
    %v1142 = vsel %vm385, %v722, 0
    %v1145 = vsel %vm385, %v723, 0
    %v1148 = vsel %vm385, %v724, 0
    %v1151 = vsel %vm608, %v725, 0
    %1153 = vmatprep.subr.bf16.mxu0 0
    %1154 = vmatpush1.bf16.msra.mxu0 %v1151
    %1155 = vmatprep.subr.bf16.mxu0 0
    %1156 = vmatpush1.bf16.msra.mxu0 0
    %1157 = vmatprep.subr.bf16.mxu0 0
    %1158 = vmatpush1.bf16.msra.mxu0 0
    %1159 = vmatprep.subr.bf16.mxu0 0
    %1160 = vmatpush1.bf16.msra.mxu0 0
    %1161 = vmatprep.subr.bf16.mxu0 0
    %1162 = vmatpush1.bf16.msra.mxu0 0
    %1163 = vmatprep.subr.bf16.mxu0 0
    %1164 = vmatpush1.bf16.msra.mxu0 0
    %1165 = vmatprep.subr.bf16.mxu0 0
    %1166 = vmatpush1.bf16.msra.mxu0 0
    %1167 = vmatprep.subr.bf16.mxu0 0
    %1168 = vmatpush1.bf16.msra.mxu0 0
    %1169 = vmatprep.subr.bf16.mxu0 0
    %1170 = vmatpush1.bf16.msra.mxu0 0
    %1171 = vmatprep.subr.bf16.mxu0 0
    %1172 = vmatpush1.bf16.msra.mxu0 0
    %1173 = vmatprep.subr.bf16.mxu0 0
    %1174 = vmatpush1.bf16.msra.mxu0 0
    %1175 = vmatprep.subr.bf16.mxu0 0
    %1176 = vmatpush1.bf16.msra.mxu0 0
    %1177 = vmatprep.subr.bf16.mxu0 0
    %1178 = vmatpush1.bf16.msra.mxu0 0
    %1179 = vmatprep.subr.bf16.mxu0 0
    %1180 = vmatpush1.bf16.msra.mxu0 0
    %1181 = vmatprep.subr.bf16.mxu0 0
    %1182 = vmatpush1.bf16.msra.mxu0 0
    %1183 = vmatprep.subr.bf16.mxu0 0
    %1184 = vmatpush1.bf16.msra.mxu0 0
    %1185 = vmatprep.mubr.bf16.mxu0 0
    %1186 = vmatmul.mubr.bf16.gmra.mrb[0].mxu0 %v1142
    %v1187 = vpop.f32.mrb[0].mxu0
    %v1188 = vadd.f32 %v1119, %v1187
    %v1189 = vpop.f32.mrb[0].mxu0
    %v1190 = vpop.f32.mrb[0].mxu0
    %v1191 = vadd.f32 %v1122, %v1190
    %v1192 = vpop.f32.mrb[0].mxu0
    %1193 = vmatprep.mubr.bf16.mxu0 0
    %1194 = vmatmul.mubr.bf16.gmra.mrb[0].mxu0 %v1145
    %v1195 = vpop.f32.mrb[0].mxu0
    %v1196 = vadd.f32 %v1127, %v1195
    %v1197 = vpop.f32.mrb[0].mxu0
    %v1198 = vpop.f32.mrb[0].mxu0
    %v1199 = vadd.f32 %v1130, %v1198
    %v1200 = vpop.f32.mrb[0].mxu0
    %1201 = vmatprep.mubr.bf16.mxu0 0
    %1202 = vmatmul.mubr.bf16.gmra.mrb[0].mxu0 %v1148
    %v1203 = vpop.f32.mrb[0].mxu0
    %v1204 = vadd.f32 %v1135, %v1203
    %v1205 = vpop.f32.mrb[0].mxu0
    %v1206 = vpop.f32.mrb[0].mxu0
    %v1207 = vadd.f32 %v1138, %v1206
    %v1208 = vpop.f32.mrb[0].mxu0
    %1209 = vdwg.mxu0
    %1210 = vrot.lane.b32.xlu0 %v375, 112
    %v1211 = vpop.permute.xlu0 %1210
    %1212 = vrot.lane.b32.xlu0 %v376, 112
    %v1213 = vpop.permute.xlu0 %1212
    %1214 = vrot.lane.b32.xlu0 %v375, 80
    %v1215 = vpop.permute.xlu0 %1214
    %1216 = vrot.lane.b32.xlu0 %v376, 80
    %v1217 = vpop.permute.xlu0 %1216
    %v1219 = vsel %vm385, %v1211, 0
    %v1222 = vsel %vm385, %v1213, 0
    %v1225 = vsel %vm385, %v1215, 0
    %v1228 = vsel %vm385, %v1217, 0
    %1230 = vmatprep.subr.bf16.mxu0 0
    %1231 = vmatpush1.bf16.xpose.msra.mxu0 %v1225
    %1232 = vmatprep.subr.bf16.mxu0 0
    %1233 = vmatpush1.bf16.xpose.msra.mxu0 %v1228
    %1234 = vmatprep.subr.bf16.mxu0 0
    %1235 = vmatpush1.bf16.xpose.msra.mxu0 0
    %1236 = vmatprep.subr.bf16.mxu0 0
    %1237 = vmatpush1.bf16.xpose.msra.mxu0 0
    %1238 = vmatprep.subr.bf16.mxu0 0
    %1239 = vmatpush1.bf16.xpose.msra.mxu0 0
    %1240 = vmatprep.subr.bf16.mxu0 0
    %1241 = vmatpush1.bf16.xpose.msra.mxu0 0
    %1242 = vmatprep.subr.bf16.mxu0 0
    %1243 = vmatpush1.bf16.xpose.msra.mxu0 0
    %1244 = vmatprep.subr.bf16.mxu0 0
    %1245 = vmatpush1.bf16.xpose.msra.mxu0 0
    %1246 = vmatprep.subr.bf16.mxu0 0
    %1247 = vmatpush1.bf16.xpose.msra.mxu0 0
    %1248 = vmatprep.subr.bf16.mxu0 0
    %1249 = vmatpush1.bf16.xpose.msra.mxu0 0
    %1250 = vmatprep.subr.bf16.mxu0 0
    %1251 = vmatpush1.bf16.xpose.msra.mxu0 0
    %1252 = vmatprep.subr.bf16.mxu0 0
    %1253 = vmatpush1.bf16.xpose.msra.mxu0 0
    %1254 = vmatprep.subr.bf16.mxu0 0
    %1255 = vmatpush1.bf16.xpose.msra.mxu0 0
    %1256 = vmatprep.subr.bf16.mxu0 0
    %1257 = vmatpush1.bf16.xpose.msra.mxu0 0
    %1258 = vmatprep.subr.bf16.mxu0 0
    %1259 = vmatpush1.bf16.xpose.msra.mxu0 0
    %1260 = vmatprep.subr.bf16.mxu0 0
    %1261 = vmatpush1.bf16.xpose.msra.mxu0 0
    %1262 = vmatprep.mubr.bf16.mxu0 0
    %1263 = vmatmul.mubr.bf16.gmra.mrb[0].mxu0 %v1219
    %v1264 = vpop.f32.mrb[0].mxu0
    %v1265 = vadd.f32 0.0, %v1264
    %v1266 = vpop.f32.mrb[0].mxu0
    %v1267 = vpop.f32.mrb[0].mxu0
    %v1268 = vadd.f32 0.0, %v1267
    %v1269 = vpop.f32.mrb[0].mxu0
    %1270 = vmatprep.mubr.bf16.mxu0 0
    %1271 = vmatmul.mubr.bf16.gmra.mrb[0].mxu0 %v1222
    %v1272 = vpop.f32.mrb[0].mxu0
    %v1273 = vadd.f32 0.0, %v1272
    %v1274 = vpop.f32.mrb[0].mxu0
    %v1275 = vpop.f32.mrb[0].mxu0
    %v1276 = vpop.f32.mrb[0].mxu0
    %1277 = vdwg.mxu0
    %1278 = vrot.lane.b32.xlu0 %v377, 112
    %v1279 = vpop.permute.xlu0 %1278
    %1280 = vrot.lane.b32.xlu0 %v378, 112
    %v1281 = vpop.permute.xlu0 %1280
    %1282 = vrot.lane.b32.xlu0 %v377, 80
    %v1283 = vpop.permute.xlu0 %1282
    %1284 = vrot.lane.b32.xlu0 %v378, 80
    %v1285 = vpop.permute.xlu0 %1284
    %v1287 = vsel %vm385, %v1279, 0
    %v1290 = vsel %vm385, %v1281, 0
    %v1293 = vsel %vm385, %v1283, 0
    %v1296 = vsel %vm385, %v1285, 0
    %1298 = vmatprep.subr.bf16.mxu0 0
    %1299 = vmatpush1.bf16.xpose.msra.mxu0 %v1293
    %1300 = vmatprep.subr.bf16.mxu0 0
    %1301 = vmatpush1.bf16.xpose.msra.mxu0 %v1296
    %1302 = vmatprep.subr.bf16.mxu0 0
    %1303 = vmatpush1.bf16.xpose.msra.mxu0 0
    %1304 = vmatprep.subr.bf16.mxu0 0
    %1305 = vmatpush1.bf16.xpose.msra.mxu0 0
    %1306 = vmatprep.subr.bf16.mxu0 0
    %1307 = vmatpush1.bf16.xpose.msra.mxu0 0
    %1308 = vmatprep.subr.bf16.mxu0 0
    %1309 = vmatpush1.bf16.xpose.msra.mxu0 0
    %1310 = vmatprep.subr.bf16.mxu0 0
    %1311 = vmatpush1.bf16.xpose.msra.mxu0 0
    %1312 = vmatprep.subr.bf16.mxu0 0
    %1313 = vmatpush1.bf16.xpose.msra.mxu0 0
    %1314 = vmatprep.subr.bf16.mxu0 0
    %1315 = vmatpush1.bf16.xpose.msra.mxu0 0
    %1316 = vmatprep.subr.bf16.mxu0 0
    %1317 = vmatpush1.bf16.xpose.msra.mxu0 0
    %1318 = vmatprep.subr.bf16.mxu0 0
    %1319 = vmatpush1.bf16.xpose.msra.mxu0 0
    %1320 = vmatprep.subr.bf16.mxu0 0
    %1321 = vmatpush1.bf16.xpose.msra.mxu0 0
    %1322 = vmatprep.subr.bf16.mxu0 0
    %1323 = vmatpush1.bf16.xpose.msra.mxu0 0
    %1324 = vmatprep.subr.bf16.mxu0 0
    %1325 = vmatpush1.bf16.xpose.msra.mxu0 0
    %1326 = vmatprep.subr.bf16.mxu0 0
    %1327 = vmatpush1.bf16.xpose.msra.mxu0 0
    %1328 = vmatprep.subr.bf16.mxu0 0
    %1329 = vmatpush1.bf16.xpose.msra.mxu0 0
    %1330 = vmatprep.mubr.bf16.mxu0 0
    %1331 = vmatmul.mubr.bf16.gmra.mrb[0].mxu0 %v1287
    %v1332 = vpop.f32.mrb[0].mxu0
    %v1333 = vadd.f32 0.0, %v1332
    %v1334 = vpop.f32.mrb[0].mxu0
    %v1335 = vpop.f32.mrb[0].mxu0
    %v1336 = vadd.f32 0.0, %v1335
    %v1337 = vpop.f32.mrb[0].mxu0
    %1338 = vmatprep.mubr.bf16.mxu0 0
    %1339 = vmatmul.mubr.bf16.gmra.mrb[0].mxu0 %v1290
    %v1340 = vpop.f32.mrb[0].mxu0
    %v1341 = vadd.f32 0.0, %v1340
    %v1342 = vpop.f32.mrb[0].mxu0
    %v1343 = vpop.f32.mrb[0].mxu0
    %v1344 = vpop.f32.mrb[0].mxu0
    %1345 = vdwg.mxu0
    %v1346 = vmul.f32 %v1265, 0.35355338
    %v1347 = vmul.f32 %v1268, 0.35355338
    %v1348 = vmul.f32 %v1273, 0.35355338
    %v1349 = vmul.f32 %v1333, 0.35355338
    %v1350 = vmul.f32 %v1336, 0.35355338
    %v1351 = vmul.f32 %v1341, 0.35355338
    %v1352 = vsel %vm519, %v1346, -1e+30
    %v1353 = vsel %vm519, %v1347, -1e+30
    %v1354 = vsel %vm519, %v1348, -1e+30
    %v1355 = vsel %vm519, %v1349, -1e+30
    %v1356 = vsel %vm519, %v1350, -1e+30
    %v1357 = vsel %vm519, %v1351, -1e+30
    %v1358 = vsel %vm526, %v1352, -inf
    %1359 = vmax.xlane.f32.xlu0 %v1358
    %v1360 = vpop.xlane.xlu0 %1359
    %v1361 = vsel %vm526, %v1353, -inf
    %1362 = vmax.xlane.f32.xlu0 %v1361
    %v1363 = vpop.xlane.xlu0 %1362
    %v1364 = vsel %vm526, %v1354, -inf
    %1365 = vmax.xlane.f32.xlu0 %v1364
    %v1366 = vpop.xlane.xlu0 %1365
    %v1367 = vsel %vm526, %v1355, -inf
    %1368 = vmax.xlane.f32.xlu0 %v1367
    %v1369 = vpop.xlane.xlu0 %1368
    %v1370 = vsel %vm526, %v1356, -inf
    %1371 = vmax.xlane.f32.xlu0 %v1370
    %v1372 = vpop.xlane.xlu0 %1371
    %v1373 = vsel %vm526, %v1357, -inf
    %1374 = vmax.xlane.f32.xlu0 %v1373
    %v1375 = vpop.xlane.xlu0 %1374
    %v1376 = vsub.f32 %v1352, %v1360
    %v1377 = vsub.f32 %v1353, %v1363
    %v1378 = vsub.f32 %v1354, %v1366
    %v1379 = vsub.f32 %v1355, %v1369
    %v1380 = vsub.f32 %v1356, %v1372
    %v1381 = vsub.f32 %v1357, %v1375
    %v1382 = vmul.f32 %v1376, 1.442695
    %v1383 = vpow.pop %v1382
    %v1384 = vmul.f32 %v1377, 1.442695
    %v1385 = vpow.pop %v1384
    %v1386 = vmul.f32 %v1378, 1.442695
    %v1387 = vpow.pop %v1386
    %v1388 = vmul.f32 %v1379, 1.442695
    %v1389 = vpow.pop %v1388
    %v1390 = vmul.f32 %v1380, 1.442695
    %v1391 = vpow.pop %v1390
    %v1392 = vmul.f32 %v1381, 1.442695
    %v1393 = vpow.pop %v1392
    %v1394 = vsel %vm526, %v1383, 0.0
    %1395 = vadd.xlane.f32.xlu0 %v1394
    %v1396 = vpop.xlane.xlu0 %1395
    %v1397 = vsel %vm526, %v1385, 0.0
    %1398 = vadd.xlane.f32.xlu0 %v1397
    %v1399 = vpop.xlane.xlu0 %1398
    %v1400 = vsel %vm526, %v1387, 0.0
    %1401 = vadd.xlane.f32.xlu0 %v1400
    %v1402 = vpop.xlane.xlu0 %1401
    %v1403 = vsel %vm526, %v1389, 0.0
    %1404 = vadd.xlane.f32.xlu0 %v1403
    %v1405 = vpop.xlane.xlu0 %1404
    %v1406 = vsel %vm526, %v1391, 0.0
    %1407 = vadd.xlane.f32.xlu0 %v1406
    %v1408 = vpop.xlane.xlu0 %1407
    %v1409 = vsel %vm526, %v1393, 0.0
    %1410 = vadd.xlane.f32.xlu0 %v1409
    %v1411 = vpop.xlane.xlu0 %1410
    %v1412 = vrcp.pop %v1396
    %v1413 = vmul.f32 %v1383, %v1412
    %v1414 = vrcp.pop %v1399
    %v1415 = vmul.f32 %v1385, %v1414
    %v1416 = vrcp.pop %v1402
    %v1417 = vmul.f32 %v1387, %v1416
    %v1418 = vrcp.pop %v1405
    %v1419 = vmul.f32 %v1389, %v1418
    %v1420 = vrcp.pop %v1408
    %v1421 = vmul.f32 %v1391, %v1420
    %v1422 = vrcp.pop %v1411
    %v1423 = vmul.f32 %v1393, %v1422
    %v1424 = vpack.c.bf16 %v1415, %v1413
    %v1425 = vpack.c.bf16 %v1417, %v1417
    %v1426 = vpack.c.bf16 %v1421, %v1419
    %v1427 = vpack.c.bf16 %v1423, %v1423
    %1428 = vrot.lane.b32.xlu0 %v375, 48
    %v1429 = vpop.permute.xlu0 %1428
    %1430 = vrot.lane.b32.xlu0 %v376, 48
    %v1431 = vpop.permute.xlu0 %1430
    %v1434 = vsel %vm526, %v1424, 0
    %v1437 = vsel %vm526, %v1425, 0
    %v1440 = vsel %vm608, %v1431, 0
    %1442 = vmatprep.subr.bf16.mxu0 0
    %1443 = vmatpush1.bf16.msra.mxu0 %v1429
    %1444 = vmatprep.subr.bf16.mxu0 0
    %1445 = vmatpush1.bf16.msra.mxu0 %v1440
    %1446 = vmatprep.subr.bf16.mxu0 0
    %1447 = vmatpush1.bf16.msra.mxu0 0
    %1448 = vmatprep.subr.bf16.mxu0 0
    %1449 = vmatpush1.bf16.msra.mxu0 0
    %1450 = vmatprep.subr.bf16.mxu0 0
    %1451 = vmatpush1.bf16.msra.mxu0 0
    %1452 = vmatprep.subr.bf16.mxu0 0
    %1453 = vmatpush1.bf16.msra.mxu0 0
    %1454 = vmatprep.subr.bf16.mxu0 0
    %1455 = vmatpush1.bf16.msra.mxu0 0
    %1456 = vmatprep.subr.bf16.mxu0 0
    %1457 = vmatpush1.bf16.msra.mxu0 0
    %1458 = vmatprep.subr.bf16.mxu0 0
    %1459 = vmatpush1.bf16.msra.mxu0 0
    %1460 = vmatprep.subr.bf16.mxu0 0
    %1461 = vmatpush1.bf16.msra.mxu0 0
    %1462 = vmatprep.subr.bf16.mxu0 0
    %1463 = vmatpush1.bf16.msra.mxu0 0
    %1464 = vmatprep.subr.bf16.mxu0 0
    %1465 = vmatpush1.bf16.msra.mxu0 0
    %1466 = vmatprep.subr.bf16.mxu0 0
    %1467 = vmatpush1.bf16.msra.mxu0 0
    %1468 = vmatprep.subr.bf16.mxu0 0
    %1469 = vmatpush1.bf16.msra.mxu0 0
    %1470 = vmatprep.subr.bf16.mxu0 0
    %1471 = vmatpush1.bf16.msra.mxu0 0
    %1472 = vmatprep.subr.bf16.mxu0 0
    %1473 = vmatpush1.bf16.msra.mxu0 0
    %1474 = vmatprep.mubr.bf16.mxu0 0
    %1475 = vmatmul.mubr.bf16.gmra.mrb[0].mxu0 %v1434
    %v1476 = vpop.f32.mrb[0].mxu0
    %v1477 = vadd.f32 0.0, %v1476
    %v1478 = vpop.f32.mrb[0].mxu0
    %v1479 = vpop.f32.mrb[0].mxu0
    %v1480 = vadd.f32 0.0, %v1479
    %v1481 = vpop.f32.mrb[0].mxu0
    %1482 = vmatprep.mubr.bf16.mxu0 0
    %1483 = vmatmul.mubr.bf16.gmra.mrb[0].mxu0 %v1437
    %v1484 = vpop.f32.mrb[0].mxu0
    %v1485 = vadd.f32 0.0, %v1484
    %v1486 = vpop.f32.mrb[0].mxu0
    %v1487 = vpop.f32.mrb[0].mxu0
    %v1488 = vpop.f32.mrb[0].mxu0
    %1489 = vdwg.mxu0
    %1490 = vrot.lane.b32.xlu0 %v377, 48
    %v1491 = vpop.permute.xlu0 %1490
    %1492 = vrot.lane.b32.xlu0 %v378, 48
    %v1493 = vpop.permute.xlu0 %1492
    %v1496 = vsel %vm526, %v1426, 0
    %v1499 = vsel %vm526, %v1427, 0
    %v1502 = vsel %vm608, %v1493, 0
    %1504 = vmatprep.subr.bf16.mxu0 0
    %1505 = vmatpush1.bf16.msra.mxu0 %v1491
    %1506 = vmatprep.subr.bf16.mxu0 0
    %1507 = vmatpush1.bf16.msra.mxu0 %v1502
    %1508 = vmatprep.subr.bf16.mxu0 0
    %1509 = vmatpush1.bf16.msra.mxu0 0
    %1510 = vmatprep.subr.bf16.mxu0 0
    %1511 = vmatpush1.bf16.msra.mxu0 0
    %1512 = vmatprep.subr.bf16.mxu0 0
    %1513 = vmatpush1.bf16.msra.mxu0 0
    %1514 = vmatprep.subr.bf16.mxu0 0
    %1515 = vmatpush1.bf16.msra.mxu0 0
    %1516 = vmatprep.subr.bf16.mxu0 0
    %1517 = vmatpush1.bf16.msra.mxu0 0
    %1518 = vmatprep.subr.bf16.mxu0 0
    %1519 = vmatpush1.bf16.msra.mxu0 0
    %1520 = vmatprep.subr.bf16.mxu0 0
    %1521 = vmatpush1.bf16.msra.mxu0 0
    %1522 = vmatprep.subr.bf16.mxu0 0
    %1523 = vmatpush1.bf16.msra.mxu0 0
    %1524 = vmatprep.subr.bf16.mxu0 0
    %1525 = vmatpush1.bf16.msra.mxu0 0
    %1526 = vmatprep.subr.bf16.mxu0 0
    %1527 = vmatpush1.bf16.msra.mxu0 0
    %1528 = vmatprep.subr.bf16.mxu0 0
    %1529 = vmatpush1.bf16.msra.mxu0 0
    %1530 = vmatprep.subr.bf16.mxu0 0
    %1531 = vmatpush1.bf16.msra.mxu0 0
    %1532 = vmatprep.subr.bf16.mxu0 0
    %1533 = vmatpush1.bf16.msra.mxu0 0
    %1534 = vmatprep.subr.bf16.mxu0 0
    %1535 = vmatpush1.bf16.msra.mxu0 0
    %1536 = vmatprep.mubr.bf16.mxu0 0
    %1537 = vmatmul.mubr.bf16.gmra.mrb[0].mxu0 %v1496
    %v1538 = vpop.f32.mrb[0].mxu0
    %v1539 = vadd.f32 0.0, %v1538
    %v1540 = vpop.f32.mrb[0].mxu0
    %v1541 = vpop.f32.mrb[0].mxu0
    %v1542 = vadd.f32 0.0, %v1541
    %v1543 = vpop.f32.mrb[0].mxu0
    %1544 = vmatprep.mubr.bf16.mxu0 0
    %1545 = vmatmul.mubr.bf16.gmra.mrb[0].mxu0 %v1499
    %v1546 = vpop.f32.mrb[0].mxu0
    %v1547 = vadd.f32 0.0, %v1546
    %v1548 = vpop.f32.mrb[0].mxu0
    %v1549 = vpop.f32.mrb[0].mxu0
    %v1550 = vpop.f32.mrb[0].mxu0
    %1551 = vdwg.mxu0
    %v1552 = vpack.c.bf16 %v1480, %v1477
    %v1553 = vpack.c.bf16 %v1539, %v1485
    %v1554 = vpack.c.bf16 %v1547, %v1542
    %v1555 = vpack.c.bf16 %v373, %v373
    %v1557 = vsel %vm385, %v1552, 0
    %v1560 = vsel %vm385, %v1553, 0
    %v1563 = vsel %vm385, %v1554, 0
    %v1566 = vsel %vm608, %v1555, 0
    %1568 = vmatprep.subr.bf16.mxu0 0
    %1569 = vmatpush1.bf16.msra.mxu0 %v1566
    %1570 = vmatprep.subr.bf16.mxu0 0
    %1571 = vmatpush1.bf16.msra.mxu0 0
    %1572 = vmatprep.subr.bf16.mxu0 0
    %1573 = vmatpush1.bf16.msra.mxu0 0
    %1574 = vmatprep.subr.bf16.mxu0 0
    %1575 = vmatpush1.bf16.msra.mxu0 0
    %1576 = vmatprep.subr.bf16.mxu0 0
    %1577 = vmatpush1.bf16.msra.mxu0 0
    %1578 = vmatprep.subr.bf16.mxu0 0
    %1579 = vmatpush1.bf16.msra.mxu0 0
    %1580 = vmatprep.subr.bf16.mxu0 0
    %1581 = vmatpush1.bf16.msra.mxu0 0
    %1582 = vmatprep.subr.bf16.mxu0 0
    %1583 = vmatpush1.bf16.msra.mxu0 0
    %1584 = vmatprep.subr.bf16.mxu0 0
    %1585 = vmatpush1.bf16.msra.mxu0 0
    %1586 = vmatprep.subr.bf16.mxu0 0
    %1587 = vmatpush1.bf16.msra.mxu0 0
    %1588 = vmatprep.subr.bf16.mxu0 0
    %1589 = vmatpush1.bf16.msra.mxu0 0
    %1590 = vmatprep.subr.bf16.mxu0 0
    %1591 = vmatpush1.bf16.msra.mxu0 0
    %1592 = vmatprep.subr.bf16.mxu0 0
    %1593 = vmatpush1.bf16.msra.mxu0 0
    %1594 = vmatprep.subr.bf16.mxu0 0
    %1595 = vmatpush1.bf16.msra.mxu0 0
    %1596 = vmatprep.subr.bf16.mxu0 0
    %1597 = vmatpush1.bf16.msra.mxu0 0
    %1598 = vmatprep.subr.bf16.mxu0 0
    %1599 = vmatpush1.bf16.msra.mxu0 0
    %1600 = vmatprep.mubr.bf16.mxu0 0
    %1601 = vmatmul.mubr.bf16.gmra.mrb[0].mxu0 %v1557
    %v1602 = vpop.f32.mrb[0].mxu0
    %v1603 = vadd.f32 0.0, %v1602
    %v1604 = vpop.f32.mrb[0].mxu0
    %v1605 = vpop.f32.mrb[0].mxu0
    %v1606 = vadd.f32 0.0, %v1605
    %v1607 = vpop.f32.mrb[0].mxu0
    %1608 = vmatprep.mubr.bf16.mxu0 0
    %1609 = vmatmul.mubr.bf16.gmra.mrb[0].mxu0 %v1560
    %v1610 = vpop.f32.mrb[0].mxu0
    %v1611 = vadd.f32 0.0, %v1610
    %v1612 = vpop.f32.mrb[0].mxu0
    %v1613 = vpop.f32.mrb[0].mxu0
    %v1614 = vadd.f32 0.0, %v1613
    %v1615 = vpop.f32.mrb[0].mxu0
    %1616 = vmatprep.mubr.bf16.mxu0 0
    %1617 = vmatmul.mubr.bf16.gmra.mrb[0].mxu0 %v1563
    %v1618 = vpop.f32.mrb[0].mxu0
    %v1619 = vadd.f32 0.0, %v1618
    %v1620 = vpop.f32.mrb[0].mxu0
    %v1621 = vpop.f32.mrb[0].mxu0
    %v1622 = vadd.f32 0.0, %v1621
    %v1623 = vpop.f32.mrb[0].mxu0
    %1624 = vdwg.mxu0
    %v1625 = vadd.f32 %v1188, %v1603
    %v1626 = vadd.f32 %v1191, %v1606
    %v1627 = vadd.f32 %v1196, %v1611
    %v1628 = vadd.f32 %v1199, %v1614
    %v1629 = vadd.f32 %v1204, %v1619
    %v1630 = vadd.f32 %v1207, %v1622
    %1631 = vrot.lane.b32.xlu0 %v375, 104
    %v1632 = vpop.permute.xlu0 %1631
    %1633 = vrot.lane.b32.xlu0 %v376, 104
    %v1634 = vpop.permute.xlu0 %1633
    %1635 = vrot.lane.b32.xlu0 %v375, 72
    %v1636 = vpop.permute.xlu0 %1635
    %1637 = vrot.lane.b32.xlu0 %v376, 72
    %v1638 = vpop.permute.xlu0 %1637
    %v1640 = vsel %vm385, %v1632, 0
    %v1643 = vsel %vm385, %v1634, 0
    %v1646 = vsel %vm385, %v1636, 0
    %v1649 = vsel %vm385, %v1638, 0
    %1651 = vmatprep.subr.bf16.mxu0 0
    %1652 = vmatpush1.bf16.xpose.msra.mxu0 %v1646
    %1653 = vmatprep.subr.bf16.mxu0 0
    %1654 = vmatpush1.bf16.xpose.msra.mxu0 %v1649
    %1655 = vmatprep.subr.bf16.mxu0 0
    %1656 = vmatpush1.bf16.xpose.msra.mxu0 0
    %1657 = vmatprep.subr.bf16.mxu0 0
    %1658 = vmatpush1.bf16.xpose.msra.mxu0 0
    %1659 = vmatprep.subr.bf16.mxu0 0
    %1660 = vmatpush1.bf16.xpose.msra.mxu0 0
    %1661 = vmatprep.subr.bf16.mxu0 0
    %1662 = vmatpush1.bf16.xpose.msra.mxu0 0
    %1663 = vmatprep.subr.bf16.mxu0 0
    %1664 = vmatpush1.bf16.xpose.msra.mxu0 0
    %1665 = vmatprep.subr.bf16.mxu0 0
    %1666 = vmatpush1.bf16.xpose.msra.mxu0 0
    %1667 = vmatprep.subr.bf16.mxu0 0
    %1668 = vmatpush1.bf16.xpose.msra.mxu0 0
    %1669 = vmatprep.subr.bf16.mxu0 0
    %1670 = vmatpush1.bf16.xpose.msra.mxu0 0
    %1671 = vmatprep.subr.bf16.mxu0 0
    %1672 = vmatpush1.bf16.xpose.msra.mxu0 0
    %1673 = vmatprep.subr.bf16.mxu0 0
    %1674 = vmatpush1.bf16.xpose.msra.mxu0 0
    %1675 = vmatprep.subr.bf16.mxu0 0
    %1676 = vmatpush1.bf16.xpose.msra.mxu0 0
    %1677 = vmatprep.subr.bf16.mxu0 0
    %1678 = vmatpush1.bf16.xpose.msra.mxu0 0
    %1679 = vmatprep.subr.bf16.mxu0 0
    %1680 = vmatpush1.bf16.xpose.msra.mxu0 0
    %1681 = vmatprep.subr.bf16.mxu0 0
    %1682 = vmatpush1.bf16.xpose.msra.mxu0 0
    %1683 = vmatprep.mubr.bf16.mxu0 0
    %1684 = vmatmul.mubr.bf16.gmra.mrb[0].mxu0 %v1640
    %v1685 = vpop.f32.mrb[0].mxu0
    %v1686 = vadd.f32 0.0, %v1685
    %v1687 = vpop.f32.mrb[0].mxu0
    %v1688 = vpop.f32.mrb[0].mxu0
    %v1689 = vadd.f32 0.0, %v1688
    %v1690 = vpop.f32.mrb[0].mxu0
    %1691 = vmatprep.mubr.bf16.mxu0 0
    %1692 = vmatmul.mubr.bf16.gmra.mrb[0].mxu0 %v1643
    %v1693 = vpop.f32.mrb[0].mxu0
    %v1694 = vadd.f32 0.0, %v1693
    %v1695 = vpop.f32.mrb[0].mxu0
    %v1696 = vpop.f32.mrb[0].mxu0
    %v1697 = vpop.f32.mrb[0].mxu0
    %1698 = vdwg.mxu0
    %1699 = vrot.lane.b32.xlu0 %v377, 104
    %v1700 = vpop.permute.xlu0 %1699
    %1701 = vrot.lane.b32.xlu0 %v378, 104
    %v1702 = vpop.permute.xlu0 %1701
    %1703 = vrot.lane.b32.xlu0 %v377, 72
    %v1704 = vpop.permute.xlu0 %1703
    %1705 = vrot.lane.b32.xlu0 %v378, 72
    %v1706 = vpop.permute.xlu0 %1705
    %v1708 = vsel %vm385, %v1700, 0
    %v1711 = vsel %vm385, %v1702, 0
    %v1714 = vsel %vm385, %v1704, 0
    %v1717 = vsel %vm385, %v1706, 0
    %1719 = vmatprep.subr.bf16.mxu0 0
    %1720 = vmatpush1.bf16.xpose.msra.mxu0 %v1714
    %1721 = vmatprep.subr.bf16.mxu0 0
    %1722 = vmatpush1.bf16.xpose.msra.mxu0 %v1717
    %1723 = vmatprep.subr.bf16.mxu0 0
    %1724 = vmatpush1.bf16.xpose.msra.mxu0 0
    %1725 = vmatprep.subr.bf16.mxu0 0
    %1726 = vmatpush1.bf16.xpose.msra.mxu0 0
    %1727 = vmatprep.subr.bf16.mxu0 0
    %1728 = vmatpush1.bf16.xpose.msra.mxu0 0
    %1729 = vmatprep.subr.bf16.mxu0 0
    %1730 = vmatpush1.bf16.xpose.msra.mxu0 0
    %1731 = vmatprep.subr.bf16.mxu0 0
    %1732 = vmatpush1.bf16.xpose.msra.mxu0 0
    %1733 = vmatprep.subr.bf16.mxu0 0
    %1734 = vmatpush1.bf16.xpose.msra.mxu0 0
    %1735 = vmatprep.subr.bf16.mxu0 0
    %1736 = vmatpush1.bf16.xpose.msra.mxu0 0
    %1737 = vmatprep.subr.bf16.mxu0 0
    %1738 = vmatpush1.bf16.xpose.msra.mxu0 0
    %1739 = vmatprep.subr.bf16.mxu0 0
    %1740 = vmatpush1.bf16.xpose.msra.mxu0 0
    %1741 = vmatprep.subr.bf16.mxu0 0
    %1742 = vmatpush1.bf16.xpose.msra.mxu0 0
    %1743 = vmatprep.subr.bf16.mxu0 0
    %1744 = vmatpush1.bf16.xpose.msra.mxu0 0
    %1745 = vmatprep.subr.bf16.mxu0 0
    %1746 = vmatpush1.bf16.xpose.msra.mxu0 0
    %1747 = vmatprep.subr.bf16.mxu0 0
    %1748 = vmatpush1.bf16.xpose.msra.mxu0 0
    %1749 = vmatprep.subr.bf16.mxu0 0
    %1750 = vmatpush1.bf16.xpose.msra.mxu0 0
    %1751 = vmatprep.mubr.bf16.mxu0 0
    %1752 = vmatmul.mubr.bf16.gmra.mrb[0].mxu0 %v1708
    %v1753 = vpop.f32.mrb[0].mxu0
    %v1754 = vadd.f32 0.0, %v1753
    %v1755 = vpop.f32.mrb[0].mxu0
    %v1756 = vpop.f32.mrb[0].mxu0
    %v1757 = vadd.f32 0.0, %v1756
    %v1758 = vpop.f32.mrb[0].mxu0
    %1759 = vmatprep.mubr.bf16.mxu0 0
    %1760 = vmatmul.mubr.bf16.gmra.mrb[0].mxu0 %v1711
    %v1761 = vpop.f32.mrb[0].mxu0
    %v1762 = vadd.f32 0.0, %v1761
    %v1763 = vpop.f32.mrb[0].mxu0
    %v1764 = vpop.f32.mrb[0].mxu0
    %v1765 = vpop.f32.mrb[0].mxu0
    %1766 = vdwg.mxu0
    %v1767 = vmul.f32 %v1686, 0.35355338
    %v1768 = vmul.f32 %v1689, 0.35355338
    %v1769 = vmul.f32 %v1694, 0.35355338
    %v1770 = vmul.f32 %v1754, 0.35355338
    %v1771 = vmul.f32 %v1757, 0.35355338
    %v1772 = vmul.f32 %v1762, 0.35355338
    %v1773 = vsel %vm519, %v1767, -1e+30
    %v1774 = vsel %vm519, %v1768, -1e+30
    %v1775 = vsel %vm519, %v1769, -1e+30
    %v1776 = vsel %vm519, %v1770, -1e+30
    %v1777 = vsel %vm519, %v1771, -1e+30
    %v1778 = vsel %vm519, %v1772, -1e+30
    %v1779 = vsel %vm526, %v1773, -inf
    %1780 = vmax.xlane.f32.xlu0 %v1779
    %v1781 = vpop.xlane.xlu0 %1780
    %v1782 = vsel %vm526, %v1774, -inf
    %1783 = vmax.xlane.f32.xlu0 %v1782
    %v1784 = vpop.xlane.xlu0 %1783
    %v1785 = vsel %vm526, %v1775, -inf
    %1786 = vmax.xlane.f32.xlu0 %v1785
    %v1787 = vpop.xlane.xlu0 %1786
    %v1788 = vsel %vm526, %v1776, -inf
    %1789 = vmax.xlane.f32.xlu0 %v1788
    %v1790 = vpop.xlane.xlu0 %1789
    %v1791 = vsel %vm526, %v1777, -inf
    %1792 = vmax.xlane.f32.xlu0 %v1791
    %v1793 = vpop.xlane.xlu0 %1792
    %v1794 = vsel %vm526, %v1778, -inf
    %1795 = vmax.xlane.f32.xlu0 %v1794
    %v1796 = vpop.xlane.xlu0 %1795
    %v1797 = vsub.f32 %v1773, %v1781
    %v1798 = vsub.f32 %v1774, %v1784
    %v1799 = vsub.f32 %v1775, %v1787
    %v1800 = vsub.f32 %v1776, %v1790
    %v1801 = vsub.f32 %v1777, %v1793
    %v1802 = vsub.f32 %v1778, %v1796
    %v1803 = vmul.f32 %v1797, 1.442695
    %v1804 = vpow.pop %v1803
    %v1805 = vmul.f32 %v1798, 1.442695
    %v1806 = vpow.pop %v1805
    %v1807 = vmul.f32 %v1799, 1.442695
    %v1808 = vpow.pop %v1807
    %v1809 = vmul.f32 %v1800, 1.442695
    %v1810 = vpow.pop %v1809
    %v1811 = vmul.f32 %v1801, 1.442695
    %v1812 = vpow.pop %v1811
    %v1813 = vmul.f32 %v1802, 1.442695
    %v1814 = vpow.pop %v1813
    %v1815 = vsel %vm526, %v1804, 0.0
    %1816 = vadd.xlane.f32.xlu0 %v1815
    %v1817 = vpop.xlane.xlu0 %1816
    %v1818 = vsel %vm526, %v1806, 0.0
    %1819 = vadd.xlane.f32.xlu0 %v1818
    %v1820 = vpop.xlane.xlu0 %1819
    %v1821 = vsel %vm526, %v1808, 0.0
    %1822 = vadd.xlane.f32.xlu0 %v1821
    %v1823 = vpop.xlane.xlu0 %1822
    %v1824 = vsel %vm526, %v1810, 0.0
    %1825 = vadd.xlane.f32.xlu0 %v1824
    %v1826 = vpop.xlane.xlu0 %1825
    %v1827 = vsel %vm526, %v1812, 0.0
    %1828 = vadd.xlane.f32.xlu0 %v1827
    %v1829 = vpop.xlane.xlu0 %1828
    %v1830 = vsel %vm526, %v1814, 0.0
    %1831 = vadd.xlane.f32.xlu0 %v1830
    %v1832 = vpop.xlane.xlu0 %1831
    %v1833 = vrcp.pop %v1817
    %v1834 = vmul.f32 %v1804, %v1833
    %v1835 = vrcp.pop %v1820
    %v1836 = vmul.f32 %v1806, %v1835
    %v1837 = vrcp.pop %v1823
    %v1838 = vmul.f32 %v1808, %v1837
    %v1839 = vrcp.pop %v1826
    %v1840 = vmul.f32 %v1810, %v1839
    %v1841 = vrcp.pop %v1829
    %v1842 = vmul.f32 %v1812, %v1841
    %v1843 = vrcp.pop %v1832
    %v1844 = vmul.f32 %v1814, %v1843
    %v1845 = vpack.c.bf16 %v1836, %v1834
    %v1846 = vpack.c.bf16 %v1838, %v1838
    %v1847 = vpack.c.bf16 %v1842, %v1840
    %v1848 = vpack.c.bf16 %v1844, %v1844
    %1849 = vrot.lane.b32.xlu0 %v375, 40
    %v1850 = vpop.permute.xlu0 %1849
    %1851 = vrot.lane.b32.xlu0 %v376, 40
    %v1852 = vpop.permute.xlu0 %1851
    %v1855 = vsel %vm526, %v1845, 0
    %v1858 = vsel %vm526, %v1846, 0
    %v1861 = vsel %vm608, %v1852, 0
    %1863 = vmatprep.subr.bf16.mxu0 0
    %1864 = vmatpush1.bf16.msra.mxu0 %v1850
    %1865 = vmatprep.subr.bf16.mxu0 0
    %1866 = vmatpush1.bf16.msra.mxu0 %v1861
    %1867 = vmatprep.subr.bf16.mxu0 0
    %1868 = vmatpush1.bf16.msra.mxu0 0
    %1869 = vmatprep.subr.bf16.mxu0 0
    %1870 = vmatpush1.bf16.msra.mxu0 0
    %1871 = vmatprep.subr.bf16.mxu0 0
    %1872 = vmatpush1.bf16.msra.mxu0 0
    %1873 = vmatprep.subr.bf16.mxu0 0
    %1874 = vmatpush1.bf16.msra.mxu0 0
    %1875 = vmatprep.subr.bf16.mxu0 0
    %1876 = vmatpush1.bf16.msra.mxu0 0
    %1877 = vmatprep.subr.bf16.mxu0 0
    %1878 = vmatpush1.bf16.msra.mxu0 0
    %1879 = vmatprep.subr.bf16.mxu0 0
    %1880 = vmatpush1.bf16.msra.mxu0 0
    %1881 = vmatprep.subr.bf16.mxu0 0
    %1882 = vmatpush1.bf16.msra.mxu0 0
    %1883 = vmatprep.subr.bf16.mxu0 0
    %1884 = vmatpush1.bf16.msra.mxu0 0
    %1885 = vmatprep.subr.bf16.mxu0 0
    %1886 = vmatpush1.bf16.msra.mxu0 0
    %1887 = vmatprep.subr.bf16.mxu0 0
    %1888 = vmatpush1.bf16.msra.mxu0 0
    %1889 = vmatprep.subr.bf16.mxu0 0
    %1890 = vmatpush1.bf16.msra.mxu0 0
    %1891 = vmatprep.subr.bf16.mxu0 0
    %1892 = vmatpush1.bf16.msra.mxu0 0
    %1893 = vmatprep.subr.bf16.mxu0 0
    %1894 = vmatpush1.bf16.msra.mxu0 0
    %1895 = vmatprep.mubr.bf16.mxu0 0
    %1896 = vmatmul.mubr.bf16.gmra.mrb[0].mxu0 %v1855
    %v1897 = vpop.f32.mrb[0].mxu0
    %v1898 = vadd.f32 0.0, %v1897
    %v1899 = vpop.f32.mrb[0].mxu0
    %v1900 = vpop.f32.mrb[0].mxu0
    %v1901 = vadd.f32 0.0, %v1900
    %v1902 = vpop.f32.mrb[0].mxu0
    %1903 = vmatprep.mubr.bf16.mxu0 0
    %1904 = vmatmul.mubr.bf16.gmra.mrb[0].mxu0 %v1858
    %v1905 = vpop.f32.mrb[0].mxu0
    %v1906 = vadd.f32 0.0, %v1905
    %v1907 = vpop.f32.mrb[0].mxu0
    %v1908 = vpop.f32.mrb[0].mxu0
    %v1909 = vpop.f32.mrb[0].mxu0
    %1910 = vdwg.mxu0
    %1911 = vrot.lane.b32.xlu0 %v377, 40
    %v1912 = vpop.permute.xlu0 %1911
    %1913 = vrot.lane.b32.xlu0 %v378, 40
    %v1914 = vpop.permute.xlu0 %1913
    %v1917 = vsel %vm526, %v1847, 0
    %v1920 = vsel %vm526, %v1848, 0
    %v1923 = vsel %vm608, %v1914, 0
    %1925 = vmatprep.subr.bf16.mxu0 0
    %1926 = vmatpush1.bf16.msra.mxu0 %v1912
    %1927 = vmatprep.subr.bf16.mxu0 0
    %1928 = vmatpush1.bf16.msra.mxu0 %v1923
    %1929 = vmatprep.subr.bf16.mxu0 0
    %1930 = vmatpush1.bf16.msra.mxu0 0
    %1931 = vmatprep.subr.bf16.mxu0 0
    %1932 = vmatpush1.bf16.msra.mxu0 0
    %1933 = vmatprep.subr.bf16.mxu0 0
    %1934 = vmatpush1.bf16.msra.mxu0 0
    %1935 = vmatprep.subr.bf16.mxu0 0
    %1936 = vmatpush1.bf16.msra.mxu0 0
    %1937 = vmatprep.subr.bf16.mxu0 0
    %1938 = vmatpush1.bf16.msra.mxu0 0
    %1939 = vmatprep.subr.bf16.mxu0 0
    %1940 = vmatpush1.bf16.msra.mxu0 0
    %1941 = vmatprep.subr.bf16.mxu0 0
    %1942 = vmatpush1.bf16.msra.mxu0 0
    %1943 = vmatprep.subr.bf16.mxu0 0
    %1944 = vmatpush1.bf16.msra.mxu0 0
    %1945 = vmatprep.subr.bf16.mxu0 0
    %1946 = vmatpush1.bf16.msra.mxu0 0
    %1947 = vmatprep.subr.bf16.mxu0 0
    %1948 = vmatpush1.bf16.msra.mxu0 0
    %1949 = vmatprep.subr.bf16.mxu0 0
    %1950 = vmatpush1.bf16.msra.mxu0 0
    %1951 = vmatprep.subr.bf16.mxu0 0
    %1952 = vmatpush1.bf16.msra.mxu0 0
    %1953 = vmatprep.subr.bf16.mxu0 0
    %1954 = vmatpush1.bf16.msra.mxu0 0
    %1955 = vmatprep.subr.bf16.mxu0 0
    %1956 = vmatpush1.bf16.msra.mxu0 0
    %1957 = vmatprep.mubr.bf16.mxu0 0
    %1958 = vmatmul.mubr.bf16.gmra.mrb[0].mxu0 %v1917
    %v1959 = vpop.f32.mrb[0].mxu0
    %v1960 = vadd.f32 0.0, %v1959
    %v1961 = vpop.f32.mrb[0].mxu0
    %v1962 = vpop.f32.mrb[0].mxu0
    %v1963 = vadd.f32 0.0, %v1962
    %v1964 = vpop.f32.mrb[0].mxu0
    %1965 = vmatprep.mubr.bf16.mxu0 0
    %1966 = vmatmul.mubr.bf16.gmra.mrb[0].mxu0 %v1920
    %v1967 = vpop.f32.mrb[0].mxu0
    %v1968 = vadd.f32 0.0, %v1967
    %v1969 = vpop.f32.mrb[0].mxu0
    %v1970 = vpop.f32.mrb[0].mxu0
    %v1971 = vpop.f32.mrb[0].mxu0
    %1972 = vdwg.mxu0
    %v1973 = vpack.c.bf16 %v1901, %v1898
    %v1974 = vpack.c.bf16 %v1960, %v1906
    %v1975 = vpack.c.bf16 %v1968, %v1963
    %v1976 = vpack.c.bf16 %v374, %v374
    %v1978 = vsel %vm385, %v1973, 0
    %v1981 = vsel %vm385, %v1974, 0
    %v1984 = vsel %vm385, %v1975, 0
    %v1987 = vsel %vm608, %v1976, 0
    %1989 = vmatprep.subr.bf16.mxu0 0
    %1990 = vmatpush1.bf16.msra.mxu0 %v1987
    %1991 = vmatprep.subr.bf16.mxu0 0
    %1992 = vmatpush1.bf16.msra.mxu0 0
    %1993 = vmatprep.subr.bf16.mxu0 0
    %1994 = vmatpush1.bf16.msra.mxu0 0
    %1995 = vmatprep.subr.bf16.mxu0 0
    %1996 = vmatpush1.bf16.msra.mxu0 0
    %1997 = vmatprep.subr.bf16.mxu0 0
    %1998 = vmatpush1.bf16.msra.mxu0 0
    %1999 = vmatprep.subr.bf16.mxu0 0
    %2000 = vmatpush1.bf16.msra.mxu0 0
    %2001 = vmatprep.subr.bf16.mxu0 0
    %2002 = vmatpush1.bf16.msra.mxu0 0
    %2003 = vmatprep.subr.bf16.mxu0 0
    %2004 = vmatpush1.bf16.msra.mxu0 0
    %2005 = vmatprep.subr.bf16.mxu0 0
    %2006 = vmatpush1.bf16.msra.mxu0 0
    %2007 = vmatprep.subr.bf16.mxu0 0
    %2008 = vmatpush1.bf16.msra.mxu0 0
    %2009 = vmatprep.subr.bf16.mxu0 0
    %2010 = vmatpush1.bf16.msra.mxu0 0
    %2011 = vmatprep.subr.bf16.mxu0 0
    %2012 = vmatpush1.bf16.msra.mxu0 0
    %2013 = vmatprep.subr.bf16.mxu0 0
    %2014 = vmatpush1.bf16.msra.mxu0 0
    %2015 = vmatprep.subr.bf16.mxu0 0
    %2016 = vmatpush1.bf16.msra.mxu0 0
    %2017 = vmatprep.subr.bf16.mxu0 0
    %2018 = vmatpush1.bf16.msra.mxu0 0
    %2019 = vmatprep.subr.bf16.mxu0 0
    %2020 = vmatpush1.bf16.msra.mxu0 0
    %2021 = vmatprep.mubr.bf16.mxu0 0
    %2022 = vmatmul.mubr.bf16.gmra.mrb[0].mxu0 %v1978
    %v2023 = vpop.f32.mrb[0].mxu0
    %v2024 = vadd.f32 0.0, %v2023
    %v2025 = vpop.f32.mrb[0].mxu0
    %v2026 = vpop.f32.mrb[0].mxu0
    %v2027 = vadd.f32 0.0, %v2026
    %v2028 = vpop.f32.mrb[0].mxu0
    %2029 = vmatprep.mubr.bf16.mxu0 0
    %2030 = vmatmul.mubr.bf16.gmra.mrb[0].mxu0 %v1981
    %v2031 = vpop.f32.mrb[0].mxu0
    %v2032 = vadd.f32 0.0, %v2031
    %v2033 = vpop.f32.mrb[0].mxu0
    %v2034 = vpop.f32.mrb[0].mxu0
    %v2035 = vadd.f32 0.0, %v2034
    %v2036 = vpop.f32.mrb[0].mxu0
    %2037 = vmatprep.mubr.bf16.mxu0 0
    %2038 = vmatmul.mubr.bf16.gmra.mrb[0].mxu0 %v1984
    %v2039 = vpop.f32.mrb[0].mxu0
    %v2040 = vadd.f32 0.0, %v2039
    %v2041 = vpop.f32.mrb[0].mxu0
    %v2042 = vpop.f32.mrb[0].mxu0
    %v2043 = vadd.f32 0.0, %v2042
    %v2044 = vpop.f32.mrb[0].mxu0
    %2045 = vdwg.mxu0
    %v2046 = vadd.f32 %v1625, %v2024
    %v2047 = vadd.f32 %v1626, %v2027
    %v2048 = vadd.f32 %v1627, %v2032
    %v2049 = vadd.f32 %v1628, %v2035
    %v2050 = vadd.f32 %v1629, %v2040
    %v2051 = vadd.f32 %v1630, %v2043
    %v2052 = vadd.f32 %v175, %v2046
    %v2053 = vadd.f32 %v176, %v2047
    %v2054 = vadd.f32 %v177, %v2048
    %v2055 = vadd.f32 %v178, %v2049
    %v2056 = vadd.f32 %v179, %v2050
    %v2057 = vadd.f32 %v180, %v2051
    %v2058 = vld [vmem:[%s11] sm:$0x1]
    %v2060 = vlaneseq
    %v2061 = vshrl.u32 %v2060, 7
    %v2062 = vsub.s32 0, %v2061
    %v2063 = vrot.slane %v2058, %v2062
    %v2065 = vadd.f32 %v2052, %v2063
    %v2066 = vadd.f32 %v2053, %v2063
    %v2067 = vadd.f32 %v2054, %v2063
    %v2068 = vadd.f32 %v2055, %v2063
    %v2069 = vadd.f32 %v2056, %v2063
    %v2070 = vadd.f32 %v2057, %v2063
    %v2071 = vld [vmem:[%s12] sm:$0x1]
    %v2072 = vld [vmem:[%s13] sm:$0x1]
    %v2073 = vsel %vm161, %v2065, 0.0
    %2074 = vadd.xlane.f32.xlu0 %v2073
    %v2075 = vpop.xlane.xlu0 %2074
    %v2076 = vsel %vm161, %v2066, 0.0
    %2077 = vadd.xlane.f32.xlu0 %v2076
    %v2078 = vpop.xlane.xlu0 %2077
    %v2079 = vsel %vm161, %v2067, 0.0
    %2080 = vadd.xlane.f32.xlu0 %v2079
    %v2081 = vpop.xlane.xlu0 %2080
    %v2082 = vsel %vm161, %v2068, 0.0
    %2083 = vadd.xlane.f32.xlu0 %v2082
    %v2084 = vpop.xlane.xlu0 %2083
    %v2085 = vsel %vm161, %v2069, 0.0
    %2086 = vadd.xlane.f32.xlu0 %v2085
    %v2087 = vpop.xlane.xlu0 %2086
    %v2088 = vsel %vm161, %v2070, 0.0
    %2089 = vadd.xlane.f32.xlu0 %v2088
    %v2090 = vpop.xlane.xlu0 %2089
    %v2091 = vmul.f32 %v2075, %v204
    %v2092 = vmul.f32 %v2078, %v204
    %v2093 = vmul.f32 %v2081, %v204
    %v2094 = vmul.f32 %v2084, %v204
    %v2095 = vmul.f32 %v2087, %v204
    %v2096 = vmul.f32 %v2090, %v204
    %v2097 = vsub.f32 %v2065, %v2091
    %v2098 = vsub.f32 %v2066, %v2092
    %v2099 = vsub.f32 %v2067, %v2093
    %v2100 = vsub.f32 %v2068, %v2094
    %v2101 = vsub.f32 %v2069, %v2095
    %v2102 = vsub.f32 %v2070, %v2096
    %v2103 = vmul.f32 %v2097, %v2097
    %v2104 = vmul.f32 %v2098, %v2098
    %v2105 = vmul.f32 %v2099, %v2099
    %v2106 = vmul.f32 %v2100, %v2100
    %v2107 = vmul.f32 %v2101, %v2101
    %v2108 = vmul.f32 %v2102, %v2102
    %v2109 = vsel %vm161, %v2103, 0.0
    %2110 = vadd.xlane.f32.xlu0 %v2109
    %v2111 = vpop.xlane.xlu0 %2110
    %v2112 = vsel %vm161, %v2104, 0.0
    %2113 = vadd.xlane.f32.xlu0 %v2112
    %v2114 = vpop.xlane.xlu0 %2113
    %v2115 = vsel %vm161, %v2105, 0.0
    %2116 = vadd.xlane.f32.xlu0 %v2115
    %v2117 = vpop.xlane.xlu0 %2116
    %v2118 = vsel %vm161, %v2106, 0.0
    %2119 = vadd.xlane.f32.xlu0 %v2118
    %v2120 = vpop.xlane.xlu0 %2119
    %v2121 = vsel %vm161, %v2107, 0.0
    %2122 = vadd.xlane.f32.xlu0 %v2121
    %v2123 = vpop.xlane.xlu0 %2122
    %v2124 = vsel %vm161, %v2108, 0.0
    %2125 = vadd.xlane.f32.xlu0 %v2124
    %v2126 = vpop.xlane.xlu0 %2125
    %v2127 = vmul.f32 %v2111, %v204
    %v2128 = vmul.f32 %v2114, %v204
    %v2129 = vmul.f32 %v2117, %v204
    %v2130 = vmul.f32 %v2120, %v204
    %v2131 = vmul.f32 %v2123, %v204
    %v2132 = vmul.f32 %v2126, %v204
    %v2133 = vadd.f32 %v2127, 1e-05
    %v2134 = vadd.f32 %v2128, 1e-05
    %v2135 = vadd.f32 %v2129, 1e-05
    %v2136 = vadd.f32 %v2130, 1e-05
    %v2137 = vadd.f32 %v2131, 1e-05
    %v2138 = vadd.f32 %v2132, 1e-05
    %v2139 = vrsqrt.pop %v2133
    %v2140 = vrsqrt.pop %v2134
    %v2141 = vrsqrt.pop %v2135
    %v2142 = vrsqrt.pop %v2136
    %v2143 = vrsqrt.pop %v2137
    %v2144 = vrsqrt.pop %v2138
    %v2145 = vmul.f32 %v2097, %v2139
    %v2146 = vmul.f32 %v2098, %v2140
    %v2147 = vmul.f32 %v2099, %v2141
    %v2148 = vmul.f32 %v2100, %v2142
    %v2149 = vmul.f32 %v2101, %v2143
    %v2150 = vmul.f32 %v2102, %v2144
    %v2152 = vlaneseq
    %v2153 = vshrl.u32 %v2152, 7
    %v2154 = vsub.s32 0, %v2153
    %v2155 = vrot.slane %v2071, %v2154
    %v2157 = vmul.f32 %v2145, %v2155
    %v2158 = vmul.f32 %v2146, %v2155
    %v2159 = vmul.f32 %v2147, %v2155
    %v2160 = vmul.f32 %v2148, %v2155
    %v2161 = vmul.f32 %v2149, %v2155
    %v2162 = vmul.f32 %v2150, %v2155
    %v2164 = vlaneseq
    %v2165 = vshrl.u32 %v2164, 7
    %v2166 = vsub.s32 0, %v2165
    %v2167 = vrot.slane %v2072, %v2166
    %v2169 = vadd.f32 %v2157, %v2167
    %v2170 = vadd.f32 %v2158, %v2167
    %v2171 = vadd.f32 %v2159, %v2167
    %v2172 = vadd.f32 %v2160, %v2167
    %v2173 = vadd.f32 %v2161, %v2167
    %v2174 = vadd.f32 %v2162, %v2167
    %v2175 = vld [vmem:[%s14] sm:$0xff]
    %v2176 = vld [vmem:[%s14 + $0x8] sm:$0xff]
    %v2177 = vld [vmem:[%s14 + $0x10] sm:$0xff]
    %v2178 = vld [vmem:[%s14 + $0x18] sm:$0xff]
    %v2179 = vpack.c.bf16 %v2170, %v2169
    %v2180 = vpack.c.bf16 %v2172, %v2171
    %v2181 = vpack.c.bf16 %v2174, %v2173
    %v2182 = vpack.c.bf16 %v2176, %v2175
    %v2183 = vpack.c.bf16 %v2178, %v2177
    %v2184 = vld [vmem:[%s15] sm:$0x1]
    %v2186 = vlaneseq
    %v2187 = vshrl.u32 %v2186, 7
    %v2188 = vsub.s32 0, %v2187
    %v2189 = vrot.slane %v2184, %v2188
    %v2192 = vsel %vm161, %v2179, 0
    %v2195 = vsel %vm161, %v2180, 0
    %v2198 = vsel %vm161, %v2181, 0
    %2200 = vmatprep.subr.bf16.mxu0 0
    %2201 = vmatpush1.bf16.msra.mxu0 %v2182
    %2202 = vmatprep.subr.bf16.mxu0 0
    %2203 = vmatpush1.bf16.msra.mxu0 %v2183
    %2204 = vmatprep.subr.bf16.mxu0 0
    %2205 = vmatpush1.bf16.msra.mxu0 0
    %2206 = vmatprep.subr.bf16.mxu0 0
    %2207 = vmatpush1.bf16.msra.mxu0 0
    %2208 = vmatprep.subr.bf16.mxu0 0
    %2209 = vmatpush1.bf16.msra.mxu0 0
    %2210 = vmatprep.subr.bf16.mxu0 0
    %2211 = vmatpush1.bf16.msra.mxu0 0
    %2212 = vmatprep.subr.bf16.mxu0 0
    %2213 = vmatpush1.bf16.msra.mxu0 0
    %2214 = vmatprep.subr.bf16.mxu0 0
    %2215 = vmatpush1.bf16.msra.mxu0 0
    %2216 = vmatprep.subr.bf16.mxu0 0
    %2217 = vmatpush1.bf16.msra.mxu0 0
    %2218 = vmatprep.subr.bf16.mxu0 0
    %2219 = vmatpush1.bf16.msra.mxu0 0
    %2220 = vmatprep.subr.bf16.mxu0 0
    %2221 = vmatpush1.bf16.msra.mxu0 0
    %2222 = vmatprep.subr.bf16.mxu0 0
    %2223 = vmatpush1.bf16.msra.mxu0 0
    %2224 = vmatprep.subr.bf16.mxu0 0
    %2225 = vmatpush1.bf16.msra.mxu0 0
    %2226 = vmatprep.subr.bf16.mxu0 0
    %2227 = vmatpush1.bf16.msra.mxu0 0
    %2228 = vmatprep.subr.bf16.mxu0 0
    %2229 = vmatpush1.bf16.msra.mxu0 0
    %2230 = vmatprep.subr.bf16.mxu0 0
    %2231 = vmatpush1.bf16.msra.mxu0 0
    %2232 = vmatprep.mubr.bf16.mxu0 0
    %2233 = vmatmul.mubr.bf16.gmra.mrb[0].mxu0 %v2192
    %v2234 = vpop.f32.mrb[0].mxu0
    %v2235 = vadd.f32 %v2189, %v2234
    %v2236 = vpop.f32.mrb[0].mxu0
    %v2237 = vpop.f32.mrb[0].mxu0
    %v2238 = vadd.f32 %v2189, %v2237
    %v2239 = vpop.f32.mrb[0].mxu0
    %2240 = vmatprep.mubr.bf16.mxu0 0
    %2241 = vmatmul.mubr.bf16.gmra.mrb[0].mxu0 %v2195
    %v2242 = vpop.f32.mrb[0].mxu0
    %v2243 = vadd.f32 %v2189, %v2242
    %v2244 = vpop.f32.mrb[0].mxu0
    %v2245 = vpop.f32.mrb[0].mxu0
    %v2246 = vadd.f32 %v2189, %v2245
    %v2247 = vpop.f32.mrb[0].mxu0
    %2248 = vmatprep.mubr.bf16.mxu0 0
    %2249 = vmatmul.mubr.bf16.gmra.mrb[0].mxu0 %v2198
    %v2250 = vpop.f32.mrb[0].mxu0
    %v2251 = vadd.f32 %v2189, %v2250
    %v2252 = vpop.f32.mrb[0].mxu0
    %v2253 = vpop.f32.mrb[0].mxu0
    %v2254 = vadd.f32 %v2189, %v2253
    %v2255 = vpop.f32.mrb[0].mxu0
    %2256 = vdwg.mxu0
    %v2257 = vmul.f32 %v2235, 0.5
    %v2258 = vmul.f32 %v2238, 0.5
    %v2259 = vmul.f32 %v2243, 0.5
    %v2260 = vmul.f32 %v2246, 0.5
    %v2261 = vmul.f32 %v2251, 0.5
    %v2262 = vmul.f32 %v2254, 0.5
    %v2263 = vmul.f32 %v2235, 0.70710677
    %v2264 = vmul.f32 %v2238, 0.70710677
    %v2265 = vmul.f32 %v2243, 0.70710677
    %v2266 = vmul.f32 %v2246, 0.70710677
    %v2267 = vmul.f32 %v2251, 0.70710677
    %v2268 = vmul.f32 %v2254, 0.70710677
    %v2269 = verf.f32.pop %v2263
    %v2270 = verf.f32.pop %v2264
    %v2271 = verf.f32.pop %v2265
    %v2272 = verf.f32.pop %v2266
    %v2273 = verf.f32.pop %v2267
    %v2274 = verf.f32.pop %v2268
    %v2275 = vadd.f32 %v2269, 1.0
    %v2276 = vadd.f32 %v2270, 1.0
    %v2277 = vadd.f32 %v2271, 1.0
    %v2278 = vadd.f32 %v2272, 1.0
    %v2279 = vadd.f32 %v2273, 1.0
    %v2280 = vadd.f32 %v2274, 1.0
    %v2281 = vmul.f32 %v2257, %v2275
    %v2282 = vmul.f32 %v2258, %v2276
    %v2283 = vmul.f32 %v2259, %v2277
    %v2284 = vmul.f32 %v2260, %v2278
    %v2285 = vmul.f32 %v2261, %v2279
    %v2286 = vmul.f32 %v2262, %v2280
    %v2287 = vld [vmem:[%s16] sm:$0xff]
    %v2288 = vld [vmem:[%s16 + $0x8] sm:$0xff]
    %v2289 = vld [vmem:[%s16 + $0x10] sm:$0xff]
    %v2290 = vld [vmem:[%s16 + $0x18] sm:$0xff]
    %v2291 = vld [vmem:[%s16 + $0x20] sm:$0xff]
    %v2292 = vld [vmem:[%s16 + $0x28] sm:$0xff]
    %v2293 = vld [vmem:[%s16 + $0x30] sm:$0xff]
    %v2294 = vld [vmem:[%s16 + $0x38] sm:$0xff]
    %v2295 = vpack.c.bf16 %v2282, %v2281
    %v2296 = vpack.c.bf16 %v2284, %v2283
    %v2297 = vpack.c.bf16 %v2286, %v2285
    %v2298 = vpack.c.bf16 %v2288, %v2287
    %v2299 = vpack.c.bf16 %v2290, %v2289
    %v2300 = vpack.c.bf16 %v2292, %v2291
    %v2301 = vpack.c.bf16 %v2294, %v2293
    %v2303 = vsel %vm98, %v2295, 0
    %v2306 = vsel %vm98, %v2296, 0
    %v2309 = vsel %vm98, %v2297, 0
    %2311 = vmatprep.subr.bf16.mxu0 0
    %2312 = vmatpush1.bf16.msra.mxu0 %v2298
    %2313 = vmatprep.subr.bf16.mxu0 0
    %2314 = vmatpush1.bf16.msra.mxu0 %v2299
    %2315 = vmatprep.subr.bf16.mxu0 0
    %2316 = vmatpush1.bf16.msra.mxu0 %v2300
    %2317 = vmatprep.subr.bf16.mxu0 0
    %2318 = vmatpush1.bf16.msra.mxu0 %v2301
    %2319 = vmatprep.subr.bf16.mxu0 0
    %2320 = vmatpush1.bf16.msra.mxu0 0
    %2321 = vmatprep.subr.bf16.mxu0 0
    %2322 = vmatpush1.bf16.msra.mxu0 0
    %2323 = vmatprep.subr.bf16.mxu0 0
    %2324 = vmatpush1.bf16.msra.mxu0 0
    %2325 = vmatprep.subr.bf16.mxu0 0
    %2326 = vmatpush1.bf16.msra.mxu0 0
    %2327 = vmatprep.subr.bf16.mxu0 0
    %2328 = vmatpush1.bf16.msra.mxu0 0
    %2329 = vmatprep.subr.bf16.mxu0 0
    %2330 = vmatpush1.bf16.msra.mxu0 0
    %2331 = vmatprep.subr.bf16.mxu0 0
    %2332 = vmatpush1.bf16.msra.mxu0 0
    %2333 = vmatprep.subr.bf16.mxu0 0
    %2334 = vmatpush1.bf16.msra.mxu0 0
    %2335 = vmatprep.subr.bf16.mxu0 0
    %2336 = vmatpush1.bf16.msra.mxu0 0
    %2337 = vmatprep.subr.bf16.mxu0 0
    %2338 = vmatpush1.bf16.msra.mxu0 0
    %2339 = vmatprep.subr.bf16.mxu0 0
    %2340 = vmatpush1.bf16.msra.mxu0 0
    %2341 = vmatprep.subr.bf16.mxu0 0
    %2342 = vmatpush1.bf16.msra.mxu0 0
    %2343 = vmatprep.mubr.bf16.mxu0 0
    %2344 = vmatmul.mubr.bf16.gmra.mrb[0].mxu0 %v2303
    %v2345 = vpop.f32.mrb[0].mxu0
    %v2346 = vadd.f32 0.0, %v2345
    %v2347 = vpop.f32.mrb[0].mxu0
    %v2348 = vpop.f32.mrb[0].mxu0
    %v2349 = vadd.f32 0.0, %v2348
    %v2350 = vpop.f32.mrb[0].mxu0
    %2351 = vmatprep.mubr.bf16.mxu0 0
    %2352 = vmatmul.mubr.bf16.gmra.mrb[0].mxu0 %v2306
    %v2353 = vpop.f32.mrb[0].mxu0
    %v2354 = vadd.f32 0.0, %v2353
    %v2355 = vpop.f32.mrb[0].mxu0
    %v2356 = vpop.f32.mrb[0].mxu0
    %v2357 = vadd.f32 0.0, %v2356
    %v2358 = vpop.f32.mrb[0].mxu0
    %2359 = vmatprep.mubr.bf16.mxu0 0
    %2360 = vmatmul.mubr.bf16.gmra.mrb[0].mxu0 %v2309
    %v2361 = vpop.f32.mrb[0].mxu0
    %v2362 = vadd.f32 0.0, %v2361
    %v2363 = vpop.f32.mrb[0].mxu0
    %v2364 = vpop.f32.mrb[0].mxu0
    %v2365 = vadd.f32 0.0, %v2364
    %v2366 = vpop.f32.mrb[0].mxu0
    %2367 = vdwg.mxu0
    %v2368 = vadd.f32 %v2065, %v2346
    %v2369 = vadd.f32 %v2066, %v2349
    %v2370 = vadd.f32 %v2067, %v2354
    %v2371 = vadd.f32 %v2068, %v2357
    %v2372 = vadd.f32 %v2069, %v2362
    %v2373 = vadd.f32 %v2070, %v2365
    %v2374 = vld [vmem:[%s17] sm:$0x1]
    %v2376 = vlaneseq
    %v2377 = vshrl.u32 %v2376, 7
    %v2378 = vsub.s32 0, %v2377
    %v2379 = vrot.slane %v2374, %v2378
    %v2381 = vadd.f32 %v2368, %v2379
    %v2382 = vadd.f32 %v2369, %v2379
    %v2383 = vadd.f32 %v2370, %v2379
    %v2384 = vadd.f32 %v2371, %v2379
    %v2385 = vadd.f32 %v2372, %v2379
    %v2386 = vadd.f32 %v2373, %v2379
    %s2387 = scalar_lea.vmem %s6, 1
    %v2388 = vld [vmem:[%s2387] sm:$0x1]
    %s2389 = scalar_lea.vmem %s7, 1
    %v2390 = vld [vmem:[%s2389] sm:$0x1]
    %v2391 = vsel %vm161, %v2381, 0.0
    %2392 = vadd.xlane.f32.xlu0 %v2391
    %v2393 = vpop.xlane.xlu0 %2392
    %v2394 = vsel %vm161, %v2382, 0.0
    %2395 = vadd.xlane.f32.xlu0 %v2394
    %v2396 = vpop.xlane.xlu0 %2395
    %v2397 = vsel %vm161, %v2383, 0.0
    %2398 = vadd.xlane.f32.xlu0 %v2397
    %v2399 = vpop.xlane.xlu0 %2398
    %v2400 = vsel %vm161, %v2384, 0.0
    %2401 = vadd.xlane.f32.xlu0 %v2400
    %v2402 = vpop.xlane.xlu0 %2401
    %v2403 = vsel %vm161, %v2385, 0.0
    %2404 = vadd.xlane.f32.xlu0 %v2403
    %v2405 = vpop.xlane.xlu0 %2404
    %v2406 = vsel %vm161, %v2386, 0.0
    %2407 = vadd.xlane.f32.xlu0 %v2406
    %v2408 = vpop.xlane.xlu0 %2407
    %v2409 = vmul.f32 %v2393, %v204
    %v2410 = vmul.f32 %v2396, %v204
    %v2411 = vmul.f32 %v2399, %v204
    %v2412 = vmul.f32 %v2402, %v204
    %v2413 = vmul.f32 %v2405, %v204
    %v2414 = vmul.f32 %v2408, %v204
    %v2415 = vsub.f32 %v2381, %v2409
    %v2416 = vsub.f32 %v2382, %v2410
    %v2417 = vsub.f32 %v2383, %v2411
    %v2418 = vsub.f32 %v2384, %v2412
    %v2419 = vsub.f32 %v2385, %v2413
    %v2420 = vsub.f32 %v2386, %v2414
    %v2421 = vmul.f32 %v2415, %v2415
    %v2422 = vmul.f32 %v2416, %v2416
    %v2423 = vmul.f32 %v2417, %v2417
    %v2424 = vmul.f32 %v2418, %v2418
    %v2425 = vmul.f32 %v2419, %v2419
    %v2426 = vmul.f32 %v2420, %v2420
    %v2427 = vsel %vm161, %v2421, 0.0
    %2428 = vadd.xlane.f32.xlu0 %v2427
    %v2429 = vpop.xlane.xlu0 %2428
    %v2430 = vsel %vm161, %v2422, 0.0
    %2431 = vadd.xlane.f32.xlu0 %v2430
    %v2432 = vpop.xlane.xlu0 %2431
    %v2433 = vsel %vm161, %v2423, 0.0
    %2434 = vadd.xlane.f32.xlu0 %v2433
    %v2435 = vpop.xlane.xlu0 %2434
    %v2436 = vsel %vm161, %v2424, 0.0
    %2437 = vadd.xlane.f32.xlu0 %v2436
    %v2438 = vpop.xlane.xlu0 %2437
    %v2439 = vsel %vm161, %v2425, 0.0
    %2440 = vadd.xlane.f32.xlu0 %v2439
    %v2441 = vpop.xlane.xlu0 %2440
    %v2442 = vsel %vm161, %v2426, 0.0
    %2443 = vadd.xlane.f32.xlu0 %v2442
    %v2444 = vpop.xlane.xlu0 %2443
    %v2445 = vmul.f32 %v2429, %v204
    %v2446 = vmul.f32 %v2432, %v204
    %v2447 = vmul.f32 %v2435, %v204
    %v2448 = vmul.f32 %v2438, %v204
    %v2449 = vmul.f32 %v2441, %v204
    %v2450 = vmul.f32 %v2444, %v204
    %v2451 = vadd.f32 %v2445, 1e-05
    %v2452 = vadd.f32 %v2446, 1e-05
    %v2453 = vadd.f32 %v2447, 1e-05
    %v2454 = vadd.f32 %v2448, 1e-05
    %v2455 = vadd.f32 %v2449, 1e-05
    %v2456 = vadd.f32 %v2450, 1e-05
    %v2457 = vrsqrt.pop %v2451
    %v2458 = vrsqrt.pop %v2452
    %v2459 = vrsqrt.pop %v2453
    %v2460 = vrsqrt.pop %v2454
    %v2461 = vrsqrt.pop %v2455
    %v2462 = vrsqrt.pop %v2456
    %v2463 = vmul.f32 %v2415, %v2457
    %v2464 = vmul.f32 %v2416, %v2458
    %v2465 = vmul.f32 %v2417, %v2459
    %v2466 = vmul.f32 %v2418, %v2460
    %v2467 = vmul.f32 %v2419, %v2461
    %v2468 = vmul.f32 %v2420, %v2462
    %v2470 = vlaneseq
    %v2471 = vshrl.u32 %v2470, 7
    %v2472 = vsub.s32 0, %v2471
    %v2473 = vrot.slane %v2388, %v2472
    %v2475 = vmul.f32 %v2463, %v2473
    %v2476 = vmul.f32 %v2464, %v2473
    %v2477 = vmul.f32 %v2465, %v2473
    %v2478 = vmul.f32 %v2466, %v2473
    %v2479 = vmul.f32 %v2467, %v2473
    %v2480 = vmul.f32 %v2468, %v2473
    %v2482 = vlaneseq
    %v2483 = vshrl.u32 %v2482, 7
    %v2484 = vsub.s32 0, %v2483
    %v2485 = vrot.slane %v2390, %v2484
    %v2487 = vadd.f32 %v2475, %v2485
    %v2488 = vadd.f32 %v2476, %v2485
    %v2489 = vadd.f32 %v2477, %v2485
    %v2490 = vadd.f32 %v2478, %v2485
    %v2491 = vadd.f32 %v2479, %v2485
    %v2492 = vadd.f32 %v2480, %v2485
    %s2493 = scalar_lea.vmem %s8, 32
    %v2494 = vld [vmem:[%s2493] sm:$0xff]
    %v2495 = vld [vmem:[%s2493 + $0x8] sm:$0xff]
    %v2496 = vld [vmem:[%s2493 + $0x10] sm:$0xff]
    %v2497 = vld [vmem:[%s2493 + $0x18] sm:$0xff]
    %v2498 = vpack.c.bf16 %v2488, %v2487
    %v2499 = vpack.c.bf16 %v2490, %v2489
    %v2500 = vpack.c.bf16 %v2492, %v2491
    %v2501 = vpack.c.bf16 %v2495, %v2494
    %v2502 = vpack.c.bf16 %v2497, %v2496
    %s2503 = scalar_lea.vmem %s9, 1
    %v2504 = vld [vmem:[%s2503] sm:$0x1]
    %v2506 = vlaneseq
    %v2507 = vshrl.u32 %v2506, 7
    %v2508 = vsub.s32 0, %v2507
    %v2509 = vrot.slane %v2504, %v2508
    %v2512 = vsel %vm161, %v2498, 0
    %v2515 = vsel %vm161, %v2499, 0
    %v2518 = vsel %vm161, %v2500, 0
    %2520 = vmatprep.subr.bf16.mxu0 0
    %2521 = vmatpush1.bf16.msra.mxu0 %v2501
    %2522 = vmatprep.subr.bf16.mxu0 0
    %2523 = vmatpush1.bf16.msra.mxu0 %v2502
    %2524 = vmatprep.subr.bf16.mxu0 0
    %2525 = vmatpush1.bf16.msra.mxu0 0
    %2526 = vmatprep.subr.bf16.mxu0 0
    %2527 = vmatpush1.bf16.msra.mxu0 0
    %2528 = vmatprep.subr.bf16.mxu0 0
    %2529 = vmatpush1.bf16.msra.mxu0 0
    %2530 = vmatprep.subr.bf16.mxu0 0
    %2531 = vmatpush1.bf16.msra.mxu0 0
    %2532 = vmatprep.subr.bf16.mxu0 0
    %2533 = vmatpush1.bf16.msra.mxu0 0
    %2534 = vmatprep.subr.bf16.mxu0 0
    %2535 = vmatpush1.bf16.msra.mxu0 0
    %2536 = vmatprep.subr.bf16.mxu0 0
    %2537 = vmatpush1.bf16.msra.mxu0 0
    %2538 = vmatprep.subr.bf16.mxu0 0
    %2539 = vmatpush1.bf16.msra.mxu0 0
    %2540 = vmatprep.subr.bf16.mxu0 0
    %2541 = vmatpush1.bf16.msra.mxu0 0
    %2542 = vmatprep.subr.bf16.mxu0 0
    %2543 = vmatpush1.bf16.msra.mxu0 0
    %2544 = vmatprep.subr.bf16.mxu0 0
    %2545 = vmatpush1.bf16.msra.mxu0 0
    %2546 = vmatprep.subr.bf16.mxu0 0
    %2547 = vmatpush1.bf16.msra.mxu0 0
    %2548 = vmatprep.subr.bf16.mxu0 0
    %2549 = vmatpush1.bf16.msra.mxu0 0
    %2550 = vmatprep.subr.bf16.mxu0 0
    %2551 = vmatpush1.bf16.msra.mxu0 0
    %2552 = vmatprep.mubr.bf16.mxu0 0
    %2553 = vmatmul.mubr.bf16.gmra.mrb[0].mxu0 %v2512
    %v2554 = vpop.f32.mrb[0].mxu0
    %v2555 = vadd.f32 %v2509, %v2554
    %v2556 = vpop.f32.mrb[0].mxu0
    %v2557 = vpop.f32.mrb[0].mxu0
    %v2558 = vadd.f32 %v2509, %v2557
    %v2559 = vpop.f32.mrb[0].mxu0
    %2560 = vmatprep.mubr.bf16.mxu0 0
    %2561 = vmatmul.mubr.bf16.gmra.mrb[0].mxu0 %v2515
    %v2562 = vpop.f32.mrb[0].mxu0
    %v2563 = vadd.f32 %v2509, %v2562
    %v2564 = vpop.f32.mrb[0].mxu0
    %v2565 = vpop.f32.mrb[0].mxu0
    %v2566 = vadd.f32 %v2509, %v2565
    %v2567 = vpop.f32.mrb[0].mxu0
    %2568 = vmatprep.mubr.bf16.mxu0 0
    %2569 = vmatmul.mubr.bf16.gmra.mrb[0].mxu0 %v2518
    %v2570 = vpop.f32.mrb[0].mxu0
    %v2571 = vadd.f32 %v2509, %v2570
    %v2572 = vpop.f32.mrb[0].mxu0
    %v2573 = vpop.f32.mrb[0].mxu0
    %v2574 = vadd.f32 %v2509, %v2573
    %v2575 = vpop.f32.mrb[0].mxu0
    %2576 = vdwg.mxu0
    %s2577 = scalar_lea.vmem %s10, 32
    %v2578 = vld [vmem:[%s2577] sm:$0xff]
    %v2579 = vld [vmem:[%s2577 + $0x8] sm:$0xff]
    %v2580 = vld [vmem:[%s2577 + $0x10] sm:$0xff]
    %v2581 = vld [vmem:[%s2577 + $0x18] sm:$0xff]
    %v2582 = vpack.c.bf16 %v2558, %v2555
    %v2583 = vpack.c.bf16 %v2563, %v2563
    %v2584 = vpack.c.bf16 %v2571, %v2566
    %v2585 = vpack.c.bf16 %v2574, %v2574
    %2588 = vrot.lane.b32.xlu0 %v2582, 96
    %v2589 = vpop.permute.xlu0 %2588
    %2590 = vrot.lane.b32.xlu0 %v2583, 96
    %v2591 = vpop.permute.xlu0 %2590
    %v2593 = vsel %vm385, %v2582, 0
    %v2596 = vsel %vm385, %v2583, 0
    %v2599 = vsel %vm385, %v2589, 0
    %v2602 = vsel %vm385, %v2591, 0
    %2604 = vmatprep.subr.bf16.mxu0 0
    %2605 = vmatpush1.bf16.xpose.msra.mxu0 %v2599
    %2606 = vmatprep.subr.bf16.mxu0 0
    %2607 = vmatpush1.bf16.xpose.msra.mxu0 %v2602
    %2608 = vmatprep.subr.bf16.mxu0 0
    %2609 = vmatpush1.bf16.xpose.msra.mxu0 0
    %2610 = vmatprep.subr.bf16.mxu0 0
    %2611 = vmatpush1.bf16.xpose.msra.mxu0 0
    %2612 = vmatprep.subr.bf16.mxu0 0
    %2613 = vmatpush1.bf16.xpose.msra.mxu0 0
    %2614 = vmatprep.subr.bf16.mxu0 0
    %2615 = vmatpush1.bf16.xpose.msra.mxu0 0
    %2616 = vmatprep.subr.bf16.mxu0 0
    %2617 = vmatpush1.bf16.xpose.msra.mxu0 0
    %2618 = vmatprep.subr.bf16.mxu0 0
    %2619 = vmatpush1.bf16.xpose.msra.mxu0 0
    %2620 = vmatprep.subr.bf16.mxu0 0
    %2621 = vmatpush1.bf16.xpose.msra.mxu0 0
    %2622 = vmatprep.subr.bf16.mxu0 0
    %2623 = vmatpush1.bf16.xpose.msra.mxu0 0
    %2624 = vmatprep.subr.bf16.mxu0 0
    %2625 = vmatpush1.bf16.xpose.msra.mxu0 0
    %2626 = vmatprep.subr.bf16.mxu0 0
    %2627 = vmatpush1.bf16.xpose.msra.mxu0 0
    %2628 = vmatprep.subr.bf16.mxu0 0
    %2629 = vmatpush1.bf16.xpose.msra.mxu0 0
    %2630 = vmatprep.subr.bf16.mxu0 0
    %2631 = vmatpush1.bf16.xpose.msra.mxu0 0
    %2632 = vmatprep.subr.bf16.mxu0 0
    %2633 = vmatpush1.bf16.xpose.msra.mxu0 0
    %2634 = vmatprep.subr.bf16.mxu0 0
    %2635 = vmatpush1.bf16.xpose.msra.mxu0 0
    %2636 = vmatprep.mubr.bf16.mxu0 0
    %2637 = vmatmul.mubr.bf16.gmra.mrb[0].mxu0 %v2593
    %v2638 = vpop.f32.mrb[0].mxu0
    %v2639 = vadd.f32 0.0, %v2638
    %v2640 = vpop.f32.mrb[0].mxu0
    %v2641 = vpop.f32.mrb[0].mxu0
    %v2642 = vadd.f32 0.0, %v2641
    %v2643 = vpop.f32.mrb[0].mxu0
    %2644 = vmatprep.mubr.bf16.mxu0 0
    %2645 = vmatmul.mubr.bf16.gmra.mrb[0].mxu0 %v2596
    %v2646 = vpop.f32.mrb[0].mxu0
    %v2647 = vadd.f32 0.0, %v2646
    %v2648 = vpop.f32.mrb[0].mxu0
    %v2649 = vpop.f32.mrb[0].mxu0
    %v2650 = vpop.f32.mrb[0].mxu0
    %2651 = vdwg.mxu0
    %2654 = vrot.lane.b32.xlu0 %v2584, 96
    %v2655 = vpop.permute.xlu0 %2654
    %2656 = vrot.lane.b32.xlu0 %v2585, 96
    %v2657 = vpop.permute.xlu0 %2656
    %v2659 = vsel %vm385, %v2584, 0
    %v2662 = vsel %vm385, %v2585, 0
    %v2665 = vsel %vm385, %v2655, 0
    %v2668 = vsel %vm385, %v2657, 0
    %2670 = vmatprep.subr.bf16.mxu0 0
    %2671 = vmatpush1.bf16.xpose.msra.mxu0 %v2665
    %2672 = vmatprep.subr.bf16.mxu0 0
    %2673 = vmatpush1.bf16.xpose.msra.mxu0 %v2668
    %2674 = vmatprep.subr.bf16.mxu0 0
    %2675 = vmatpush1.bf16.xpose.msra.mxu0 0
    %2676 = vmatprep.subr.bf16.mxu0 0
    %2677 = vmatpush1.bf16.xpose.msra.mxu0 0
    %2678 = vmatprep.subr.bf16.mxu0 0
    %2679 = vmatpush1.bf16.xpose.msra.mxu0 0
    %2680 = vmatprep.subr.bf16.mxu0 0
    %2681 = vmatpush1.bf16.xpose.msra.mxu0 0
    %2682 = vmatprep.subr.bf16.mxu0 0
    %2683 = vmatpush1.bf16.xpose.msra.mxu0 0
    %2684 = vmatprep.subr.bf16.mxu0 0
    %2685 = vmatpush1.bf16.xpose.msra.mxu0 0
    %2686 = vmatprep.subr.bf16.mxu0 0
    %2687 = vmatpush1.bf16.xpose.msra.mxu0 0
    %2688 = vmatprep.subr.bf16.mxu0 0
    %2689 = vmatpush1.bf16.xpose.msra.mxu0 0
    %2690 = vmatprep.subr.bf16.mxu0 0
    %2691 = vmatpush1.bf16.xpose.msra.mxu0 0
    %2692 = vmatprep.subr.bf16.mxu0 0
    %2693 = vmatpush1.bf16.xpose.msra.mxu0 0
    %2694 = vmatprep.subr.bf16.mxu0 0
    %2695 = vmatpush1.bf16.xpose.msra.mxu0 0
    %2696 = vmatprep.subr.bf16.mxu0 0
    %2697 = vmatpush1.bf16.xpose.msra.mxu0 0
    %2698 = vmatprep.subr.bf16.mxu0 0
    %2699 = vmatpush1.bf16.xpose.msra.mxu0 0
    %2700 = vmatprep.subr.bf16.mxu0 0
    %2701 = vmatpush1.bf16.xpose.msra.mxu0 0
    %2702 = vmatprep.mubr.bf16.mxu0 0
    %2703 = vmatmul.mubr.bf16.gmra.mrb[0].mxu0 %v2659
    %v2704 = vpop.f32.mrb[0].mxu0
    %v2705 = vadd.f32 0.0, %v2704
    %v2706 = vpop.f32.mrb[0].mxu0
    %v2707 = vpop.f32.mrb[0].mxu0
    %v2708 = vadd.f32 0.0, %v2707
    %v2709 = vpop.f32.mrb[0].mxu0
    %2710 = vmatprep.mubr.bf16.mxu0 0
    %2711 = vmatmul.mubr.bf16.gmra.mrb[0].mxu0 %v2662
    %v2712 = vpop.f32.mrb[0].mxu0
    %v2713 = vadd.f32 0.0, %v2712
    %v2714 = vpop.f32.mrb[0].mxu0
    %v2715 = vpop.f32.mrb[0].mxu0
    %v2716 = vpop.f32.mrb[0].mxu0
    %2717 = vdwg.mxu0
    %v2718 = vmul.f32 %v2639, 0.35355338
    %v2719 = vmul.f32 %v2642, 0.35355338
    %v2720 = vmul.f32 %v2647, 0.35355338
    %v2721 = vmul.f32 %v2705, 0.35355338
    %v2722 = vmul.f32 %v2708, 0.35355338
    %v2723 = vmul.f32 %v2713, 0.35355338
    %v2724 = vsel %vm519, %v2718, -1e+30
    %v2725 = vsel %vm519, %v2719, -1e+30
    %v2726 = vsel %vm519, %v2720, -1e+30
    %v2727 = vsel %vm519, %v2721, -1e+30
    %v2728 = vsel %vm519, %v2722, -1e+30
    %v2729 = vsel %vm519, %v2723, -1e+30
    %v2730 = vsel %vm526, %v2724, -inf
    %2731 = vmax.xlane.f32.xlu0 %v2730
    %v2732 = vpop.xlane.xlu0 %2731
    %v2733 = vsel %vm526, %v2725, -inf
    %2734 = vmax.xlane.f32.xlu0 %v2733
    %v2735 = vpop.xlane.xlu0 %2734
    %v2736 = vsel %vm526, %v2726, -inf
    %2737 = vmax.xlane.f32.xlu0 %v2736
    %v2738 = vpop.xlane.xlu0 %2737
    %v2739 = vsel %vm526, %v2727, -inf
    %2740 = vmax.xlane.f32.xlu0 %v2739
    %v2741 = vpop.xlane.xlu0 %2740
    %v2742 = vsel %vm526, %v2728, -inf
    %2743 = vmax.xlane.f32.xlu0 %v2742
    %v2744 = vpop.xlane.xlu0 %2743
    %v2745 = vsel %vm526, %v2729, -inf
    %2746 = vmax.xlane.f32.xlu0 %v2745
    %v2747 = vpop.xlane.xlu0 %2746
    %v2748 = vsub.f32 %v2724, %v2732
    %v2749 = vsub.f32 %v2725, %v2735
    %v2750 = vsub.f32 %v2726, %v2738
    %v2751 = vsub.f32 %v2727, %v2741
    %v2752 = vsub.f32 %v2728, %v2744
    %v2753 = vsub.f32 %v2729, %v2747
    %v2754 = vmul.f32 %v2748, 1.442695
    %v2755 = vpow.pop %v2754
    %v2756 = vmul.f32 %v2749, 1.442695
    %v2757 = vpow.pop %v2756
    %v2758 = vmul.f32 %v2750, 1.442695
    %v2759 = vpow.pop %v2758
    %v2760 = vmul.f32 %v2751, 1.442695
    %v2761 = vpow.pop %v2760
    %v2762 = vmul.f32 %v2752, 1.442695
    %v2763 = vpow.pop %v2762
    %v2764 = vmul.f32 %v2753, 1.442695
    %v2765 = vpow.pop %v2764
    %v2766 = vsel %vm526, %v2755, 0.0
    %2767 = vadd.xlane.f32.xlu0 %v2766
    %v2768 = vpop.xlane.xlu0 %2767
    %v2769 = vsel %vm526, %v2757, 0.0
    %2770 = vadd.xlane.f32.xlu0 %v2769
    %v2771 = vpop.xlane.xlu0 %2770
    %v2772 = vsel %vm526, %v2759, 0.0
    %2773 = vadd.xlane.f32.xlu0 %v2772
    %v2774 = vpop.xlane.xlu0 %2773
    %v2775 = vsel %vm526, %v2761, 0.0
    %2776 = vadd.xlane.f32.xlu0 %v2775
    %v2777 = vpop.xlane.xlu0 %2776
    %v2778 = vsel %vm526, %v2763, 0.0
    %2779 = vadd.xlane.f32.xlu0 %v2778
    %v2780 = vpop.xlane.xlu0 %2779
    %v2781 = vsel %vm526, %v2765, 0.0
    %2782 = vadd.xlane.f32.xlu0 %v2781
    %v2783 = vpop.xlane.xlu0 %2782
    %v2784 = vrcp.pop %v2768
    %v2785 = vmul.f32 %v2755, %v2784
    %v2786 = vrcp.pop %v2771
    %v2787 = vmul.f32 %v2757, %v2786
    %v2788 = vrcp.pop %v2774
    %v2789 = vmul.f32 %v2759, %v2788
    %v2790 = vrcp.pop %v2777
    %v2791 = vmul.f32 %v2761, %v2790
    %v2792 = vrcp.pop %v2780
    %v2793 = vmul.f32 %v2763, %v2792
    %v2794 = vrcp.pop %v2783
    %v2795 = vmul.f32 %v2765, %v2794
    %v2796 = vpack.c.bf16 %v2787, %v2785
    %v2797 = vpack.c.bf16 %v2789, %v2789
    %v2798 = vpack.c.bf16 %v2793, %v2791
    %v2799 = vpack.c.bf16 %v2795, %v2795
    %2800 = vrot.lane.b32.xlu0 %v2582, 64
    %v2801 = vpop.permute.xlu0 %2800
    %2802 = vrot.lane.b32.xlu0 %v2583, 64
    %v2803 = vpop.permute.xlu0 %2802
    %v2806 = vsel %vm526, %v2796, 0
    %v2809 = vsel %vm526, %v2797, 0
    %v2812 = vsel %vm608, %v2803, 0
    %2814 = vmatprep.subr.bf16.mxu0 0
    %2815 = vmatpush1.bf16.msra.mxu0 %v2801
    %2816 = vmatprep.subr.bf16.mxu0 0
    %2817 = vmatpush1.bf16.msra.mxu0 %v2812
    %2818 = vmatprep.subr.bf16.mxu0 0
    %2819 = vmatpush1.bf16.msra.mxu0 0
    %2820 = vmatprep.subr.bf16.mxu0 0
    %2821 = vmatpush1.bf16.msra.mxu0 0
    %2822 = vmatprep.subr.bf16.mxu0 0
    %2823 = vmatpush1.bf16.msra.mxu0 0
    %2824 = vmatprep.subr.bf16.mxu0 0
    %2825 = vmatpush1.bf16.msra.mxu0 0
    %2826 = vmatprep.subr.bf16.mxu0 0
    %2827 = vmatpush1.bf16.msra.mxu0 0
    %2828 = vmatprep.subr.bf16.mxu0 0
    %2829 = vmatpush1.bf16.msra.mxu0 0
    %2830 = vmatprep.subr.bf16.mxu0 0
    %2831 = vmatpush1.bf16.msra.mxu0 0
    %2832 = vmatprep.subr.bf16.mxu0 0
    %2833 = vmatpush1.bf16.msra.mxu0 0
    %2834 = vmatprep.subr.bf16.mxu0 0
    %2835 = vmatpush1.bf16.msra.mxu0 0
    %2836 = vmatprep.subr.bf16.mxu0 0
    %2837 = vmatpush1.bf16.msra.mxu0 0
    %2838 = vmatprep.subr.bf16.mxu0 0
    %2839 = vmatpush1.bf16.msra.mxu0 0
    %2840 = vmatprep.subr.bf16.mxu0 0
    %2841 = vmatpush1.bf16.msra.mxu0 0
    %2842 = vmatprep.subr.bf16.mxu0 0
    %2843 = vmatpush1.bf16.msra.mxu0 0
    %2844 = vmatprep.subr.bf16.mxu0 0
    %2845 = vmatpush1.bf16.msra.mxu0 0
    %2846 = vmatprep.mubr.bf16.mxu0 0
    %2847 = vmatmul.mubr.bf16.gmra.mrb[0].mxu0 %v2806
    %v2848 = vpop.f32.mrb[0].mxu0
    %v2849 = vadd.f32 0.0, %v2848
    %v2850 = vpop.f32.mrb[0].mxu0
    %v2851 = vpop.f32.mrb[0].mxu0
    %v2852 = vadd.f32 0.0, %v2851
    %v2853 = vpop.f32.mrb[0].mxu0
    %2854 = vmatprep.mubr.bf16.mxu0 0
    %2855 = vmatmul.mubr.bf16.gmra.mrb[0].mxu0 %v2809
    %v2856 = vpop.f32.mrb[0].mxu0
    %v2857 = vadd.f32 0.0, %v2856
    %v2858 = vpop.f32.mrb[0].mxu0
    %v2859 = vpop.f32.mrb[0].mxu0
    %v2860 = vpop.f32.mrb[0].mxu0
    %2861 = vdwg.mxu0
    %2862 = vrot.lane.b32.xlu0 %v2584, 64
    %v2863 = vpop.permute.xlu0 %2862
    %2864 = vrot.lane.b32.xlu0 %v2585, 64
    %v2865 = vpop.permute.xlu0 %2864
    %v2868 = vsel %vm526, %v2798, 0
    %v2871 = vsel %vm526, %v2799, 0
    %v2874 = vsel %vm608, %v2865, 0
    %2876 = vmatprep.subr.bf16.mxu0 0
    %2877 = vmatpush1.bf16.msra.mxu0 %v2863
    %2878 = vmatprep.subr.bf16.mxu0 0
    %2879 = vmatpush1.bf16.msra.mxu0 %v2874
    %2880 = vmatprep.subr.bf16.mxu0 0
    %2881 = vmatpush1.bf16.msra.mxu0 0
    %2882 = vmatprep.subr.bf16.mxu0 0
    %2883 = vmatpush1.bf16.msra.mxu0 0
    %2884 = vmatprep.subr.bf16.mxu0 0
    %2885 = vmatpush1.bf16.msra.mxu0 0
    %2886 = vmatprep.subr.bf16.mxu0 0
    %2887 = vmatpush1.bf16.msra.mxu0 0
    %2888 = vmatprep.subr.bf16.mxu0 0
    %2889 = vmatpush1.bf16.msra.mxu0 0
    %2890 = vmatprep.subr.bf16.mxu0 0
    %2891 = vmatpush1.bf16.msra.mxu0 0
    %2892 = vmatprep.subr.bf16.mxu0 0
    %2893 = vmatpush1.bf16.msra.mxu0 0
    %2894 = vmatprep.subr.bf16.mxu0 0
    %2895 = vmatpush1.bf16.msra.mxu0 0
    %2896 = vmatprep.subr.bf16.mxu0 0
    %2897 = vmatpush1.bf16.msra.mxu0 0
    %2898 = vmatprep.subr.bf16.mxu0 0
    %2899 = vmatpush1.bf16.msra.mxu0 0
    %2900 = vmatprep.subr.bf16.mxu0 0
    %2901 = vmatpush1.bf16.msra.mxu0 0
    %2902 = vmatprep.subr.bf16.mxu0 0
    %2903 = vmatpush1.bf16.msra.mxu0 0
    %2904 = vmatprep.subr.bf16.mxu0 0
    %2905 = vmatpush1.bf16.msra.mxu0 0
    %2906 = vmatprep.subr.bf16.mxu0 0
    %2907 = vmatpush1.bf16.msra.mxu0 0
    %2908 = vmatprep.mubr.bf16.mxu0 0
    %2909 = vmatmul.mubr.bf16.gmra.mrb[0].mxu0 %v2868
    %v2910 = vpop.f32.mrb[0].mxu0
    %v2911 = vadd.f32 0.0, %v2910
    %v2912 = vpop.f32.mrb[0].mxu0
    %v2913 = vpop.f32.mrb[0].mxu0
    %v2914 = vadd.f32 0.0, %v2913
    %v2915 = vpop.f32.mrb[0].mxu0
    %2916 = vmatprep.mubr.bf16.mxu0 0
    %2917 = vmatmul.mubr.bf16.gmra.mrb[0].mxu0 %v2871
    %v2918 = vpop.f32.mrb[0].mxu0
    %v2919 = vadd.f32 0.0, %v2918
    %v2920 = vpop.f32.mrb[0].mxu0
    %v2921 = vpop.f32.mrb[0].mxu0
    %v2922 = vpop.f32.mrb[0].mxu0
    %2923 = vdwg.mxu0
    %v2924 = vpack.c.bf16 %v2852, %v2849
    %v2925 = vpack.c.bf16 %v2911, %v2857
    %v2926 = vpack.c.bf16 %v2919, %v2914
    %v2927 = vpack.c.bf16 %v2578, %v2578
    %2928 = vrot.lane.b32.xlu0 %v2582, 120
    %v2929 = vpop.permute.xlu0 %2928
    %2930 = vrot.lane.b32.xlu0 %v2583, 120
    %v2931 = vpop.permute.xlu0 %2930
    %2932 = vrot.lane.b32.xlu0 %v2582, 88
    %v2933 = vpop.permute.xlu0 %2932
    %2934 = vrot.lane.b32.xlu0 %v2583, 88
    %v2935 = vpop.permute.xlu0 %2934
    %v2937 = vsel %vm385, %v2929, 0
    %v2940 = vsel %vm385, %v2931, 0
    %v2943 = vsel %vm385, %v2933, 0
    %v2946 = vsel %vm385, %v2935, 0
    %2948 = vmatprep.subr.bf16.mxu0 0
    %2949 = vmatpush1.bf16.xpose.msra.mxu0 %v2943
    %2950 = vmatprep.subr.bf16.mxu0 0
    %2951 = vmatpush1.bf16.xpose.msra.mxu0 %v2946
    %2952 = vmatprep.subr.bf16.mxu0 0
    %2953 = vmatpush1.bf16.xpose.msra.mxu0 0
    %2954 = vmatprep.subr.bf16.mxu0 0
    %2955 = vmatpush1.bf16.xpose.msra.mxu0 0
    %2956 = vmatprep.subr.bf16.mxu0 0
    %2957 = vmatpush1.bf16.xpose.msra.mxu0 0
    %2958 = vmatprep.subr.bf16.mxu0 0
    %2959 = vmatpush1.bf16.xpose.msra.mxu0 0
    %2960 = vmatprep.subr.bf16.mxu0 0
    %2961 = vmatpush1.bf16.xpose.msra.mxu0 0
    %2962 = vmatprep.subr.bf16.mxu0 0
    %2963 = vmatpush1.bf16.xpose.msra.mxu0 0
    %2964 = vmatprep.subr.bf16.mxu0 0
    %2965 = vmatpush1.bf16.xpose.msra.mxu0 0
    %2966 = vmatprep.subr.bf16.mxu0 0
    %2967 = vmatpush1.bf16.xpose.msra.mxu0 0
    %2968 = vmatprep.subr.bf16.mxu0 0
    %2969 = vmatpush1.bf16.xpose.msra.mxu0 0
    %2970 = vmatprep.subr.bf16.mxu0 0
    %2971 = vmatpush1.bf16.xpose.msra.mxu0 0
    %2972 = vmatprep.subr.bf16.mxu0 0
    %2973 = vmatpush1.bf16.xpose.msra.mxu0 0
    %2974 = vmatprep.subr.bf16.mxu0 0
    %2975 = vmatpush1.bf16.xpose.msra.mxu0 0
    %2976 = vmatprep.subr.bf16.mxu0 0
    %2977 = vmatpush1.bf16.xpose.msra.mxu0 0
    %2978 = vmatprep.subr.bf16.mxu0 0
    %2979 = vmatpush1.bf16.xpose.msra.mxu0 0
    %2980 = vmatprep.mubr.bf16.mxu0 0
    %2981 = vmatmul.mubr.bf16.gmra.mrb[0].mxu0 %v2937
    %v2982 = vpop.f32.mrb[0].mxu0
    %v2983 = vadd.f32 0.0, %v2982
    %v2984 = vpop.f32.mrb[0].mxu0
    %v2985 = vpop.f32.mrb[0].mxu0
    %v2986 = vadd.f32 0.0, %v2985
    %v2987 = vpop.f32.mrb[0].mxu0
    %2988 = vmatprep.mubr.bf16.mxu0 0
    %2989 = vmatmul.mubr.bf16.gmra.mrb[0].mxu0 %v2940
    %v2990 = vpop.f32.mrb[0].mxu0
    %v2991 = vadd.f32 0.0, %v2990
    %v2992 = vpop.f32.mrb[0].mxu0
    %v2993 = vpop.f32.mrb[0].mxu0
    %v2994 = vpop.f32.mrb[0].mxu0
    %2995 = vdwg.mxu0
    %2996 = vrot.lane.b32.xlu0 %v2584, 120
    %v2997 = vpop.permute.xlu0 %2996
    %2998 = vrot.lane.b32.xlu0 %v2585, 120
    %v2999 = vpop.permute.xlu0 %2998
    %3000 = vrot.lane.b32.xlu0 %v2584, 88
    %v3001 = vpop.permute.xlu0 %3000
    %3002 = vrot.lane.b32.xlu0 %v2585, 88
    %v3003 = vpop.permute.xlu0 %3002
    %v3005 = vsel %vm385, %v2997, 0
    %v3008 = vsel %vm385, %v2999, 0
    %v3011 = vsel %vm385, %v3001, 0
    %v3014 = vsel %vm385, %v3003, 0
    %3016 = vmatprep.subr.bf16.mxu0 0
    %3017 = vmatpush1.bf16.xpose.msra.mxu0 %v3011
    %3018 = vmatprep.subr.bf16.mxu0 0
    %3019 = vmatpush1.bf16.xpose.msra.mxu0 %v3014
    %3020 = vmatprep.subr.bf16.mxu0 0
    %3021 = vmatpush1.bf16.xpose.msra.mxu0 0
    %3022 = vmatprep.subr.bf16.mxu0 0
    %3023 = vmatpush1.bf16.xpose.msra.mxu0 0
    %3024 = vmatprep.subr.bf16.mxu0 0
    %3025 = vmatpush1.bf16.xpose.msra.mxu0 0
    %3026 = vmatprep.subr.bf16.mxu0 0
    %3027 = vmatpush1.bf16.xpose.msra.mxu0 0
    %3028 = vmatprep.subr.bf16.mxu0 0
    %3029 = vmatpush1.bf16.xpose.msra.mxu0 0
    %3030 = vmatprep.subr.bf16.mxu0 0
    %3031 = vmatpush1.bf16.xpose.msra.mxu0 0
    %3032 = vmatprep.subr.bf16.mxu0 0
    %3033 = vmatpush1.bf16.xpose.msra.mxu0 0
    %3034 = vmatprep.subr.bf16.mxu0 0
    %3035 = vmatpush1.bf16.xpose.msra.mxu0 0
    %3036 = vmatprep.subr.bf16.mxu0 0
    %3037 = vmatpush1.bf16.xpose.msra.mxu0 0
    %3038 = vmatprep.subr.bf16.mxu0 0
    %3039 = vmatpush1.bf16.xpose.msra.mxu0 0
    %3040 = vmatprep.subr.bf16.mxu0 0
    %3041 = vmatpush1.bf16.xpose.msra.mxu0 0
    %3042 = vmatprep.subr.bf16.mxu0 0
    %3043 = vmatpush1.bf16.xpose.msra.mxu0 0
    %3044 = vmatprep.subr.bf16.mxu0 0
    %3045 = vmatpush1.bf16.xpose.msra.mxu0 0
    %3046 = vmatprep.subr.bf16.mxu0 0
    %3047 = vmatpush1.bf16.xpose.msra.mxu0 0
    %3048 = vmatprep.mubr.bf16.mxu0 0
    %3049 = vmatmul.mubr.bf16.gmra.mrb[0].mxu0 %v3005
    %v3050 = vpop.f32.mrb[0].mxu0
    %v3051 = vadd.f32 0.0, %v3050
    %v3052 = vpop.f32.mrb[0].mxu0
    %v3053 = vpop.f32.mrb[0].mxu0
    %v3054 = vadd.f32 0.0, %v3053
    %v3055 = vpop.f32.mrb[0].mxu0
    %3056 = vmatprep.mubr.bf16.mxu0 0
    %3057 = vmatmul.mubr.bf16.gmra.mrb[0].mxu0 %v3008
    %v3058 = vpop.f32.mrb[0].mxu0
    %v3059 = vadd.f32 0.0, %v3058
    %v3060 = vpop.f32.mrb[0].mxu0
    %v3061 = vpop.f32.mrb[0].mxu0
    %v3062 = vpop.f32.mrb[0].mxu0
    %3063 = vdwg.mxu0
    %v3064 = vmul.f32 %v2983, 0.35355338
    %v3065 = vmul.f32 %v2986, 0.35355338
    %v3066 = vmul.f32 %v2991, 0.35355338
    %v3067 = vmul.f32 %v3051, 0.35355338
    %v3068 = vmul.f32 %v3054, 0.35355338
    %v3069 = vmul.f32 %v3059, 0.35355338
    %v3070 = vsel %vm519, %v3064, -1e+30
    %v3071 = vsel %vm519, %v3065, -1e+30
    %v3072 = vsel %vm519, %v3066, -1e+30
    %v3073 = vsel %vm519, %v3067, -1e+30
    %v3074 = vsel %vm519, %v3068, -1e+30
    %v3075 = vsel %vm519, %v3069, -1e+30
    %v3076 = vsel %vm526, %v3070, -inf
    %3077 = vmax.xlane.f32.xlu0 %v3076
    %v3078 = vpop.xlane.xlu0 %3077
    %v3079 = vsel %vm526, %v3071, -inf
    %3080 = vmax.xlane.f32.xlu0 %v3079
    %v3081 = vpop.xlane.xlu0 %3080
    %v3082 = vsel %vm526, %v3072, -inf
    %3083 = vmax.xlane.f32.xlu0 %v3082
    %v3084 = vpop.xlane.xlu0 %3083
    %v3085 = vsel %vm526, %v3073, -inf
    %3086 = vmax.xlane.f32.xlu0 %v3085
    %v3087 = vpop.xlane.xlu0 %3086
    %v3088 = vsel %vm526, %v3074, -inf
    %3089 = vmax.xlane.f32.xlu0 %v3088
    %v3090 = vpop.xlane.xlu0 %3089
    %v3091 = vsel %vm526, %v3075, -inf
    %3092 = vmax.xlane.f32.xlu0 %v3091
    %v3093 = vpop.xlane.xlu0 %3092
    %v3094 = vsub.f32 %v3070, %v3078
    %v3095 = vsub.f32 %v3071, %v3081
    %v3096 = vsub.f32 %v3072, %v3084
    %v3097 = vsub.f32 %v3073, %v3087
    %v3098 = vsub.f32 %v3074, %v3090
    %v3099 = vsub.f32 %v3075, %v3093
    %v3100 = vmul.f32 %v3094, 1.442695
    %v3101 = vpow.pop %v3100
    %v3102 = vmul.f32 %v3095, 1.442695
    %v3103 = vpow.pop %v3102
    %v3104 = vmul.f32 %v3096, 1.442695
    %v3105 = vpow.pop %v3104
    %v3106 = vmul.f32 %v3097, 1.442695
    %v3107 = vpow.pop %v3106
    %v3108 = vmul.f32 %v3098, 1.442695
    %v3109 = vpow.pop %v3108
    %v3110 = vmul.f32 %v3099, 1.442695
    %v3111 = vpow.pop %v3110
    %v3112 = vsel %vm526, %v3101, 0.0
    %3113 = vadd.xlane.f32.xlu0 %v3112
    %v3114 = vpop.xlane.xlu0 %3113
    %v3115 = vsel %vm526, %v3103, 0.0
    %3116 = vadd.xlane.f32.xlu0 %v3115
    %v3117 = vpop.xlane.xlu0 %3116
    %v3118 = vsel %vm526, %v3105, 0.0
    %3119 = vadd.xlane.f32.xlu0 %v3118
    %v3120 = vpop.xlane.xlu0 %3119
    %v3121 = vsel %vm526, %v3107, 0.0
    %3122 = vadd.xlane.f32.xlu0 %v3121
    %v3123 = vpop.xlane.xlu0 %3122
    %v3124 = vsel %vm526, %v3109, 0.0
    %3125 = vadd.xlane.f32.xlu0 %v3124
    %v3126 = vpop.xlane.xlu0 %3125
    %v3127 = vsel %vm526, %v3111, 0.0
    %3128 = vadd.xlane.f32.xlu0 %v3127
    %v3129 = vpop.xlane.xlu0 %3128
    %v3130 = vrcp.pop %v3114
    %v3131 = vmul.f32 %v3101, %v3130
    %v3132 = vrcp.pop %v3117
    %v3133 = vmul.f32 %v3103, %v3132
    %v3134 = vrcp.pop %v3120
    %v3135 = vmul.f32 %v3105, %v3134
    %v3136 = vrcp.pop %v3123
    %v3137 = vmul.f32 %v3107, %v3136
    %v3138 = vrcp.pop %v3126
    %v3139 = vmul.f32 %v3109, %v3138
    %v3140 = vrcp.pop %v3129
    %v3141 = vmul.f32 %v3111, %v3140
    %v3142 = vpack.c.bf16 %v3133, %v3131
    %v3143 = vpack.c.bf16 %v3135, %v3135
    %v3144 = vpack.c.bf16 %v3139, %v3137
    %v3145 = vpack.c.bf16 %v3141, %v3141
    %3146 = vrot.lane.b32.xlu0 %v2582, 56
    %v3147 = vpop.permute.xlu0 %3146
    %3148 = vrot.lane.b32.xlu0 %v2583, 56
    %v3149 = vpop.permute.xlu0 %3148
    %v3152 = vsel %vm526, %v3142, 0
    %v3155 = vsel %vm526, %v3143, 0
    %v3158 = vsel %vm608, %v3149, 0
    %3160 = vmatprep.subr.bf16.mxu0 0
    %3161 = vmatpush1.bf16.msra.mxu0 %v3147
    %3162 = vmatprep.subr.bf16.mxu0 0
    %3163 = vmatpush1.bf16.msra.mxu0 %v3158
    %3164 = vmatprep.subr.bf16.mxu0 0
    %3165 = vmatpush1.bf16.msra.mxu0 0
    %3166 = vmatprep.subr.bf16.mxu0 0
    %3167 = vmatpush1.bf16.msra.mxu0 0
    %3168 = vmatprep.subr.bf16.mxu0 0
    %3169 = vmatpush1.bf16.msra.mxu0 0
    %3170 = vmatprep.subr.bf16.mxu0 0
    %3171 = vmatpush1.bf16.msra.mxu0 0
    %3172 = vmatprep.subr.bf16.mxu0 0
    %3173 = vmatpush1.bf16.msra.mxu0 0
    %3174 = vmatprep.subr.bf16.mxu0 0
    %3175 = vmatpush1.bf16.msra.mxu0 0
    %3176 = vmatprep.subr.bf16.mxu0 0
    %3177 = vmatpush1.bf16.msra.mxu0 0
    %3178 = vmatprep.subr.bf16.mxu0 0
    %3179 = vmatpush1.bf16.msra.mxu0 0
    %3180 = vmatprep.subr.bf16.mxu0 0
    %3181 = vmatpush1.bf16.msra.mxu0 0
    %3182 = vmatprep.subr.bf16.mxu0 0
    %3183 = vmatpush1.bf16.msra.mxu0 0
    %3184 = vmatprep.subr.bf16.mxu0 0
    %3185 = vmatpush1.bf16.msra.mxu0 0
    %3186 = vmatprep.subr.bf16.mxu0 0
    %3187 = vmatpush1.bf16.msra.mxu0 0
    %3188 = vmatprep.subr.bf16.mxu0 0
    %3189 = vmatpush1.bf16.msra.mxu0 0
    %3190 = vmatprep.subr.bf16.mxu0 0
    %3191 = vmatpush1.bf16.msra.mxu0 0
    %3192 = vmatprep.mubr.bf16.mxu0 0
    %3193 = vmatmul.mubr.bf16.gmra.mrb[0].mxu0 %v3152
    %v3194 = vpop.f32.mrb[0].mxu0
    %v3195 = vadd.f32 0.0, %v3194
    %v3196 = vpop.f32.mrb[0].mxu0
    %v3197 = vpop.f32.mrb[0].mxu0
    %v3198 = vadd.f32 0.0, %v3197
    %v3199 = vpop.f32.mrb[0].mxu0
    %3200 = vmatprep.mubr.bf16.mxu0 0
    %3201 = vmatmul.mubr.bf16.gmra.mrb[0].mxu0 %v3155
    %v3202 = vpop.f32.mrb[0].mxu0
    %v3203 = vadd.f32 0.0, %v3202
    %v3204 = vpop.f32.mrb[0].mxu0
    %v3205 = vpop.f32.mrb[0].mxu0
    %v3206 = vpop.f32.mrb[0].mxu0
    %3207 = vdwg.mxu0
    %3208 = vrot.lane.b32.xlu0 %v2584, 56
    %v3209 = vpop.permute.xlu0 %3208
    %3210 = vrot.lane.b32.xlu0 %v2585, 56
    %v3211 = vpop.permute.xlu0 %3210
    %v3214 = vsel %vm526, %v3144, 0
    %v3217 = vsel %vm526, %v3145, 0
    %v3220 = vsel %vm608, %v3211, 0
    %3222 = vmatprep.subr.bf16.mxu0 0
    %3223 = vmatpush1.bf16.msra.mxu0 %v3209
    %3224 = vmatprep.subr.bf16.mxu0 0
    %3225 = vmatpush1.bf16.msra.mxu0 %v3220
    %3226 = vmatprep.subr.bf16.mxu0 0
    %3227 = vmatpush1.bf16.msra.mxu0 0
    %3228 = vmatprep.subr.bf16.mxu0 0
    %3229 = vmatpush1.bf16.msra.mxu0 0
    %3230 = vmatprep.subr.bf16.mxu0 0
    %3231 = vmatpush1.bf16.msra.mxu0 0
    %3232 = vmatprep.subr.bf16.mxu0 0
    %3233 = vmatpush1.bf16.msra.mxu0 0
    %3234 = vmatprep.subr.bf16.mxu0 0
    %3235 = vmatpush1.bf16.msra.mxu0 0
    %3236 = vmatprep.subr.bf16.mxu0 0
    %3237 = vmatpush1.bf16.msra.mxu0 0
    %3238 = vmatprep.subr.bf16.mxu0 0
    %3239 = vmatpush1.bf16.msra.mxu0 0
    %3240 = vmatprep.subr.bf16.mxu0 0
    %3241 = vmatpush1.bf16.msra.mxu0 0
    %3242 = vmatprep.subr.bf16.mxu0 0
    %3243 = vmatpush1.bf16.msra.mxu0 0
    %3244 = vmatprep.subr.bf16.mxu0 0
    %3245 = vmatpush1.bf16.msra.mxu0 0
    %3246 = vmatprep.subr.bf16.mxu0 0
    %3247 = vmatpush1.bf16.msra.mxu0 0
    %3248 = vmatprep.subr.bf16.mxu0 0
    %3249 = vmatpush1.bf16.msra.mxu0 0
    %3250 = vmatprep.subr.bf16.mxu0 0
    %3251 = vmatpush1.bf16.msra.mxu0 0
    %3252 = vmatprep.subr.bf16.mxu0 0
    %3253 = vmatpush1.bf16.msra.mxu0 0
    %3254 = vmatprep.mubr.bf16.mxu0 0
    %3255 = vmatmul.mubr.bf16.gmra.mrb[0].mxu0 %v3214
    %v3256 = vpop.f32.mrb[0].mxu0
    %v3257 = vadd.f32 0.0, %v3256
    %v3258 = vpop.f32.mrb[0].mxu0
    %v3259 = vpop.f32.mrb[0].mxu0
    %v3260 = vadd.f32 0.0, %v3259
    %v3261 = vpop.f32.mrb[0].mxu0
    %3262 = vmatprep.mubr.bf16.mxu0 0
    %3263 = vmatmul.mubr.bf16.gmra.mrb[0].mxu0 %v3217
    %v3264 = vpop.f32.mrb[0].mxu0
    %v3265 = vadd.f32 0.0, %v3264
    %v3266 = vpop.f32.mrb[0].mxu0
    %v3267 = vpop.f32.mrb[0].mxu0
    %v3268 = vpop.f32.mrb[0].mxu0
    %3269 = vdwg.mxu0
    %v3270 = vpack.c.bf16 %v3198, %v3195
    %v3271 = vpack.c.bf16 %v3257, %v3203
    %v3272 = vpack.c.bf16 %v3265, %v3260
    %v3273 = vpack.c.bf16 %v2579, %v2579
    %v3275 = vsel %vm385, %v3270, 0
    %v3278 = vsel %vm385, %v3271, 0
    %v3281 = vsel %vm385, %v3272, 0
    %v3284 = vsel %vm608, %v3273, 0
    %3286 = vmatprep.subr.bf16.mxu0 0
    %3287 = vmatpush1.bf16.msra.mxu0 %v3284
    %3288 = vmatprep.subr.bf16.mxu0 0
    %3289 = vmatpush1.bf16.msra.mxu0 0
    %3290 = vmatprep.subr.bf16.mxu0 0
    %3291 = vmatpush1.bf16.msra.mxu0 0
    %3292 = vmatprep.subr.bf16.mxu0 0
    %3293 = vmatpush1.bf16.msra.mxu0 0
    %3294 = vmatprep.subr.bf16.mxu0 0
    %3295 = vmatpush1.bf16.msra.mxu0 0
    %3296 = vmatprep.subr.bf16.mxu0 0
    %3297 = vmatpush1.bf16.msra.mxu0 0
    %3298 = vmatprep.subr.bf16.mxu0 0
    %3299 = vmatpush1.bf16.msra.mxu0 0
    %3300 = vmatprep.subr.bf16.mxu0 0
    %3301 = vmatpush1.bf16.msra.mxu0 0
    %3302 = vmatprep.subr.bf16.mxu0 0
    %3303 = vmatpush1.bf16.msra.mxu0 0
    %3304 = vmatprep.subr.bf16.mxu0 0
    %3305 = vmatpush1.bf16.msra.mxu0 0
    %3306 = vmatprep.subr.bf16.mxu0 0
    %3307 = vmatpush1.bf16.msra.mxu0 0
    %3308 = vmatprep.subr.bf16.mxu0 0
    %3309 = vmatpush1.bf16.msra.mxu0 0
    %3310 = vmatprep.subr.bf16.mxu0 0
    %3311 = vmatpush1.bf16.msra.mxu0 0
    %3312 = vmatprep.subr.bf16.mxu0 0
    %3313 = vmatpush1.bf16.msra.mxu0 0
    %3314 = vmatprep.subr.bf16.mxu0 0
    %3315 = vmatpush1.bf16.msra.mxu0 0
    %3316 = vmatprep.subr.bf16.mxu0 0
    %3317 = vmatpush1.bf16.msra.mxu0 0
    %3318 = vmatprep.mubr.bf16.mxu0 0
    %3319 = vmatmul.mubr.bf16.gmra.mrb[0].mxu0 %v3275
    %v3320 = vpop.f32.mrb[0].mxu0
    %v3321 = vadd.f32 0.0, %v3320
    %v3322 = vpop.f32.mrb[0].mxu0
    %v3323 = vpop.f32.mrb[0].mxu0
    %v3324 = vadd.f32 0.0, %v3323
    %v3325 = vpop.f32.mrb[0].mxu0
    %3326 = vmatprep.mubr.bf16.mxu0 0
    %3327 = vmatmul.mubr.bf16.gmra.mrb[0].mxu0 %v3278
    %v3328 = vpop.f32.mrb[0].mxu0
    %v3329 = vadd.f32 0.0, %v3328
    %v3330 = vpop.f32.mrb[0].mxu0
    %v3331 = vpop.f32.mrb[0].mxu0
    %v3332 = vadd.f32 0.0, %v3331
    %v3333 = vpop.f32.mrb[0].mxu0
    %3334 = vmatprep.mubr.bf16.mxu0 0
    %3335 = vmatmul.mubr.bf16.gmra.mrb[0].mxu0 %v3281
    %v3336 = vpop.f32.mrb[0].mxu0
    %v3337 = vadd.f32 0.0, %v3336
    %v3338 = vpop.f32.mrb[0].mxu0
    %v3339 = vpop.f32.mrb[0].mxu0
    %v3340 = vadd.f32 0.0, %v3339
    %v3341 = vpop.f32.mrb[0].mxu0
    %3342 = vdwg.mxu0
    %v3344 = vsel %vm385, %v2924, 0
    %v3347 = vsel %vm385, %v2925, 0
    %v3350 = vsel %vm385, %v2926, 0
    %v3353 = vsel %vm608, %v2927, 0
    %3355 = vmatprep.subr.bf16.mxu0 0
    %3356 = vmatpush1.bf16.msra.mxu0 %v3353
    %3357 = vmatprep.subr.bf16.mxu0 0
    %3358 = vmatpush1.bf16.msra.mxu0 0
    %3359 = vmatprep.subr.bf16.mxu0 0
    %3360 = vmatpush1.bf16.msra.mxu0 0
    %3361 = vmatprep.subr.bf16.mxu0 0
    %3362 = vmatpush1.bf16.msra.mxu0 0
    %3363 = vmatprep.subr.bf16.mxu0 0
    %3364 = vmatpush1.bf16.msra.mxu0 0
    %3365 = vmatprep.subr.bf16.mxu0 0
    %3366 = vmatpush1.bf16.msra.mxu0 0
    %3367 = vmatprep.subr.bf16.mxu0 0
    %3368 = vmatpush1.bf16.msra.mxu0 0
    %3369 = vmatprep.subr.bf16.mxu0 0
    %3370 = vmatpush1.bf16.msra.mxu0 0
    %3371 = vmatprep.subr.bf16.mxu0 0
    %3372 = vmatpush1.bf16.msra.mxu0 0
    %3373 = vmatprep.subr.bf16.mxu0 0
    %3374 = vmatpush1.bf16.msra.mxu0 0
    %3375 = vmatprep.subr.bf16.mxu0 0
    %3376 = vmatpush1.bf16.msra.mxu0 0
    %3377 = vmatprep.subr.bf16.mxu0 0
    %3378 = vmatpush1.bf16.msra.mxu0 0
    %3379 = vmatprep.subr.bf16.mxu0 0
    %3380 = vmatpush1.bf16.msra.mxu0 0
    %3381 = vmatprep.subr.bf16.mxu0 0
    %3382 = vmatpush1.bf16.msra.mxu0 0
    %3383 = vmatprep.subr.bf16.mxu0 0
    %3384 = vmatpush1.bf16.msra.mxu0 0
    %3385 = vmatprep.subr.bf16.mxu0 0
    %3386 = vmatpush1.bf16.msra.mxu0 0
    %3387 = vmatprep.mubr.bf16.mxu0 0
    %3388 = vmatmul.mubr.bf16.gmra.mrb[0].mxu0 %v3344
    %v3389 = vpop.f32.mrb[0].mxu0
    %v3390 = vadd.f32 %v3321, %v3389
    %v3391 = vpop.f32.mrb[0].mxu0
    %v3392 = vpop.f32.mrb[0].mxu0
    %v3393 = vadd.f32 %v3324, %v3392
    %v3394 = vpop.f32.mrb[0].mxu0
    %3395 = vmatprep.mubr.bf16.mxu0 0
    %3396 = vmatmul.mubr.bf16.gmra.mrb[0].mxu0 %v3347
    %v3397 = vpop.f32.mrb[0].mxu0
    %v3398 = vadd.f32 %v3329, %v3397
    %v3399 = vpop.f32.mrb[0].mxu0
    %v3400 = vpop.f32.mrb[0].mxu0
    %v3401 = vadd.f32 %v3332, %v3400
    %v3402 = vpop.f32.mrb[0].mxu0
    %3403 = vmatprep.mubr.bf16.mxu0 0
    %3404 = vmatmul.mubr.bf16.gmra.mrb[0].mxu0 %v3350
    %v3405 = vpop.f32.mrb[0].mxu0
    %v3406 = vadd.f32 %v3337, %v3405
    %v3407 = vpop.f32.mrb[0].mxu0
    %v3408 = vpop.f32.mrb[0].mxu0
    %v3409 = vadd.f32 %v3340, %v3408
    %v3410 = vpop.f32.mrb[0].mxu0
    %3411 = vdwg.mxu0
    %3412 = vrot.lane.b32.xlu0 %v2582, 112
    %v3413 = vpop.permute.xlu0 %3412
    %3414 = vrot.lane.b32.xlu0 %v2583, 112
    %v3415 = vpop.permute.xlu0 %3414
    %3416 = vrot.lane.b32.xlu0 %v2582, 80
    %v3417 = vpop.permute.xlu0 %3416
    %3418 = vrot.lane.b32.xlu0 %v2583, 80
    %v3419 = vpop.permute.xlu0 %3418
    %v3421 = vsel %vm385, %v3413, 0
    %v3424 = vsel %vm385, %v3415, 0
    %v3427 = vsel %vm385, %v3417, 0
    %v3430 = vsel %vm385, %v3419, 0
    %3432 = vmatprep.subr.bf16.mxu0 0
    %3433 = vmatpush1.bf16.xpose.msra.mxu0 %v3427
    %3434 = vmatprep.subr.bf16.mxu0 0
    %3435 = vmatpush1.bf16.xpose.msra.mxu0 %v3430
    %3436 = vmatprep.subr.bf16.mxu0 0
    %3437 = vmatpush1.bf16.xpose.msra.mxu0 0
    %3438 = vmatprep.subr.bf16.mxu0 0
    %3439 = vmatpush1.bf16.xpose.msra.mxu0 0
    %3440 = vmatprep.subr.bf16.mxu0 0
    %3441 = vmatpush1.bf16.xpose.msra.mxu0 0
    %3442 = vmatprep.subr.bf16.mxu0 0
    %3443 = vmatpush1.bf16.xpose.msra.mxu0 0
    %3444 = vmatprep.subr.bf16.mxu0 0
    %3445 = vmatpush1.bf16.xpose.msra.mxu0 0
    %3446 = vmatprep.subr.bf16.mxu0 0
    %3447 = vmatpush1.bf16.xpose.msra.mxu0 0
    %3448 = vmatprep.subr.bf16.mxu0 0
    %3449 = vmatpush1.bf16.xpose.msra.mxu0 0
    %3450 = vmatprep.subr.bf16.mxu0 0
    %3451 = vmatpush1.bf16.xpose.msra.mxu0 0
    %3452 = vmatprep.subr.bf16.mxu0 0
    %3453 = vmatpush1.bf16.xpose.msra.mxu0 0
    %3454 = vmatprep.subr.bf16.mxu0 0
    %3455 = vmatpush1.bf16.xpose.msra.mxu0 0
    %3456 = vmatprep.subr.bf16.mxu0 0
    %3457 = vmatpush1.bf16.xpose.msra.mxu0 0
    %3458 = vmatprep.subr.bf16.mxu0 0
    %3459 = vmatpush1.bf16.xpose.msra.mxu0 0
    %3460 = vmatprep.subr.bf16.mxu0 0
    %3461 = vmatpush1.bf16.xpose.msra.mxu0 0
    %3462 = vmatprep.subr.bf16.mxu0 0
    %3463 = vmatpush1.bf16.xpose.msra.mxu0 0
    %3464 = vmatprep.mubr.bf16.mxu0 0
    %3465 = vmatmul.mubr.bf16.gmra.mrb[0].mxu0 %v3421
    %v3466 = vpop.f32.mrb[0].mxu0
    %v3467 = vadd.f32 0.0, %v3466
    %v3468 = vpop.f32.mrb[0].mxu0
    %v3469 = vpop.f32.mrb[0].mxu0
    %v3470 = vadd.f32 0.0, %v3469
    %v3471 = vpop.f32.mrb[0].mxu0
    %3472 = vmatprep.mubr.bf16.mxu0 0
    %3473 = vmatmul.mubr.bf16.gmra.mrb[0].mxu0 %v3424
    %v3474 = vpop.f32.mrb[0].mxu0
    %v3475 = vadd.f32 0.0, %v3474
    %v3476 = vpop.f32.mrb[0].mxu0
    %v3477 = vpop.f32.mrb[0].mxu0
    %v3478 = vpop.f32.mrb[0].mxu0
    %3479 = vdwg.mxu0
    %3480 = vrot.lane.b32.xlu0 %v2584, 112
    %v3481 = vpop.permute.xlu0 %3480
    %3482 = vrot.lane.b32.xlu0 %v2585, 112
    %v3483 = vpop.permute.xlu0 %3482
    %3484 = vrot.lane.b32.xlu0 %v2584, 80
    %v3485 = vpop.permute.xlu0 %3484
    %3486 = vrot.lane.b32.xlu0 %v2585, 80
    %v3487 = vpop.permute.xlu0 %3486
    %v3489 = vsel %vm385, %v3481, 0
    %v3492 = vsel %vm385, %v3483, 0
    %v3495 = vsel %vm385, %v3485, 0
    %v3498 = vsel %vm385, %v3487, 0
    %3500 = vmatprep.subr.bf16.mxu0 0
    %3501 = vmatpush1.bf16.xpose.msra.mxu0 %v3495
    %3502 = vmatprep.subr.bf16.mxu0 0
    %3503 = vmatpush1.bf16.xpose.msra.mxu0 %v3498
    %3504 = vmatprep.subr.bf16.mxu0 0
    %3505 = vmatpush1.bf16.xpose.msra.mxu0 0
    %3506 = vmatprep.subr.bf16.mxu0 0
    %3507 = vmatpush1.bf16.xpose.msra.mxu0 0
    %3508 = vmatprep.subr.bf16.mxu0 0
    %3509 = vmatpush1.bf16.xpose.msra.mxu0 0
    %3510 = vmatprep.subr.bf16.mxu0 0
    %3511 = vmatpush1.bf16.xpose.msra.mxu0 0
    %3512 = vmatprep.subr.bf16.mxu0 0
    %3513 = vmatpush1.bf16.xpose.msra.mxu0 0
    %3514 = vmatprep.subr.bf16.mxu0 0
    %3515 = vmatpush1.bf16.xpose.msra.mxu0 0
    %3516 = vmatprep.subr.bf16.mxu0 0
    %3517 = vmatpush1.bf16.xpose.msra.mxu0 0
    %3518 = vmatprep.subr.bf16.mxu0 0
    %3519 = vmatpush1.bf16.xpose.msra.mxu0 0
    %3520 = vmatprep.subr.bf16.mxu0 0
    %3521 = vmatpush1.bf16.xpose.msra.mxu0 0
    %3522 = vmatprep.subr.bf16.mxu0 0
    %3523 = vmatpush1.bf16.xpose.msra.mxu0 0
    %3524 = vmatprep.subr.bf16.mxu0 0
    %3525 = vmatpush1.bf16.xpose.msra.mxu0 0
    %3526 = vmatprep.subr.bf16.mxu0 0
    %3527 = vmatpush1.bf16.xpose.msra.mxu0 0
    %3528 = vmatprep.subr.bf16.mxu0 0
    %3529 = vmatpush1.bf16.xpose.msra.mxu0 0
    %3530 = vmatprep.subr.bf16.mxu0 0
    %3531 = vmatpush1.bf16.xpose.msra.mxu0 0
    %3532 = vmatprep.mubr.bf16.mxu0 0
    %3533 = vmatmul.mubr.bf16.gmra.mrb[0].mxu0 %v3489
    %v3534 = vpop.f32.mrb[0].mxu0
    %v3535 = vadd.f32 0.0, %v3534
    %v3536 = vpop.f32.mrb[0].mxu0
    %v3537 = vpop.f32.mrb[0].mxu0
    %v3538 = vadd.f32 0.0, %v3537
    %v3539 = vpop.f32.mrb[0].mxu0
    %3540 = vmatprep.mubr.bf16.mxu0 0
    %3541 = vmatmul.mubr.bf16.gmra.mrb[0].mxu0 %v3492
    %v3542 = vpop.f32.mrb[0].mxu0
    %v3543 = vadd.f32 0.0, %v3542
    %v3544 = vpop.f32.mrb[0].mxu0
    %v3545 = vpop.f32.mrb[0].mxu0
    %v3546 = vpop.f32.mrb[0].mxu0
    %3547 = vdwg.mxu0
    %v3548 = vmul.f32 %v3467, 0.35355338
    %v3549 = vmul.f32 %v3470, 0.35355338
    %v3550 = vmul.f32 %v3475, 0.35355338
    %v3551 = vmul.f32 %v3535, 0.35355338
    %v3552 = vmul.f32 %v3538, 0.35355338
    %v3553 = vmul.f32 %v3543, 0.35355338
    %v3554 = vsel %vm519, %v3548, -1e+30
    %v3555 = vsel %vm519, %v3549, -1e+30
    %v3556 = vsel %vm519, %v3550, -1e+30
    %v3557 = vsel %vm519, %v3551, -1e+30
    %v3558 = vsel %vm519, %v3552, -1e+30
    %v3559 = vsel %vm519, %v3553, -1e+30
    %v3560 = vsel %vm526, %v3554, -inf
    %3561 = vmax.xlane.f32.xlu0 %v3560
    %v3562 = vpop.xlane.xlu0 %3561
    %v3563 = vsel %vm526, %v3555, -inf
    %3564 = vmax.xlane.f32.xlu0 %v3563
    %v3565 = vpop.xlane.xlu0 %3564
    %v3566 = vsel %vm526, %v3556, -inf
    %3567 = vmax.xlane.f32.xlu0 %v3566
    %v3568 = vpop.xlane.xlu0 %3567
    %v3569 = vsel %vm526, %v3557, -inf
    %3570 = vmax.xlane.f32.xlu0 %v3569
    %v3571 = vpop.xlane.xlu0 %3570
    %v3572 = vsel %vm526, %v3558, -inf
    %3573 = vmax.xlane.f32.xlu0 %v3572
    %v3574 = vpop.xlane.xlu0 %3573
    %v3575 = vsel %vm526, %v3559, -inf
    %3576 = vmax.xlane.f32.xlu0 %v3575
    %v3577 = vpop.xlane.xlu0 %3576
    %v3578 = vsub.f32 %v3554, %v3562
    %v3579 = vsub.f32 %v3555, %v3565
    %v3580 = vsub.f32 %v3556, %v3568
    %v3581 = vsub.f32 %v3557, %v3571
    %v3582 = vsub.f32 %v3558, %v3574
    %v3583 = vsub.f32 %v3559, %v3577
    %v3584 = vmul.f32 %v3578, 1.442695
    %v3585 = vpow.pop %v3584
    %v3586 = vmul.f32 %v3579, 1.442695
    %v3587 = vpow.pop %v3586
    %v3588 = vmul.f32 %v3580, 1.442695
    %v3589 = vpow.pop %v3588
    %v3590 = vmul.f32 %v3581, 1.442695
    %v3591 = vpow.pop %v3590
    %v3592 = vmul.f32 %v3582, 1.442695
    %v3593 = vpow.pop %v3592
    %v3594 = vmul.f32 %v3583, 1.442695
    %v3595 = vpow.pop %v3594
    %v3596 = vsel %vm526, %v3585, 0.0
    %3597 = vadd.xlane.f32.xlu0 %v3596
    %v3598 = vpop.xlane.xlu0 %3597
    %v3599 = vsel %vm526, %v3587, 0.0
    %3600 = vadd.xlane.f32.xlu0 %v3599
    %v3601 = vpop.xlane.xlu0 %3600
    %v3602 = vsel %vm526, %v3589, 0.0
    %3603 = vadd.xlane.f32.xlu0 %v3602
    %v3604 = vpop.xlane.xlu0 %3603
    %v3605 = vsel %vm526, %v3591, 0.0
    %3606 = vadd.xlane.f32.xlu0 %v3605
    %v3607 = vpop.xlane.xlu0 %3606
    %v3608 = vsel %vm526, %v3593, 0.0
    %3609 = vadd.xlane.f32.xlu0 %v3608
    %v3610 = vpop.xlane.xlu0 %3609
    %v3611 = vsel %vm526, %v3595, 0.0
    %3612 = vadd.xlane.f32.xlu0 %v3611
    %v3613 = vpop.xlane.xlu0 %3612
    %v3614 = vrcp.pop %v3598
    %v3615 = vmul.f32 %v3585, %v3614
    %v3616 = vrcp.pop %v3601
    %v3617 = vmul.f32 %v3587, %v3616
    %v3618 = vrcp.pop %v3604
    %v3619 = vmul.f32 %v3589, %v3618
    %v3620 = vrcp.pop %v3607
    %v3621 = vmul.f32 %v3591, %v3620
    %v3622 = vrcp.pop %v3610
    %v3623 = vmul.f32 %v3593, %v3622
    %v3624 = vrcp.pop %v3613
    %v3625 = vmul.f32 %v3595, %v3624
    %v3626 = vpack.c.bf16 %v3617, %v3615
    %v3627 = vpack.c.bf16 %v3619, %v3619
    %v3628 = vpack.c.bf16 %v3623, %v3621
    %v3629 = vpack.c.bf16 %v3625, %v3625
    %3630 = vrot.lane.b32.xlu0 %v2582, 48
    %v3631 = vpop.permute.xlu0 %3630
    %3632 = vrot.lane.b32.xlu0 %v2583, 48
    %v3633 = vpop.permute.xlu0 %3632
    %v3636 = vsel %vm526, %v3626, 0
    %v3639 = vsel %vm526, %v3627, 0
    %v3642 = vsel %vm608, %v3633, 0
    %3644 = vmatprep.subr.bf16.mxu0 0
    %3645 = vmatpush1.bf16.msra.mxu0 %v3631
    %3646 = vmatprep.subr.bf16.mxu0 0
    %3647 = vmatpush1.bf16.msra.mxu0 %v3642
    %3648 = vmatprep.subr.bf16.mxu0 0
    %3649 = vmatpush1.bf16.msra.mxu0 0
    %3650 = vmatprep.subr.bf16.mxu0 0
    %3651 = vmatpush1.bf16.msra.mxu0 0
    %3652 = vmatprep.subr.bf16.mxu0 0
    %3653 = vmatpush1.bf16.msra.mxu0 0
    %3654 = vmatprep.subr.bf16.mxu0 0
    %3655 = vmatpush1.bf16.msra.mxu0 0
    %3656 = vmatprep.subr.bf16.mxu0 0
    %3657 = vmatpush1.bf16.msra.mxu0 0
    %3658 = vmatprep.subr.bf16.mxu0 0
    %3659 = vmatpush1.bf16.msra.mxu0 0
    %3660 = vmatprep.subr.bf16.mxu0 0
    %3661 = vmatpush1.bf16.msra.mxu0 0
    %3662 = vmatprep.subr.bf16.mxu0 0
    %3663 = vmatpush1.bf16.msra.mxu0 0
    %3664 = vmatprep.subr.bf16.mxu0 0
    %3665 = vmatpush1.bf16.msra.mxu0 0
    %3666 = vmatprep.subr.bf16.mxu0 0
    %3667 = vmatpush1.bf16.msra.mxu0 0
    %3668 = vmatprep.subr.bf16.mxu0 0
    %3669 = vmatpush1.bf16.msra.mxu0 0
    %3670 = vmatprep.subr.bf16.mxu0 0
    %3671 = vmatpush1.bf16.msra.mxu0 0
    %3672 = vmatprep.subr.bf16.mxu0 0
    %3673 = vmatpush1.bf16.msra.mxu0 0
    %3674 = vmatprep.subr.bf16.mxu0 0
    %3675 = vmatpush1.bf16.msra.mxu0 0
    %3676 = vmatprep.mubr.bf16.mxu0 0
    %3677 = vmatmul.mubr.bf16.gmra.mrb[0].mxu0 %v3636
    %v3678 = vpop.f32.mrb[0].mxu0
    %v3679 = vadd.f32 0.0, %v3678
    %v3680 = vpop.f32.mrb[0].mxu0
    %v3681 = vpop.f32.mrb[0].mxu0
    %v3682 = vadd.f32 0.0, %v3681
    %v3683 = vpop.f32.mrb[0].mxu0
    %3684 = vmatprep.mubr.bf16.mxu0 0
    %3685 = vmatmul.mubr.bf16.gmra.mrb[0].mxu0 %v3639
    %v3686 = vpop.f32.mrb[0].mxu0
    %v3687 = vadd.f32 0.0, %v3686
    %v3688 = vpop.f32.mrb[0].mxu0
    %v3689 = vpop.f32.mrb[0].mxu0
    %v3690 = vpop.f32.mrb[0].mxu0
    %3691 = vdwg.mxu0
    %3692 = vrot.lane.b32.xlu0 %v2584, 48
    %v3693 = vpop.permute.xlu0 %3692
    %3694 = vrot.lane.b32.xlu0 %v2585, 48
    %v3695 = vpop.permute.xlu0 %3694
    %v3698 = vsel %vm526, %v3628, 0
    %v3701 = vsel %vm526, %v3629, 0
    %v3704 = vsel %vm608, %v3695, 0
    %3706 = vmatprep.subr.bf16.mxu0 0
    %3707 = vmatpush1.bf16.msra.mxu0 %v3693
    %3708 = vmatprep.subr.bf16.mxu0 0
    %3709 = vmatpush1.bf16.msra.mxu0 %v3704
    %3710 = vmatprep.subr.bf16.mxu0 0
    %3711 = vmatpush1.bf16.msra.mxu0 0
    %3712 = vmatprep.subr.bf16.mxu0 0
    %3713 = vmatpush1.bf16.msra.mxu0 0
    %3714 = vmatprep.subr.bf16.mxu0 0
    %3715 = vmatpush1.bf16.msra.mxu0 0
    %3716 = vmatprep.subr.bf16.mxu0 0
    %3717 = vmatpush1.bf16.msra.mxu0 0
    %3718 = vmatprep.subr.bf16.mxu0 0
    %3719 = vmatpush1.bf16.msra.mxu0 0
    %3720 = vmatprep.subr.bf16.mxu0 0
    %3721 = vmatpush1.bf16.msra.mxu0 0
    %3722 = vmatprep.subr.bf16.mxu0 0
    %3723 = vmatpush1.bf16.msra.mxu0 0
    %3724 = vmatprep.subr.bf16.mxu0 0
    %3725 = vmatpush1.bf16.msra.mxu0 0
    %3726 = vmatprep.subr.bf16.mxu0 0
    %3727 = vmatpush1.bf16.msra.mxu0 0
    %3728 = vmatprep.subr.bf16.mxu0 0
    %3729 = vmatpush1.bf16.msra.mxu0 0
    %3730 = vmatprep.subr.bf16.mxu0 0
    %3731 = vmatpush1.bf16.msra.mxu0 0
    %3732 = vmatprep.subr.bf16.mxu0 0
    %3733 = vmatpush1.bf16.msra.mxu0 0
    %3734 = vmatprep.subr.bf16.mxu0 0
    %3735 = vmatpush1.bf16.msra.mxu0 0
    %3736 = vmatprep.subr.bf16.mxu0 0
    %3737 = vmatpush1.bf16.msra.mxu0 0
    %3738 = vmatprep.mubr.bf16.mxu0 0
    %3739 = vmatmul.mubr.bf16.gmra.mrb[0].mxu0 %v3698
    %v3740 = vpop.f32.mrb[0].mxu0
    %v3741 = vadd.f32 0.0, %v3740
    %v3742 = vpop.f32.mrb[0].mxu0
    %v3743 = vpop.f32.mrb[0].mxu0
    %v3744 = vadd.f32 0.0, %v3743
    %v3745 = vpop.f32.mrb[0].mxu0
    %3746 = vmatprep.mubr.bf16.mxu0 0
    %3747 = vmatmul.mubr.bf16.gmra.mrb[0].mxu0 %v3701
    %v3748 = vpop.f32.mrb[0].mxu0
    %v3749 = vadd.f32 0.0, %v3748
    %v3750 = vpop.f32.mrb[0].mxu0
    %v3751 = vpop.f32.mrb[0].mxu0
    %v3752 = vpop.f32.mrb[0].mxu0
    %3753 = vdwg.mxu0
    %v3754 = vpack.c.bf16 %v3682, %v3679
    %v3755 = vpack.c.bf16 %v3741, %v3687
    %v3756 = vpack.c.bf16 %v3749, %v3744
    %v3757 = vpack.c.bf16 %v2580, %v2580
    %v3759 = vsel %vm385, %v3754, 0
    %v3762 = vsel %vm385, %v3755, 0
    %v3765 = vsel %vm385, %v3756, 0
    %v3768 = vsel %vm608, %v3757, 0
    %3770 = vmatprep.subr.bf16.mxu0 0
    %3771 = vmatpush1.bf16.msra.mxu0 %v3768
    %3772 = vmatprep.subr.bf16.mxu0 0
    %3773 = vmatpush1.bf16.msra.mxu0 0
    %3774 = vmatprep.subr.bf16.mxu0 0
    %3775 = vmatpush1.bf16.msra.mxu0 0
    %3776 = vmatprep.subr.bf16.mxu0 0
    %3777 = vmatpush1.bf16.msra.mxu0 0
    %3778 = vmatprep.subr.bf16.mxu0 0
    %3779 = vmatpush1.bf16.msra.mxu0 0
    %3780 = vmatprep.subr.bf16.mxu0 0
    %3781 = vmatpush1.bf16.msra.mxu0 0
    %3782 = vmatprep.subr.bf16.mxu0 0
    %3783 = vmatpush1.bf16.msra.mxu0 0
    %3784 = vmatprep.subr.bf16.mxu0 0
    %3785 = vmatpush1.bf16.msra.mxu0 0
    %3786 = vmatprep.subr.bf16.mxu0 0
    %3787 = vmatpush1.bf16.msra.mxu0 0
    %3788 = vmatprep.subr.bf16.mxu0 0
    %3789 = vmatpush1.bf16.msra.mxu0 0
    %3790 = vmatprep.subr.bf16.mxu0 0
    %3791 = vmatpush1.bf16.msra.mxu0 0
    %3792 = vmatprep.subr.bf16.mxu0 0
    %3793 = vmatpush1.bf16.msra.mxu0 0
    %3794 = vmatprep.subr.bf16.mxu0 0
    %3795 = vmatpush1.bf16.msra.mxu0 0
    %3796 = vmatprep.subr.bf16.mxu0 0
    %3797 = vmatpush1.bf16.msra.mxu0 0
    %3798 = vmatprep.subr.bf16.mxu0 0
    %3799 = vmatpush1.bf16.msra.mxu0 0
    %3800 = vmatprep.subr.bf16.mxu0 0
    %3801 = vmatpush1.bf16.msra.mxu0 0
    %3802 = vmatprep.mubr.bf16.mxu0 0
    %3803 = vmatmul.mubr.bf16.gmra.mrb[0].mxu0 %v3759
    %v3804 = vpop.f32.mrb[0].mxu0
    %v3805 = vadd.f32 0.0, %v3804
    %v3806 = vpop.f32.mrb[0].mxu0
    %v3807 = vpop.f32.mrb[0].mxu0
    %v3808 = vadd.f32 0.0, %v3807
    %v3809 = vpop.f32.mrb[0].mxu0
    %3810 = vmatprep.mubr.bf16.mxu0 0
    %3811 = vmatmul.mubr.bf16.gmra.mrb[0].mxu0 %v3762
    %v3812 = vpop.f32.mrb[0].mxu0
    %v3813 = vadd.f32 0.0, %v3812
    %v3814 = vpop.f32.mrb[0].mxu0
    %v3815 = vpop.f32.mrb[0].mxu0
    %v3816 = vadd.f32 0.0, %v3815
    %v3817 = vpop.f32.mrb[0].mxu0
    %3818 = vmatprep.mubr.bf16.mxu0 0
    %3819 = vmatmul.mubr.bf16.gmra.mrb[0].mxu0 %v3765
    %v3820 = vpop.f32.mrb[0].mxu0
    %v3821 = vadd.f32 0.0, %v3820
    %v3822 = vpop.f32.mrb[0].mxu0
    %v3823 = vpop.f32.mrb[0].mxu0
    %v3824 = vadd.f32 0.0, %v3823
    %v3825 = vpop.f32.mrb[0].mxu0
    %3826 = vdwg.mxu0
    %v3827 = vadd.f32 %v3390, %v3805
    %v3828 = vadd.f32 %v3393, %v3808
    %v3829 = vadd.f32 %v3398, %v3813
    %v3830 = vadd.f32 %v3401, %v3816
    %v3831 = vadd.f32 %v3406, %v3821
    %v3832 = vadd.f32 %v3409, %v3824
    %3833 = vrot.lane.b32.xlu0 %v2582, 104
    %v3834 = vpop.permute.xlu0 %3833
    %3835 = vrot.lane.b32.xlu0 %v2583, 104
    %v3836 = vpop.permute.xlu0 %3835
    %3837 = vrot.lane.b32.xlu0 %v2582, 72
    %v3838 = vpop.permute.xlu0 %3837
    %3839 = vrot.lane.b32.xlu0 %v2583, 72
    %v3840 = vpop.permute.xlu0 %3839
    %v3842 = vsel %vm385, %v3834, 0
    %v3845 = vsel %vm385, %v3836, 0
    %v3848 = vsel %vm385, %v3838, 0
    %v3851 = vsel %vm385, %v3840, 0
    %3853 = vmatprep.subr.bf16.mxu0 0
    %3854 = vmatpush1.bf16.xpose.msra.mxu0 %v3848
    %3855 = vmatprep.subr.bf16.mxu0 0
    %3856 = vmatpush1.bf16.xpose.msra.mxu0 %v3851
    %3857 = vmatprep.subr.bf16.mxu0 0
    %3858 = vmatpush1.bf16.xpose.msra.mxu0 0
    %3859 = vmatprep.subr.bf16.mxu0 0
    %3860 = vmatpush1.bf16.xpose.msra.mxu0 0
    %3861 = vmatprep.subr.bf16.mxu0 0
    %3862 = vmatpush1.bf16.xpose.msra.mxu0 0
    %3863 = vmatprep.subr.bf16.mxu0 0
    %3864 = vmatpush1.bf16.xpose.msra.mxu0 0
    %3865 = vmatprep.subr.bf16.mxu0 0
    %3866 = vmatpush1.bf16.xpose.msra.mxu0 0
    %3867 = vmatprep.subr.bf16.mxu0 0
    %3868 = vmatpush1.bf16.xpose.msra.mxu0 0
    %3869 = vmatprep.subr.bf16.mxu0 0
    %3870 = vmatpush1.bf16.xpose.msra.mxu0 0
    %3871 = vmatprep.subr.bf16.mxu0 0
    %3872 = vmatpush1.bf16.xpose.msra.mxu0 0
    %3873 = vmatprep.subr.bf16.mxu0 0
    %3874 = vmatpush1.bf16.xpose.msra.mxu0 0
    %3875 = vmatprep.subr.bf16.mxu0 0
    %3876 = vmatpush1.bf16.xpose.msra.mxu0 0
    %3877 = vmatprep.subr.bf16.mxu0 0
    %3878 = vmatpush1.bf16.xpose.msra.mxu0 0
    %3879 = vmatprep.subr.bf16.mxu0 0
    %3880 = vmatpush1.bf16.xpose.msra.mxu0 0
    %3881 = vmatprep.subr.bf16.mxu0 0
    %3882 = vmatpush1.bf16.xpose.msra.mxu0 0
    %3883 = vmatprep.subr.bf16.mxu0 0
    %3884 = vmatpush1.bf16.xpose.msra.mxu0 0
    %3885 = vmatprep.mubr.bf16.mxu0 0
    %3886 = vmatmul.mubr.bf16.gmra.mrb[0].mxu0 %v3842
    %v3887 = vpop.f32.mrb[0].mxu0
    %v3888 = vadd.f32 0.0, %v3887
    %v3889 = vpop.f32.mrb[0].mxu0
    %v3890 = vpop.f32.mrb[0].mxu0
    %v3891 = vadd.f32 0.0, %v3890
    %v3892 = vpop.f32.mrb[0].mxu0
    %3893 = vmatprep.mubr.bf16.mxu0 0
    %3894 = vmatmul.mubr.bf16.gmra.mrb[0].mxu0 %v3845
    %v3895 = vpop.f32.mrb[0].mxu0
    %v3896 = vadd.f32 0.0, %v3895
    %v3897 = vpop.f32.mrb[0].mxu0
    %v3898 = vpop.f32.mrb[0].mxu0
    %v3899 = vpop.f32.mrb[0].mxu0
    %3900 = vdwg.mxu0
    %3901 = vrot.lane.b32.xlu0 %v2584, 104
    %v3902 = vpop.permute.xlu0 %3901
    %3903 = vrot.lane.b32.xlu0 %v2585, 104
    %v3904 = vpop.permute.xlu0 %3903
    %3905 = vrot.lane.b32.xlu0 %v2584, 72
    %v3906 = vpop.permute.xlu0 %3905
    %3907 = vrot.lane.b32.xlu0 %v2585, 72
    %v3908 = vpop.permute.xlu0 %3907
    %v3910 = vsel %vm385, %v3902, 0
    %v3913 = vsel %vm385, %v3904, 0
    %v3916 = vsel %vm385, %v3906, 0
    %v3919 = vsel %vm385, %v3908, 0
    %3921 = vmatprep.subr.bf16.mxu0 0
    %3922 = vmatpush1.bf16.xpose.msra.mxu0 %v3916
    %3923 = vmatprep.subr.bf16.mxu0 0
    %3924 = vmatpush1.bf16.xpose.msra.mxu0 %v3919
    %3925 = vmatprep.subr.bf16.mxu0 0
    %3926 = vmatpush1.bf16.xpose.msra.mxu0 0
    %3927 = vmatprep.subr.bf16.mxu0 0
    %3928 = vmatpush1.bf16.xpose.msra.mxu0 0
    %3929 = vmatprep.subr.bf16.mxu0 0
    %3930 = vmatpush1.bf16.xpose.msra.mxu0 0
    %3931 = vmatprep.subr.bf16.mxu0 0
    %3932 = vmatpush1.bf16.xpose.msra.mxu0 0
    %3933 = vmatprep.subr.bf16.mxu0 0
    %3934 = vmatpush1.bf16.xpose.msra.mxu0 0
    %3935 = vmatprep.subr.bf16.mxu0 0
    %3936 = vmatpush1.bf16.xpose.msra.mxu0 0
    %3937 = vmatprep.subr.bf16.mxu0 0
    %3938 = vmatpush1.bf16.xpose.msra.mxu0 0
    %3939 = vmatprep.subr.bf16.mxu0 0
    %3940 = vmatpush1.bf16.xpose.msra.mxu0 0
    %3941 = vmatprep.subr.bf16.mxu0 0
    %3942 = vmatpush1.bf16.xpose.msra.mxu0 0
    %3943 = vmatprep.subr.bf16.mxu0 0
    %3944 = vmatpush1.bf16.xpose.msra.mxu0 0
    %3945 = vmatprep.subr.bf16.mxu0 0
    %3946 = vmatpush1.bf16.xpose.msra.mxu0 0
    %3947 = vmatprep.subr.bf16.mxu0 0
    %3948 = vmatpush1.bf16.xpose.msra.mxu0 0
    %3949 = vmatprep.subr.bf16.mxu0 0
    %3950 = vmatpush1.bf16.xpose.msra.mxu0 0
    %3951 = vmatprep.subr.bf16.mxu0 0
    %3952 = vmatpush1.bf16.xpose.msra.mxu0 0
    %3953 = vmatprep.mubr.bf16.mxu0 0
    %3954 = vmatmul.mubr.bf16.gmra.mrb[0].mxu0 %v3910
    %v3955 = vpop.f32.mrb[0].mxu0
    %v3956 = vadd.f32 0.0, %v3955
    %v3957 = vpop.f32.mrb[0].mxu0
    %v3958 = vpop.f32.mrb[0].mxu0
    %v3959 = vadd.f32 0.0, %v3958
    %v3960 = vpop.f32.mrb[0].mxu0
    %3961 = vmatprep.mubr.bf16.mxu0 0
    %3962 = vmatmul.mubr.bf16.gmra.mrb[0].mxu0 %v3913
    %v3963 = vpop.f32.mrb[0].mxu0
    %v3964 = vadd.f32 0.0, %v3963
    %v3965 = vpop.f32.mrb[0].mxu0
    %v3966 = vpop.f32.mrb[0].mxu0
    %v3967 = vpop.f32.mrb[0].mxu0
    %3968 = vdwg.mxu0
    %v3969 = vmul.f32 %v3888, 0.35355338
    %v3970 = vmul.f32 %v3891, 0.35355338
    %v3971 = vmul.f32 %v3896, 0.35355338
    %v3972 = vmul.f32 %v3956, 0.35355338
    %v3973 = vmul.f32 %v3959, 0.35355338
    %v3974 = vmul.f32 %v3964, 0.35355338
    %v3975 = vsel %vm519, %v3969, -1e+30
    %v3976 = vsel %vm519, %v3970, -1e+30
    %v3977 = vsel %vm519, %v3971, -1e+30
    %v3978 = vsel %vm519, %v3972, -1e+30
    %v3979 = vsel %vm519, %v3973, -1e+30
    %v3980 = vsel %vm519, %v3974, -1e+30
    %v3981 = vsel %vm526, %v3975, -inf
    %3982 = vmax.xlane.f32.xlu0 %v3981
    %v3983 = vpop.xlane.xlu0 %3982
    %v3984 = vsel %vm526, %v3976, -inf
    %3985 = vmax.xlane.f32.xlu0 %v3984
    %v3986 = vpop.xlane.xlu0 %3985
    %v3987 = vsel %vm526, %v3977, -inf
    %3988 = vmax.xlane.f32.xlu0 %v3987
    %v3989 = vpop.xlane.xlu0 %3988
    %v3990 = vsel %vm526, %v3978, -inf
    %3991 = vmax.xlane.f32.xlu0 %v3990
    %v3992 = vpop.xlane.xlu0 %3991
    %v3993 = vsel %vm526, %v3979, -inf
    %3994 = vmax.xlane.f32.xlu0 %v3993
    %v3995 = vpop.xlane.xlu0 %3994
    %v3996 = vsel %vm526, %v3980, -inf
    %3997 = vmax.xlane.f32.xlu0 %v3996
    %v3998 = vpop.xlane.xlu0 %3997
    %v3999 = vsub.f32 %v3975, %v3983
    %v4000 = vsub.f32 %v3976, %v3986
    %v4001 = vsub.f32 %v3977, %v3989
    %v4002 = vsub.f32 %v3978, %v3992
    %v4003 = vsub.f32 %v3979, %v3995
    %v4004 = vsub.f32 %v3980, %v3998
    %v4005 = vmul.f32 %v3999, 1.442695
    %v4006 = vpow.pop %v4005
    %v4007 = vmul.f32 %v4000, 1.442695
    %v4008 = vpow.pop %v4007
    %v4009 = vmul.f32 %v4001, 1.442695
    %v4010 = vpow.pop %v4009
    %v4011 = vmul.f32 %v4002, 1.442695
    %v4012 = vpow.pop %v4011
    %v4013 = vmul.f32 %v4003, 1.442695
    %v4014 = vpow.pop %v4013
    %v4015 = vmul.f32 %v4004, 1.442695
    %v4016 = vpow.pop %v4015
    %v4017 = vsel %vm526, %v4006, 0.0
    %4018 = vadd.xlane.f32.xlu0 %v4017
    %v4019 = vpop.xlane.xlu0 %4018
    %v4020 = vsel %vm526, %v4008, 0.0
    %4021 = vadd.xlane.f32.xlu0 %v4020
    %v4022 = vpop.xlane.xlu0 %4021
    %v4023 = vsel %vm526, %v4010, 0.0
    %4024 = vadd.xlane.f32.xlu0 %v4023
    %v4025 = vpop.xlane.xlu0 %4024
    %v4026 = vsel %vm526, %v4012, 0.0
    %4027 = vadd.xlane.f32.xlu0 %v4026
    %v4028 = vpop.xlane.xlu0 %4027
    %v4029 = vsel %vm526, %v4014, 0.0
    %4030 = vadd.xlane.f32.xlu0 %v4029
    %v4031 = vpop.xlane.xlu0 %4030
    %v4032 = vsel %vm526, %v4016, 0.0
    %4033 = vadd.xlane.f32.xlu0 %v4032
    %v4034 = vpop.xlane.xlu0 %4033
    %v4035 = vrcp.pop %v4019
    %v4036 = vmul.f32 %v4006, %v4035
    %v4037 = vrcp.pop %v4022
    %v4038 = vmul.f32 %v4008, %v4037
    %v4039 = vrcp.pop %v4025
    %v4040 = vmul.f32 %v4010, %v4039
    %v4041 = vrcp.pop %v4028
    %v4042 = vmul.f32 %v4012, %v4041
    %v4043 = vrcp.pop %v4031
    %v4044 = vmul.f32 %v4014, %v4043
    %v4045 = vrcp.pop %v4034
    %v4046 = vmul.f32 %v4016, %v4045
    %v4047 = vpack.c.bf16 %v4038, %v4036
    %v4048 = vpack.c.bf16 %v4040, %v4040
    %v4049 = vpack.c.bf16 %v4044, %v4042
    %v4050 = vpack.c.bf16 %v4046, %v4046
    %4051 = vrot.lane.b32.xlu0 %v2582, 40
    %v4052 = vpop.permute.xlu0 %4051
    %4053 = vrot.lane.b32.xlu0 %v2583, 40
    %v4054 = vpop.permute.xlu0 %4053
    %v4057 = vsel %vm526, %v4047, 0
    %v4060 = vsel %vm526, %v4048, 0
    %v4063 = vsel %vm608, %v4054, 0
    %4065 = vmatprep.subr.bf16.mxu0 0
    %4066 = vmatpush1.bf16.msra.mxu0 %v4052
    %4067 = vmatprep.subr.bf16.mxu0 0
    %4068 = vmatpush1.bf16.msra.mxu0 %v4063
    %4069 = vmatprep.subr.bf16.mxu0 0
    %4070 = vmatpush1.bf16.msra.mxu0 0
    %4071 = vmatprep.subr.bf16.mxu0 0
    %4072 = vmatpush1.bf16.msra.mxu0 0
    %4073 = vmatprep.subr.bf16.mxu0 0
    %4074 = vmatpush1.bf16.msra.mxu0 0
    %4075 = vmatprep.subr.bf16.mxu0 0
    %4076 = vmatpush1.bf16.msra.mxu0 0
    %4077 = vmatprep.subr.bf16.mxu0 0
    %4078 = vmatpush1.bf16.msra.mxu0 0
    %4079 = vmatprep.subr.bf16.mxu0 0
    %4080 = vmatpush1.bf16.msra.mxu0 0
    %4081 = vmatprep.subr.bf16.mxu0 0
    %4082 = vmatpush1.bf16.msra.mxu0 0
    %4083 = vmatprep.subr.bf16.mxu0 0
    %4084 = vmatpush1.bf16.msra.mxu0 0
    %4085 = vmatprep.subr.bf16.mxu0 0
    %4086 = vmatpush1.bf16.msra.mxu0 0
    %4087 = vmatprep.subr.bf16.mxu0 0
    %4088 = vmatpush1.bf16.msra.mxu0 0
    %4089 = vmatprep.subr.bf16.mxu0 0
    %4090 = vmatpush1.bf16.msra.mxu0 0
    %4091 = vmatprep.subr.bf16.mxu0 0
    %4092 = vmatpush1.bf16.msra.mxu0 0
    %4093 = vmatprep.subr.bf16.mxu0 0
    %4094 = vmatpush1.bf16.msra.mxu0 0
    %4095 = vmatprep.subr.bf16.mxu0 0
    %4096 = vmatpush1.bf16.msra.mxu0 0
    %4097 = vmatprep.mubr.bf16.mxu0 0
    %4098 = vmatmul.mubr.bf16.gmra.mrb[0].mxu0 %v4057
    %v4099 = vpop.f32.mrb[0].mxu0
    %v4100 = vadd.f32 0.0, %v4099
    %v4101 = vpop.f32.mrb[0].mxu0
    %v4102 = vpop.f32.mrb[0].mxu0
    %v4103 = vadd.f32 0.0, %v4102
    %v4104 = vpop.f32.mrb[0].mxu0
    %4105 = vmatprep.mubr.bf16.mxu0 0
    %4106 = vmatmul.mubr.bf16.gmra.mrb[0].mxu0 %v4060
    %v4107 = vpop.f32.mrb[0].mxu0
    %v4108 = vadd.f32 0.0, %v4107
    %v4109 = vpop.f32.mrb[0].mxu0
    %v4110 = vpop.f32.mrb[0].mxu0
    %v4111 = vpop.f32.mrb[0].mxu0
    %4112 = vdwg.mxu0
    %4113 = vrot.lane.b32.xlu0 %v2584, 40
    %v4114 = vpop.permute.xlu0 %4113
    %4115 = vrot.lane.b32.xlu0 %v2585, 40
    %v4116 = vpop.permute.xlu0 %4115
    %v4119 = vsel %vm526, %v4049, 0
    %v4122 = vsel %vm526, %v4050, 0
    %v4125 = vsel %vm608, %v4116, 0
    %4127 = vmatprep.subr.bf16.mxu0 0
    %4128 = vmatpush1.bf16.msra.mxu0 %v4114
    %4129 = vmatprep.subr.bf16.mxu0 0
    %4130 = vmatpush1.bf16.msra.mxu0 %v4125
    %4131 = vmatprep.subr.bf16.mxu0 0
    %4132 = vmatpush1.bf16.msra.mxu0 0
    %4133 = vmatprep.subr.bf16.mxu0 0
    %4134 = vmatpush1.bf16.msra.mxu0 0
    %4135 = vmatprep.subr.bf16.mxu0 0
    %4136 = vmatpush1.bf16.msra.mxu0 0
    %4137 = vmatprep.subr.bf16.mxu0 0
    %4138 = vmatpush1.bf16.msra.mxu0 0
    %4139 = vmatprep.subr.bf16.mxu0 0
    %4140 = vmatpush1.bf16.msra.mxu0 0
    %4141 = vmatprep.subr.bf16.mxu0 0
    %4142 = vmatpush1.bf16.msra.mxu0 0
    %4143 = vmatprep.subr.bf16.mxu0 0
    %4144 = vmatpush1.bf16.msra.mxu0 0
    %4145 = vmatprep.subr.bf16.mxu0 0
    %4146 = vmatpush1.bf16.msra.mxu0 0
    %4147 = vmatprep.subr.bf16.mxu0 0
    %4148 = vmatpush1.bf16.msra.mxu0 0
    %4149 = vmatprep.subr.bf16.mxu0 0
    %4150 = vmatpush1.bf16.msra.mxu0 0
    %4151 = vmatprep.subr.bf16.mxu0 0
    %4152 = vmatpush1.bf16.msra.mxu0 0
    %4153 = vmatprep.subr.bf16.mxu0 0
    %4154 = vmatpush1.bf16.msra.mxu0 0
    %4155 = vmatprep.subr.bf16.mxu0 0
    %4156 = vmatpush1.bf16.msra.mxu0 0
    %4157 = vmatprep.subr.bf16.mxu0 0
    %4158 = vmatpush1.bf16.msra.mxu0 0
    %4159 = vmatprep.mubr.bf16.mxu0 0
    %4160 = vmatmul.mubr.bf16.gmra.mrb[0].mxu0 %v4119
    %v4161 = vpop.f32.mrb[0].mxu0
    %v4162 = vadd.f32 0.0, %v4161
    %v4163 = vpop.f32.mrb[0].mxu0
    %v4164 = vpop.f32.mrb[0].mxu0
    %v4165 = vadd.f32 0.0, %v4164
    %v4166 = vpop.f32.mrb[0].mxu0
    %4167 = vmatprep.mubr.bf16.mxu0 0
    %4168 = vmatmul.mubr.bf16.gmra.mrb[0].mxu0 %v4122
    %v4169 = vpop.f32.mrb[0].mxu0
    %v4170 = vadd.f32 0.0, %v4169
    %v4171 = vpop.f32.mrb[0].mxu0
    %v4172 = vpop.f32.mrb[0].mxu0
    %v4173 = vpop.f32.mrb[0].mxu0
    %4174 = vdwg.mxu0
    %v4175 = vpack.c.bf16 %v4103, %v4100
    %v4176 = vpack.c.bf16 %v4162, %v4108
    %v4177 = vpack.c.bf16 %v4170, %v4165
    %v4178 = vpack.c.bf16 %v2581, %v2581
    %v4180 = vsel %vm385, %v4175, 0
    %v4183 = vsel %vm385, %v4176, 0
    %v4186 = vsel %vm385, %v4177, 0
    %v4189 = vsel %vm608, %v4178, 0
    %4191 = vmatprep.subr.bf16.mxu0 0
    %4192 = vmatpush1.bf16.msra.mxu0 %v4189
    %4193 = vmatprep.subr.bf16.mxu0 0
    %4194 = vmatpush1.bf16.msra.mxu0 0
    %4195 = vmatprep.subr.bf16.mxu0 0
    %4196 = vmatpush1.bf16.msra.mxu0 0
    %4197 = vmatprep.subr.bf16.mxu0 0
    %4198 = vmatpush1.bf16.msra.mxu0 0
    %4199 = vmatprep.subr.bf16.mxu0 0
    %4200 = vmatpush1.bf16.msra.mxu0 0
    %4201 = vmatprep.subr.bf16.mxu0 0
    %4202 = vmatpush1.bf16.msra.mxu0 0
    %4203 = vmatprep.subr.bf16.mxu0 0
    %4204 = vmatpush1.bf16.msra.mxu0 0
    %4205 = vmatprep.subr.bf16.mxu0 0
    %4206 = vmatpush1.bf16.msra.mxu0 0
    %4207 = vmatprep.subr.bf16.mxu0 0
    %4208 = vmatpush1.bf16.msra.mxu0 0
    %4209 = vmatprep.subr.bf16.mxu0 0
    %4210 = vmatpush1.bf16.msra.mxu0 0
    %4211 = vmatprep.subr.bf16.mxu0 0
    %4212 = vmatpush1.bf16.msra.mxu0 0
    %4213 = vmatprep.subr.bf16.mxu0 0
    %4214 = vmatpush1.bf16.msra.mxu0 0
    %4215 = vmatprep.subr.bf16.mxu0 0
    %4216 = vmatpush1.bf16.msra.mxu0 0
    %4217 = vmatprep.subr.bf16.mxu0 0
    %4218 = vmatpush1.bf16.msra.mxu0 0
    %4219 = vmatprep.subr.bf16.mxu0 0
    %4220 = vmatpush1.bf16.msra.mxu0 0
    %4221 = vmatprep.subr.bf16.mxu0 0
    %4222 = vmatpush1.bf16.msra.mxu0 0
    %4223 = vmatprep.mubr.bf16.mxu0 0
    %4224 = vmatmul.mubr.bf16.gmra.mrb[0].mxu0 %v4180
    %v4225 = vpop.f32.mrb[0].mxu0
    %v4226 = vadd.f32 0.0, %v4225
    %v4227 = vpop.f32.mrb[0].mxu0
    %v4228 = vpop.f32.mrb[0].mxu0
    %v4229 = vadd.f32 0.0, %v4228
    %v4230 = vpop.f32.mrb[0].mxu0
    %4231 = vmatprep.mubr.bf16.mxu0 0
    %4232 = vmatmul.mubr.bf16.gmra.mrb[0].mxu0 %v4183
    %v4233 = vpop.f32.mrb[0].mxu0
    %v4234 = vadd.f32 0.0, %v4233
    %v4235 = vpop.f32.mrb[0].mxu0
    %v4236 = vpop.f32.mrb[0].mxu0
    %v4237 = vadd.f32 0.0, %v4236
    %v4238 = vpop.f32.mrb[0].mxu0
    %4239 = vmatprep.mubr.bf16.mxu0 0
    %4240 = vmatmul.mubr.bf16.gmra.mrb[0].mxu0 %v4186
    %v4241 = vpop.f32.mrb[0].mxu0
    %v4242 = vadd.f32 0.0, %v4241
    %v4243 = vpop.f32.mrb[0].mxu0
    %v4244 = vpop.f32.mrb[0].mxu0
    %v4245 = vadd.f32 0.0, %v4244
    %v4246 = vpop.f32.mrb[0].mxu0
    %4247 = vdwg.mxu0
    %v4248 = vadd.f32 %v3827, %v4226
    %v4249 = vadd.f32 %v3828, %v4229
    %v4250 = vadd.f32 %v3829, %v4234
    %v4251 = vadd.f32 %v3830, %v4237
    %v4252 = vadd.f32 %v3831, %v4242
    %v4253 = vadd.f32 %v3832, %v4245
    %v4254 = vadd.f32 %v2381, %v4248
    %v4255 = vadd.f32 %v2382, %v4249
    %v4256 = vadd.f32 %v2383, %v4250
    %v4257 = vadd.f32 %v2384, %v4251
    %v4258 = vadd.f32 %v2385, %v4252
    %v4259 = vadd.f32 %v2386, %v4253
    %s4260 = scalar_lea.vmem %s11, 1
    %v4261 = vld [vmem:[%s4260] sm:$0x1]
    %v4263 = vlaneseq
    %v4264 = vshrl.u32 %v4263, 7
    %v4265 = vsub.s32 0, %v4264
    %v4266 = vrot.slane %v4261, %v4265
    %v4268 = vadd.f32 %v4254, %v4266
    %v4269 = vadd.f32 %v4255, %v4266
    %v4270 = vadd.f32 %v4256, %v4266
    %v4271 = vadd.f32 %v4257, %v4266
    %v4272 = vadd.f32 %v4258, %v4266
    %v4273 = vadd.f32 %v4259, %v4266
    %s4274 = scalar_lea.vmem %s12, 1
    %v4275 = vld [vmem:[%s4274] sm:$0x1]
    %s4276 = scalar_lea.vmem %s13, 1
    %v4277 = vld [vmem:[%s4276] sm:$0x1]
    %v4278 = vsel %vm161, %v4268, 0.0
    %4279 = vadd.xlane.f32.xlu0 %v4278
    %v4280 = vpop.xlane.xlu0 %4279
    %v4281 = vsel %vm161, %v4269, 0.0
    %4282 = vadd.xlane.f32.xlu0 %v4281
    %v4283 = vpop.xlane.xlu0 %4282
    %v4284 = vsel %vm161, %v4270, 0.0
    %4285 = vadd.xlane.f32.xlu0 %v4284
    %v4286 = vpop.xlane.xlu0 %4285
    %v4287 = vsel %vm161, %v4271, 0.0
    %4288 = vadd.xlane.f32.xlu0 %v4287
    %v4289 = vpop.xlane.xlu0 %4288
    %v4290 = vsel %vm161, %v4272, 0.0
    %4291 = vadd.xlane.f32.xlu0 %v4290
    %v4292 = vpop.xlane.xlu0 %4291
    %v4293 = vsel %vm161, %v4273, 0.0
    %4294 = vadd.xlane.f32.xlu0 %v4293
    %v4295 = vpop.xlane.xlu0 %4294
    %v4296 = vmul.f32 %v4280, %v204
    %v4297 = vmul.f32 %v4283, %v204
    %v4298 = vmul.f32 %v4286, %v204
    %v4299 = vmul.f32 %v4289, %v204
    %v4300 = vmul.f32 %v4292, %v204
    %v4301 = vmul.f32 %v4295, %v204
    %v4302 = vsub.f32 %v4268, %v4296
    %v4303 = vsub.f32 %v4269, %v4297
    %v4304 = vsub.f32 %v4270, %v4298
    %v4305 = vsub.f32 %v4271, %v4299
    %v4306 = vsub.f32 %v4272, %v4300
    %v4307 = vsub.f32 %v4273, %v4301
    %v4308 = vmul.f32 %v4302, %v4302
    %v4309 = vmul.f32 %v4303, %v4303
    %v4310 = vmul.f32 %v4304, %v4304
    %v4311 = vmul.f32 %v4305, %v4305
    %v4312 = vmul.f32 %v4306, %v4306
    %v4313 = vmul.f32 %v4307, %v4307
    %v4314 = vsel %vm161, %v4308, 0.0
    %4315 = vadd.xlane.f32.xlu0 %v4314
    %v4316 = vpop.xlane.xlu0 %4315
    %v4317 = vsel %vm161, %v4309, 0.0
    %4318 = vadd.xlane.f32.xlu0 %v4317
    %v4319 = vpop.xlane.xlu0 %4318
    %v4320 = vsel %vm161, %v4310, 0.0
    %4321 = vadd.xlane.f32.xlu0 %v4320
    %v4322 = vpop.xlane.xlu0 %4321
    %v4323 = vsel %vm161, %v4311, 0.0
    %4324 = vadd.xlane.f32.xlu0 %v4323
    %v4325 = vpop.xlane.xlu0 %4324
    %v4326 = vsel %vm161, %v4312, 0.0
    %4327 = vadd.xlane.f32.xlu0 %v4326
    %v4328 = vpop.xlane.xlu0 %4327
    %v4329 = vsel %vm161, %v4313, 0.0
    %4330 = vadd.xlane.f32.xlu0 %v4329
    %v4331 = vpop.xlane.xlu0 %4330
    %v4332 = vmul.f32 %v4316, %v204
    %v4333 = vmul.f32 %v4319, %v204
    %v4334 = vmul.f32 %v4322, %v204
    %v4335 = vmul.f32 %v4325, %v204
    %v4336 = vmul.f32 %v4328, %v204
    %v4337 = vmul.f32 %v4331, %v204
    %v4338 = vadd.f32 %v4332, 1e-05
    %v4339 = vadd.f32 %v4333, 1e-05
    %v4340 = vadd.f32 %v4334, 1e-05
    %v4341 = vadd.f32 %v4335, 1e-05
    %v4342 = vadd.f32 %v4336, 1e-05
    %v4343 = vadd.f32 %v4337, 1e-05
    %v4344 = vrsqrt.pop %v4338
    %v4345 = vrsqrt.pop %v4339
    %v4346 = vrsqrt.pop %v4340
    %v4347 = vrsqrt.pop %v4341
    %v4348 = vrsqrt.pop %v4342
    %v4349 = vrsqrt.pop %v4343
    %v4350 = vmul.f32 %v4302, %v4344
    %v4351 = vmul.f32 %v4303, %v4345
    %v4352 = vmul.f32 %v4304, %v4346
    %v4353 = vmul.f32 %v4305, %v4347
    %v4354 = vmul.f32 %v4306, %v4348
    %v4355 = vmul.f32 %v4307, %v4349
    %v4357 = vlaneseq
    %v4358 = vshrl.u32 %v4357, 7
    %v4359 = vsub.s32 0, %v4358
    %v4360 = vrot.slane %v4275, %v4359
    %v4362 = vmul.f32 %v4350, %v4360
    %v4363 = vmul.f32 %v4351, %v4360
    %v4364 = vmul.f32 %v4352, %v4360
    %v4365 = vmul.f32 %v4353, %v4360
    %v4366 = vmul.f32 %v4354, %v4360
    %v4367 = vmul.f32 %v4355, %v4360
    %v4369 = vlaneseq
    %v4370 = vshrl.u32 %v4369, 7
    %v4371 = vsub.s32 0, %v4370
    %v4372 = vrot.slane %v4277, %v4371
    %v4374 = vadd.f32 %v4362, %v4372
    %v4375 = vadd.f32 %v4363, %v4372
    %v4376 = vadd.f32 %v4364, %v4372
    %v4377 = vadd.f32 %v4365, %v4372
    %v4378 = vadd.f32 %v4366, %v4372
    %v4379 = vadd.f32 %v4367, %v4372
    %s4380 = scalar_lea.vmem %s14, 32
    %v4381 = vld [vmem:[%s4380] sm:$0xff]
    %v4382 = vld [vmem:[%s4380 + $0x8] sm:$0xff]
    %v4383 = vld [vmem:[%s4380 + $0x10] sm:$0xff]
    %v4384 = vld [vmem:[%s4380 + $0x18] sm:$0xff]
    %v4385 = vpack.c.bf16 %v4375, %v4374
    %v4386 = vpack.c.bf16 %v4377, %v4376
    %v4387 = vpack.c.bf16 %v4379, %v4378
    %v4388 = vpack.c.bf16 %v4382, %v4381
    %v4389 = vpack.c.bf16 %v4384, %v4383
    %s4390 = scalar_lea.vmem %s15, 1
    %v4391 = vld [vmem:[%s4390] sm:$0x1]
    %v4393 = vlaneseq
    %v4394 = vshrl.u32 %v4393, 7
    %v4395 = vsub.s32 0, %v4394
    %v4396 = vrot.slane %v4391, %v4395
    %v4399 = vsel %vm161, %v4385, 0
    %v4402 = vsel %vm161, %v4386, 0
    %v4405 = vsel %vm161, %v4387, 0
    %4407 = vmatprep.subr.bf16.mxu0 0
    %4408 = vmatpush1.bf16.msra.mxu0 %v4388
    %4409 = vmatprep.subr.bf16.mxu0 0
    %4410 = vmatpush1.bf16.msra.mxu0 %v4389
    %4411 = vmatprep.subr.bf16.mxu0 0
    %4412 = vmatpush1.bf16.msra.mxu0 0
    %4413 = vmatprep.subr.bf16.mxu0 0
    %4414 = vmatpush1.bf16.msra.mxu0 0
    %4415 = vmatprep.subr.bf16.mxu0 0
    %4416 = vmatpush1.bf16.msra.mxu0 0
    %4417 = vmatprep.subr.bf16.mxu0 0
    %4418 = vmatpush1.bf16.msra.mxu0 0
    %4419 = vmatprep.subr.bf16.mxu0 0
    %4420 = vmatpush1.bf16.msra.mxu0 0
    %4421 = vmatprep.subr.bf16.mxu0 0
    %4422 = vmatpush1.bf16.msra.mxu0 0
    %4423 = vmatprep.subr.bf16.mxu0 0
    %4424 = vmatpush1.bf16.msra.mxu0 0
    %4425 = vmatprep.subr.bf16.mxu0 0
    %4426 = vmatpush1.bf16.msra.mxu0 0
    %4427 = vmatprep.subr.bf16.mxu0 0
    %4428 = vmatpush1.bf16.msra.mxu0 0
    %4429 = vmatprep.subr.bf16.mxu0 0
    %4430 = vmatpush1.bf16.msra.mxu0 0
    %4431 = vmatprep.subr.bf16.mxu0 0
    %4432 = vmatpush1.bf16.msra.mxu0 0
    %4433 = vmatprep.subr.bf16.mxu0 0
    %4434 = vmatpush1.bf16.msra.mxu0 0
    %4435 = vmatprep.subr.bf16.mxu0 0
    %4436 = vmatpush1.bf16.msra.mxu0 0
    %4437 = vmatprep.subr.bf16.mxu0 0
    %4438 = vmatpush1.bf16.msra.mxu0 0
    %4439 = vmatprep.mubr.bf16.mxu0 0
    %4440 = vmatmul.mubr.bf16.gmra.mrb[0].mxu0 %v4399
    %v4441 = vpop.f32.mrb[0].mxu0
    %v4442 = vadd.f32 %v4396, %v4441
    %v4443 = vpop.f32.mrb[0].mxu0
    %v4444 = vpop.f32.mrb[0].mxu0
    %v4445 = vadd.f32 %v4396, %v4444
    %v4446 = vpop.f32.mrb[0].mxu0
    %4447 = vmatprep.mubr.bf16.mxu0 0
    %4448 = vmatmul.mubr.bf16.gmra.mrb[0].mxu0 %v4402
    %v4449 = vpop.f32.mrb[0].mxu0
    %v4450 = vadd.f32 %v4396, %v4449
    %v4451 = vpop.f32.mrb[0].mxu0
    %v4452 = vpop.f32.mrb[0].mxu0
    %v4453 = vadd.f32 %v4396, %v4452
    %v4454 = vpop.f32.mrb[0].mxu0
    %4455 = vmatprep.mubr.bf16.mxu0 0
    %4456 = vmatmul.mubr.bf16.gmra.mrb[0].mxu0 %v4405
    %v4457 = vpop.f32.mrb[0].mxu0
    %v4458 = vadd.f32 %v4396, %v4457
    %v4459 = vpop.f32.mrb[0].mxu0
    %v4460 = vpop.f32.mrb[0].mxu0
    %v4461 = vadd.f32 %v4396, %v4460
    %v4462 = vpop.f32.mrb[0].mxu0
    %4463 = vdwg.mxu0
    %v4464 = vmul.f32 %v4442, 0.5
    %v4465 = vmul.f32 %v4445, 0.5
    %v4466 = vmul.f32 %v4450, 0.5
    %v4467 = vmul.f32 %v4453, 0.5
    %v4468 = vmul.f32 %v4458, 0.5
    %v4469 = vmul.f32 %v4461, 0.5
    %v4470 = vmul.f32 %v4442, 0.70710677
    %v4471 = vmul.f32 %v4445, 0.70710677
    %v4472 = vmul.f32 %v4450, 0.70710677
    %v4473 = vmul.f32 %v4453, 0.70710677
    %v4474 = vmul.f32 %v4458, 0.70710677
    %v4475 = vmul.f32 %v4461, 0.70710677
    %v4476 = verf.f32.pop %v4470
    %v4477 = verf.f32.pop %v4471
    %v4478 = verf.f32.pop %v4472
    %v4479 = verf.f32.pop %v4473
    %v4480 = verf.f32.pop %v4474
    %v4481 = verf.f32.pop %v4475
    %v4482 = vadd.f32 %v4476, 1.0
    %v4483 = vadd.f32 %v4477, 1.0
    %v4484 = vadd.f32 %v4478, 1.0
    %v4485 = vadd.f32 %v4479, 1.0
    %v4486 = vadd.f32 %v4480, 1.0
    %v4487 = vadd.f32 %v4481, 1.0
    %v4488 = vmul.f32 %v4464, %v4482
    %v4489 = vmul.f32 %v4465, %v4483
    %v4490 = vmul.f32 %v4466, %v4484
    %v4491 = vmul.f32 %v4467, %v4485
    %v4492 = vmul.f32 %v4468, %v4486
    %v4493 = vmul.f32 %v4469, %v4487
    %s4494 = scalar_lea.vmem %s16, 64
    %v4495 = vld [vmem:[%s4494] sm:$0xff]
    %v4496 = vld [vmem:[%s4494 + $0x8] sm:$0xff]
    %v4497 = vld [vmem:[%s4494 + $0x10] sm:$0xff]
    %v4498 = vld [vmem:[%s4494 + $0x18] sm:$0xff]
    %v4499 = vld [vmem:[%s4494 + $0x20] sm:$0xff]
    %v4500 = vld [vmem:[%s4494 + $0x28] sm:$0xff]
    %v4501 = vld [vmem:[%s4494 + $0x30] sm:$0xff]
    %v4502 = vld [vmem:[%s4494 + $0x38] sm:$0xff]
    %v4503 = vpack.c.bf16 %v4489, %v4488
    %v4504 = vpack.c.bf16 %v4491, %v4490
    %v4505 = vpack.c.bf16 %v4493, %v4492
    %v4506 = vpack.c.bf16 %v4496, %v4495
    %v4507 = vpack.c.bf16 %v4498, %v4497
    %v4508 = vpack.c.bf16 %v4500, %v4499
    %v4509 = vpack.c.bf16 %v4502, %v4501
    %v4511 = vsel %vm98, %v4503, 0
    %v4514 = vsel %vm98, %v4504, 0
    %v4517 = vsel %vm98, %v4505, 0
    %4519 = vmatprep.subr.bf16.mxu0 0
    %4520 = vmatpush1.bf16.msra.mxu0 %v4506
    %4521 = vmatprep.subr.bf16.mxu0 0
    %4522 = vmatpush1.bf16.msra.mxu0 %v4507
    %4523 = vmatprep.subr.bf16.mxu0 0
    %4524 = vmatpush1.bf16.msra.mxu0 %v4508
    %4525 = vmatprep.subr.bf16.mxu0 0
    %4526 = vmatpush1.bf16.msra.mxu0 %v4509
    %4527 = vmatprep.subr.bf16.mxu0 0
    %4528 = vmatpush1.bf16.msra.mxu0 0
    %4529 = vmatprep.subr.bf16.mxu0 0
    %4530 = vmatpush1.bf16.msra.mxu0 0
    %4531 = vmatprep.subr.bf16.mxu0 0
    %4532 = vmatpush1.bf16.msra.mxu0 0
    %4533 = vmatprep.subr.bf16.mxu0 0
    %4534 = vmatpush1.bf16.msra.mxu0 0
    %4535 = vmatprep.subr.bf16.mxu0 0
    %4536 = vmatpush1.bf16.msra.mxu0 0
    %4537 = vmatprep.subr.bf16.mxu0 0
    %4538 = vmatpush1.bf16.msra.mxu0 0
    %4539 = vmatprep.subr.bf16.mxu0 0
    %4540 = vmatpush1.bf16.msra.mxu0 0
    %4541 = vmatprep.subr.bf16.mxu0 0
    %4542 = vmatpush1.bf16.msra.mxu0 0
    %4543 = vmatprep.subr.bf16.mxu0 0
    %4544 = vmatpush1.bf16.msra.mxu0 0
    %4545 = vmatprep.subr.bf16.mxu0 0
    %4546 = vmatpush1.bf16.msra.mxu0 0
    %4547 = vmatprep.subr.bf16.mxu0 0
    %4548 = vmatpush1.bf16.msra.mxu0 0
    %4549 = vmatprep.subr.bf16.mxu0 0
    %4550 = vmatpush1.bf16.msra.mxu0 0
    %4551 = vmatprep.mubr.bf16.mxu0 0
    %4552 = vmatmul.mubr.bf16.gmra.mrb[0].mxu0 %v4511
    %v4553 = vpop.f32.mrb[0].mxu0
    %v4554 = vadd.f32 0.0, %v4553
    %v4555 = vpop.f32.mrb[0].mxu0
    %v4556 = vpop.f32.mrb[0].mxu0
    %v4557 = vadd.f32 0.0, %v4556
    %v4558 = vpop.f32.mrb[0].mxu0
    %4559 = vmatprep.mubr.bf16.mxu0 0
    %4560 = vmatmul.mubr.bf16.gmra.mrb[0].mxu0 %v4514
    %v4561 = vpop.f32.mrb[0].mxu0
    %v4562 = vadd.f32 0.0, %v4561
    %v4563 = vpop.f32.mrb[0].mxu0
    %v4564 = vpop.f32.mrb[0].mxu0
    %v4565 = vadd.f32 0.0, %v4564
    %v4566 = vpop.f32.mrb[0].mxu0
    %4567 = vmatprep.mubr.bf16.mxu0 0
    %4568 = vmatmul.mubr.bf16.gmra.mrb[0].mxu0 %v4517
    %v4569 = vpop.f32.mrb[0].mxu0
    %v4570 = vadd.f32 0.0, %v4569
    %v4571 = vpop.f32.mrb[0].mxu0
    %v4572 = vpop.f32.mrb[0].mxu0
    %v4573 = vadd.f32 0.0, %v4572
    %v4574 = vpop.f32.mrb[0].mxu0
    %4575 = vdwg.mxu0
    %v4576 = vadd.f32 %v4268, %v4554
    %v4577 = vadd.f32 %v4269, %v4557
    %v4578 = vadd.f32 %v4270, %v4562
    %v4579 = vadd.f32 %v4271, %v4565
    %v4580 = vadd.f32 %v4272, %v4570
    %v4581 = vadd.f32 %v4273, %v4573
    %s4582 = scalar_lea.vmem %s17, 1
    %v4583 = vld [vmem:[%s4582] sm:$0x1]
    %v4585 = vlaneseq
    %v4586 = vshrl.u32 %v4585, 7
    %v4587 = vsub.s32 0, %v4586
    %v4588 = vrot.slane %v4583, %v4587
    %v4590 = vadd.f32 %v4576, %v4588
    %v4591 = vadd.f32 %v4577, %v4588
    %v4592 = vadd.f32 %v4578, %v4588
    %v4593 = vadd.f32 %v4579, %v4588
    %v4594 = vadd.f32 %v4580, %v4588
    %v4595 = vadd.f32 %v4581, %v4588
    %v4596 = vld [vmem:[%s18] sm:$0x1]
    %v4597 = vld [vmem:[%s19] sm:$0x1]
    %v4598 = vsel %vm161, %v4590, 0.0
    %4599 = vadd.xlane.f32.xlu0 %v4598
    %v4600 = vpop.xlane.xlu0 %4599
    %v4601 = vsel %vm161, %v4591, 0.0
    %4602 = vadd.xlane.f32.xlu0 %v4601
    %v4603 = vpop.xlane.xlu0 %4602
    %v4604 = vsel %vm161, %v4592, 0.0
    %4605 = vadd.xlane.f32.xlu0 %v4604
    %v4606 = vpop.xlane.xlu0 %4605
    %v4607 = vsel %vm161, %v4593, 0.0
    %4608 = vadd.xlane.f32.xlu0 %v4607
    %v4609 = vpop.xlane.xlu0 %4608
    %v4610 = vsel %vm161, %v4594, 0.0
    %4611 = vadd.xlane.f32.xlu0 %v4610
    %v4612 = vpop.xlane.xlu0 %4611
    %v4613 = vsel %vm161, %v4595, 0.0
    %4614 = vadd.xlane.f32.xlu0 %v4613
    %v4615 = vpop.xlane.xlu0 %4614
    %v4616 = vmul.f32 %v4600, %v204
    %v4617 = vmul.f32 %v4603, %v204
    %v4618 = vmul.f32 %v4606, %v204
    %v4619 = vmul.f32 %v4609, %v204
    %v4620 = vmul.f32 %v4612, %v204
    %v4621 = vmul.f32 %v4615, %v204
    %v4622 = vsub.f32 %v4590, %v4616
    %v4623 = vsub.f32 %v4591, %v4617
    %v4624 = vsub.f32 %v4592, %v4618
    %v4625 = vsub.f32 %v4593, %v4619
    %v4626 = vsub.f32 %v4594, %v4620
    %v4627 = vsub.f32 %v4595, %v4621
    %v4628 = vmul.f32 %v4622, %v4622
    %v4629 = vmul.f32 %v4623, %v4623
    %v4630 = vmul.f32 %v4624, %v4624
    %v4631 = vmul.f32 %v4625, %v4625
    %v4632 = vmul.f32 %v4626, %v4626
    %v4633 = vmul.f32 %v4627, %v4627
    %v4634 = vsel %vm161, %v4628, 0.0
    %4635 = vadd.xlane.f32.xlu0 %v4634
    %v4636 = vpop.xlane.xlu0 %4635
    %v4637 = vsel %vm161, %v4629, 0.0
    %4638 = vadd.xlane.f32.xlu0 %v4637
    %v4639 = vpop.xlane.xlu0 %4638
    %v4640 = vsel %vm161, %v4630, 0.0
    %4641 = vadd.xlane.f32.xlu0 %v4640
    %v4642 = vpop.xlane.xlu0 %4641
    %v4643 = vsel %vm161, %v4631, 0.0
    %4644 = vadd.xlane.f32.xlu0 %v4643
    %v4645 = vpop.xlane.xlu0 %4644
    %v4646 = vsel %vm161, %v4632, 0.0
    %4647 = vadd.xlane.f32.xlu0 %v4646
    %v4648 = vpop.xlane.xlu0 %4647
    %v4649 = vsel %vm161, %v4633, 0.0
    %4650 = vadd.xlane.f32.xlu0 %v4649
    %v4651 = vpop.xlane.xlu0 %4650
    %v4652 = vmul.f32 %v4636, %v204
    %v4653 = vmul.f32 %v4639, %v204
    %v4654 = vmul.f32 %v4642, %v204
    %v4655 = vmul.f32 %v4645, %v204
    %v4656 = vmul.f32 %v4648, %v204
    %v4657 = vmul.f32 %v4651, %v204
    %v4658 = vadd.f32 %v4652, 1e-05
    %v4659 = vadd.f32 %v4653, 1e-05
    %v4660 = vadd.f32 %v4654, 1e-05
    %v4661 = vadd.f32 %v4655, 1e-05
    %v4662 = vadd.f32 %v4656, 1e-05
    %v4663 = vadd.f32 %v4657, 1e-05
    %v4664 = vrsqrt.pop %v4658
    %v4665 = vrsqrt.pop %v4659
    %v4666 = vrsqrt.pop %v4660
    %v4667 = vrsqrt.pop %v4661
    %v4668 = vrsqrt.pop %v4662
    %v4669 = vrsqrt.pop %v4663
    %v4670 = vmul.f32 %v4622, %v4664
    %v4671 = vmul.f32 %v4623, %v4665
    %v4672 = vmul.f32 %v4624, %v4666
    %v4673 = vmul.f32 %v4625, %v4667
    %v4674 = vmul.f32 %v4626, %v4668
    %v4675 = vmul.f32 %v4627, %v4669
    %v4677 = vlaneseq
    %v4678 = vshrl.u32 %v4677, 7
    %v4679 = vsub.s32 0, %v4678
    %v4680 = vrot.slane %v4596, %v4679
    %v4682 = vmul.f32 %v4670, %v4680
    %v4683 = vmul.f32 %v4671, %v4680
    %v4684 = vmul.f32 %v4672, %v4680
    %v4685 = vmul.f32 %v4673, %v4680
    %v4686 = vmul.f32 %v4674, %v4680
    %v4687 = vmul.f32 %v4675, %v4680
    %v4689 = vlaneseq
    %v4690 = vshrl.u32 %v4689, 7
    %v4691 = vsub.s32 0, %v4690
    %v4692 = vrot.slane %v4597, %v4691
    %v4694 = vadd.f32 %v4682, %v4692
    %v4695 = vadd.f32 %v4683, %v4692
    %v4696 = vadd.f32 %v4684, %v4692
    %v4697 = vadd.f32 %v4685, %v4692
    %v4698 = vadd.f32 %v4686, %v4692
    %v4699 = vadd.f32 %v4687, %v4692
    %v4700 = vld [vmem:[%s20] sm:$0xff]
    %v4701 = vld [vmem:[%s20 + $0x8] sm:$0xff]
    %v4702 = vld [vmem:[%s20 + $0x10] sm:$0xff]
    %v4703 = vld [vmem:[%s20 + $0x18] sm:$0xff]
    %v4704 = vpack.c.bf16 %v4695, %v4694
    %v4705 = vpack.c.bf16 %v4697, %v4696
    %v4706 = vpack.c.bf16 %v4699, %v4698
    %v4707 = vpack.c.bf16 %v4701, %v4700
    %v4708 = vpack.c.bf16 %v4703, %v4702
    %v4709 = vld [vmem:[%s21] sm:$0x1]
    %v4711 = vlaneseq
    %v4712 = vshrl.u32 %v4711, 7
    %v4713 = vsub.s32 0, %v4712
    %v4714 = vrot.slane %v4709, %v4713
    %v4717 = vsel %vm161, %v4704, 0
    %v4720 = vsel %vm161, %v4705, 0
    %v4723 = vsel %vm161, %v4706, 0
    %4725 = vmatprep.subr.bf16.mxu0 0
    %4726 = vmatpush1.bf16.msra.mxu0 %v4707
    %4727 = vmatprep.subr.bf16.mxu0 0
    %4728 = vmatpush1.bf16.msra.mxu0 %v4708
    %4729 = vmatprep.subr.bf16.mxu0 0
    %4730 = vmatpush1.bf16.msra.mxu0 0
    %4731 = vmatprep.subr.bf16.mxu0 0
    %4732 = vmatpush1.bf16.msra.mxu0 0
    %4733 = vmatprep.subr.bf16.mxu0 0
    %4734 = vmatpush1.bf16.msra.mxu0 0
    %4735 = vmatprep.subr.bf16.mxu0 0
    %4736 = vmatpush1.bf16.msra.mxu0 0
    %4737 = vmatprep.subr.bf16.mxu0 0
    %4738 = vmatpush1.bf16.msra.mxu0 0
    %4739 = vmatprep.subr.bf16.mxu0 0
    %4740 = vmatpush1.bf16.msra.mxu0 0
    %4741 = vmatprep.subr.bf16.mxu0 0
    %4742 = vmatpush1.bf16.msra.mxu0 0
    %4743 = vmatprep.subr.bf16.mxu0 0
    %4744 = vmatpush1.bf16.msra.mxu0 0
    %4745 = vmatprep.subr.bf16.mxu0 0
    %4746 = vmatpush1.bf16.msra.mxu0 0
    %4747 = vmatprep.subr.bf16.mxu0 0
    %4748 = vmatpush1.bf16.msra.mxu0 0
    %4749 = vmatprep.subr.bf16.mxu0 0
    %4750 = vmatpush1.bf16.msra.mxu0 0
    %4751 = vmatprep.subr.bf16.mxu0 0
    %4752 = vmatpush1.bf16.msra.mxu0 0
    %4753 = vmatprep.subr.bf16.mxu0 0
    %4754 = vmatpush1.bf16.msra.mxu0 0
    %4755 = vmatprep.subr.bf16.mxu0 0
    %4756 = vmatpush1.bf16.msra.mxu0 0
    %4757 = vmatprep.mubr.bf16.mxu0 0
    %4758 = vmatmul.mubr.bf16.gmra.mrb[0].mxu0 %v4717
    %v4759 = vpop.f32.mrb[0].mxu0
    %v4760 = vpop.f32.mrb[0].mxu0
    %v4761 = vpop.f32.mrb[0].mxu0
    %v4762 = vpop.f32.mrb[0].mxu0
    %4763 = vmatprep.mubr.bf16.mxu0 0
    %4764 = vmatmul.mubr.bf16.gmra.mrb[0].mxu0 %v4720
    %v4765 = vpop.f32.mrb[0].mxu0
    %v4766 = vadd.f32 %v4714, %v4765
    %v4767 = vpop.f32.mrb[0].mxu0
    %v4768 = vpop.f32.mrb[0].mxu0
    %v4769 = vpop.f32.mrb[0].mxu0
    %4770 = vmatprep.mubr.bf16.mxu0 0
    %4771 = vmatmul.mubr.bf16.gmra.mrb[0].mxu0 %v4723
    %v4772 = vpop.f32.mrb[0].mxu0
    %v4773 = vpop.f32.mrb[0].mxu0
    %v4774 = vpop.f32.mrb[0].mxu0
    %v4775 = vadd.f32 %v4714, %v4774
    %v4776 = vpop.f32.mrb[0].mxu0
    %4777 = vdwg.mxu0
    %4778 = vst [vmem:[#allocation3] sm:$0x1] %v4766
    %4779 = vst [vmem:[#allocation3 + $0x1] sm:$0x1] %v4775
    // Predicated region
    $region90: #{vit_forward.1} parent=1 // pred_check
      _
    $region91: #{vit_forward.1} parent=1 // pred_check_branch
      %4781 = sbr.rel (0) target = $region93
    $region92: #{vit_forward.1} parent=1 // pred_region
      %s4783 = ssub.s32 32, 32
      %4784 = vsyncadd [#allocation4], %s4783
      %s4786 = sshll.u32 [#allocation3], 4
      %s4787 = int_to_ptr.vmem [resolvable:$true] %s4786
      %4789 = dma.vmem_to_hbm [thread:$0]  %s4787, 32, %s22, [#allocation4]
    $region93: #{vit_forward.1} parent=1 // pred_fallthru
      _
    // Predicated region
    $region94: #{vit_forward.1} parent=1 // pred_check
      _
    $region95: #{vit_forward.1} parent=1 // pred_check_branch
      %4791 = sbr.rel (0) target = $region97
    $region96: #{vit_forward.1} parent=1 // pred_region
      %4792 = dma.done [#allocation4], 32
    $region97: #{vit_forward.1} parent=1 // pred_fallthru
      _
    %4793 = vsyncpa [#allocation4], 1

</llo_original>
